<compile_context>
chip_gen: v7x
topology: tpu7x:2x2x1
jax: 0.10.0
libtpu: 0.0.40
codegen_flags: <defaults>
</compile_context>

<pallas_src>
import numpy as np

import jax
import jax.numpy as jnp
from jax import lax
from jax.experimental import pallas as pl
from jax.experimental.pallas import tpu as pltpu


# ---------------------------------------------------------------------------
# Fused whole-network kernel (one image per grid step)
# ---------------------------------------------------------------------------
def _lenet_kernel(x_ref, t1e_ref, t1o_ref, b1_ref, t2e_ref, t2o_ref, b2_ref,
                  f1_ref, f1b_ref, f2w_ref, f2b_ref, f3w_ref, f3b_ref,
                  out_ref):
    """One image per grid step; every intermediate lives in registers/VMEM."""
    f32 = jnp.float32

    def conv_relu_pool(rows, te_ref, to_ref, brow_ref, k, oh):
        # Direct convolution: k accumulated lane-dense 2-D matmuls (one per
        # kernel-row offset di). te/to hold the even-x / odd-x output-column
        # halves of the row-Toeplitz weights, so the horizontal 2x max pool is
        # a plain elementwise maximum (no lane reshapes / strided slices).
        acc_e = jnp.dot(rows(0), te_ref[0], preferred_element_type=f32)
        acc_o = jnp.dot(rows(0), to_ref[0], preferred_element_type=f32)
        for di in range(1, k):
            r = rows(di)
            acc_e = acc_e + jnp.dot(r, te_ref[di], preferred_element_type=f32)
            acc_o = acc_o + jnp.dot(r, to_ref[di], preferred_element_type=f32)
        bias = brow_ref[...]
        acc_e = jnp.maximum(acc_e + bias, 0.0)
        acc_o = jnp.maximum(acc_o + bias, 0.0)
        h = jnp.maximum(acc_e, acc_o)                 # horizontal 2x max pool
        pairs = h.reshape(oh // 2, 2, h.shape[-1])    # vertical 2x max pool
        return jnp.maximum(pairs[:, 0, :], pairs[:, 1, :])

    # conv1 + ReLU + pool: rows of (32, 96) -> (14, 84)  [lanes = x*6 + ch]
    p1 = conv_relu_pool(lambda di: x_ref[0, di:di + 28, :],
                        t1e_ref, t1o_ref, b1_ref, k=5, oh=28)
    # conv2 + ReLU + pool: (14, 84) -> (5, 80)           [lanes = x*16 + ch]
    p2 = conv_relu_pool(lambda di: p1[di:di + 10, :],
                        t2e_ref, t2o_ref, b2_ref, k=5, oh=10)

    # fc1 as an accumulation over the 5 pooled rows (no flatten scratch).
    z = jnp.dot(p2[0:1, :], f1_ref[0], preferred_element_type=f32)
    for py in range(1, 5):
        z = z + jnp.dot(p2[py:py + 1, :], f1_ref[py],
                        preferred_element_type=f32)
    z = jnp.maximum(z + f1b_ref[...], 0.0)                         # (1, 120)
    z = jnp.maximum(jnp.dot(z, f2w_ref[...], preferred_element_type=f32)
                    + f2b_ref[...], 0.0)                           # (1, 84)
    z = jnp.dot(z, f3w_ref[...], preferred_element_type=f32) + f3b_ref[...]
    out_ref[...] = z.reshape(1, 1, 10)


# ---------------------------------------------------------------------------
# Wrapper: one-time weight re-layouts + single pallas_call
# ---------------------------------------------------------------------------
def _conv_toeplitz_halves(w, in_w):
    """Conv weight (oc, c, k, k) -> even/odd-column row-Toeplitz matrices.

    Returns (even, odd), each of shape (k, in_w*c, (out_w//2)*oc), with
      T[di][x_in*c + ci, px*oc + o] = w[o, ci, di, x_in - x_out]
    for x_out = 2*px (even) / 2*px + 1 (odd) when 0 <= x_in - x_out < k, else 0.
    A row-slab matmul `input_rows(di) @ T[di]` summed over di is the full conv
    at that output-column parity, so the horizontal pool is an elementwise max.
    """
    oc, c, k, _ = w.shape
    out_w = in_w - k + 1
    dj = np.arange(k)[:, None, None]
    xi = np.arange(in_w)[None, :, None]
    xo = np.arange(out_w)[None, None, :]
    sel = (xi == xo + dj).astype(np.float32)          # (k, in_w, out_w) 0/1
    # T[di, x_in, ci, x_out, o] = sum_dj sel[dj, x_in, x_out] * w[o, ci, di, dj]
    t = jnp.einsum("jpq,ocij->ipcqo", sel, w.astype(jnp.float32),
                   precision=lax.Precision.HIGHEST)
    t = t.reshape(k, in_w * c, out_w, oc)
    even = t[:, :, 0::2, :].reshape(k, in_w * c, (out_w // 2) * oc)
    odd = t[:, :, 1::2, :].reshape(k, in_w * c, (out_w // 2) * oc)
    return even, odd


def net_forward(x, params):
    """x: (N, 3, 32, 32) float32, PyTorch-shaped params -> (N, 10) logits."""
    N = x.shape[0]
    assert x.shape[1:] == (3, 32, 32), "Net's forward implies 3x32x32 inputs"
    f32 = jnp.float32

    # Rows = image rows, lanes = (width, channel) interleaved: (N, 32, 96).
    x3 = jnp.transpose(x, (0, 2, 3, 1)).reshape(N, 32, 32 * 3).astype(f32)

    t1e, t1o = _conv_toeplitz_halves(params["conv1_w"], 32)   # (5, 96, 84) x2
    t2e, t2o = _conv_toeplitz_halves(params["conv2_w"], 14)   # (5, 84, 80) x2
    b1 = jnp.tile(params["conv1_b"].astype(f32), 14)[None, :]  # (1, 84)
    b2 = jnp.tile(params["conv2_b"].astype(f32), 5)[None, :]   # (1, 80)

    # PyTorch flattens NCHW (c, h, w); the kernel's pooled layout is
    # rows = h, lanes = w*16 + c. Permute fc1's input rows once and split by
    # pooled row (h) so fc1 becomes an accumulation over 5 row-matmuls.
    f1 = (params["fc1_w"].astype(f32).reshape(16, 5, 5, 120)
          .transpose(1, 2, 0, 3).reshape(5, 80, 120))
    f1b = params["fc1_b"].astype(f32)[None, :]
    f2w = params["fc2_w"].astype(f32)
    f2b = params["fc2_b"].astype(f32)[None, :]
    f3w = params["fc3_w"].astype(f32)
    f3b = params["fc3_b"].astype(f32)[None, :]

    def whole(a):   # full-array block, constant index map -> DMA'd once
        return pl.BlockSpec(a.shape, lambda b: (0,) * a.ndim)

    out = pl.pallas_call(
        _lenet_kernel,
        grid=(N,),
        in_specs=[
            pl.BlockSpec((1, 32, 96), lambda b: (b, 0, 0)),
            whole(t1e), whole(t1o), whole(b1),
            whole(t2e), whole(t2o), whole(b2),
            whole(f1), whole(f1b), whole(f2w), whole(f2b),
            whole(f3w), whole(f3b),
        ],
        out_specs=pl.BlockSpec((1, 1, 10), lambda b: (b, 0, 0)),
        out_shape=jax.ShapeDtypeStruct((N, 1, 10), f32),
        compiler_params=pltpu.CompilerParams(
            dimension_semantics=("parallel",)),
    )(x3, t1e, t1o, b1, t2e, t2o, b2, f1, f1b, f2w, f2b, f3w, f3b)
    return out.reshape(N, 10)


# ---------------------------------------------------------------------------
# Parameter init (PyTorch shapes) and a plain-XLA f32 reference
# ---------------------------------------------------------------------------
def init_params(key):
    """Deterministic init matching the PyTorch module's parameter shapes."""
    ks = jax.random.split(key, 10)

    def unif(k, shape, fan_in):
        bound = 1.0 / jnp.sqrt(float(fan_in))
        return jax.random.uniform(k, shape, jnp.float32, -bound, bound)

    return {
        "conv1_w": unif(ks[0], (6, 3, 5, 5), 3 * 5 * 5),
        "conv1_b": unif(ks[1], (6,), 3 * 5 * 5),
        "conv2_w": unif(ks[2], (16, 6, 5, 5), 6 * 5 * 5),
        "conv2_b": unif(ks[3], (16,), 6 * 5 * 5),
        # Linear weights stored as (in, out): x @ W + b == x @ weight.T + b.
        "fc1_w": unif(ks[4], (400, 120), 400),
        "fc1_b": unif(ks[5], (120,), 400),
        "fc2_w": unif(ks[6], (120, 84), 120),
        "fc2_b": unif(ks[7], (84,), 120),
        "fc3_w": unif(ks[8], (84, 10), 84),
        "fc3_b": unif(ks[9], (10,), 84),
    }


def net_forward_reference(x, params):
    """Pure-XLA float32 reference with PyTorch semantics (sanity check)."""
    dn = ("NCHW", "OIHW", "NCHW")
    hp = lax.Precision.HIGHEST
    h = lax.conv_general_dilated(x, params["conv1_w"], (1, 1), "VALID",
                                 dimension_numbers=dn, precision=hp)
    h = jax.nn.relu(h + params["conv1_b"][None, :, None, None])
    h = lax.reduce_window(h, -jnp.inf, lax.max, (1, 1, 2, 2), (1, 1, 2, 2),
                          "VALID")
    h = lax.conv_general_dilated(h, params["conv2_w"], (1, 1), "VALID",
                                 dimension_numbers=dn, precision=hp)
    h = jax.nn.relu(h + params["conv2_b"][None, :, None, None])
    h = lax.reduce_window(h, -jnp.inf, lax.max, (1, 1, 2, 2), (1, 1, 2, 2),
                          "VALID")
    h = h.reshape(h.shape[0], -1)                        # NCHW flatten
    h = jax.nn.relu(jnp.dot(h, params["fc1_w"], precision=hp)
                    + params["fc1_b"])
    h = jax.nn.relu(jnp.dot(h, params["fc2_w"], precision=hp)
                    + params["fc2_b"])
    return jnp.dot(h, params["fc3_w"], precision=hp) + params["fc3_b"]


if __name__ == "__main__":
    key = jax.random.PRNGKey(0)
    k_params, k_x = jax.random.split(key)
    params = init_params(k_params)
    # The forward pass implies 32x32 spatial input (-> 16*5*5 = 400 features).
    x = jax.random.normal(k_x, (2, 3, 32, 32), dtype=jnp.float32)

    out = jax.block_until_ready(jax.jit(net_forward)(x, params))
    assert out.shape == (2, 10) and out.dtype == jnp.float32

    # Sanity check vs plain-XLA f32 reference (both sides are f32 now).
    ref = jax.block_until_ready(jax.jit(net_forward_reference)(x, params))
    err = float(jnp.max(jnp.abs(out - ref)))
    assert err < 1e-2, f"kernel/reference mismatch: max abs err = {err}"
    print("KERNEL_OK")
</pallas_src>

<mosaic_0001>
module attributes {stable_mosaic.version = 11 : i64} {
  func.func @_lenet_kernel(%arg0: i32, %arg1: memref<1x32x96xf32, #tpu.memory_space<vmem>>, %arg2: memref<5x96x84xf32, #tpu.memory_space<vmem>>, %arg3: memref<5x96x84xf32, #tpu.memory_space<vmem>>, %arg4: memref<1x84xf32, #tpu.memory_space<vmem>>, %arg5: memref<5x84x80xf32, #tpu.memory_space<vmem>>, %arg6: memref<5x84x80xf32, #tpu.memory_space<vmem>>, %arg7: memref<1x80xf32, #tpu.memory_space<vmem>>, %arg8: memref<5x80x120xf32, #tpu.memory_space<vmem>>, %arg9: memref<1x120xf32, #tpu.memory_space<vmem>>, %arg10: memref<120x84xf32, #tpu.memory_space<vmem>>, %arg11: memref<1x84xf32, #tpu.memory_space<vmem>>, %arg12: memref<84x10xf32, #tpu.memory_space<vmem>>, %arg13: memref<1x10xf32, #tpu.memory_space<vmem>>, %arg14: memref<1x1x10xf32, #tpu.memory_space<vmem>>) attributes {dimension_semantics = [#tpu.dimension_semantics<parallel>], iteration_bounds = array<i64: 2>, scalar_prefetch = 0 : i64, scratch_operands = 0 : i64, tpu.core_type = #tpu.core_type<tc>, window_params = [{transform_indices = @transform_0, window_bounds = array<i64: 1, 32, 96>}, {pipeline_mode = #tpu.pipeline_mode<synchronous>, transform_indices = @transform_1, window_bounds = array<i64: 5, 96, 84>}, {pipeline_mode = #tpu.pipeline_mode<synchronous>, transform_indices = @transform_2, window_bounds = array<i64: 5, 96, 84>}, {pipeline_mode = #tpu.pipeline_mode<synchronous>, transform_indices = @transform_3, window_bounds = array<i64: 1, 84>}, {pipeline_mode = #tpu.pipeline_mode<synchronous>, transform_indices = @transform_4, window_bounds = array<i64: 5, 84, 80>}, {pipeline_mode = #tpu.pipeline_mode<synchronous>, transform_indices = @transform_5, window_bounds = array<i64: 5, 84, 80>}, {pipeline_mode = #tpu.pipeline_mode<synchronous>, transform_indices = @transform_6, window_bounds = array<i64: 1, 80>}, {pipeline_mode = #tpu.pipeline_mode<synchronous>, transform_indices = @transform_7, window_bounds = array<i64: 5, 80, 120>}, {pipeline_mode = #tpu.pipeline_mode<synchronous>, transform_indices = @transform_8, window_bounds = array<i64: 1, 120>}, {pipeline_mode = #tpu.pipeline_mode<synchronous>, transform_indices = @transform_9, window_bounds = array<i64: 120, 84>}, {pipeline_mode = #tpu.pipeline_mode<synchronous>, transform_indices = @transform_10, window_bounds = array<i64: 1, 84>}, {pipeline_mode = #tpu.pipeline_mode<synchronous>, transform_indices = @transform_11, window_bounds = array<i64: 84, 10>}, {pipeline_mode = #tpu.pipeline_mode<synchronous>, transform_indices = @transform_12, window_bounds = array<i64: 1, 10>}, {transform_indices = @transform_13, window_bounds = array<i64: 1, 1, 10>}]} {
    %c0 = arith.constant 0 : index
    %c0_0 = arith.constant 0 : index
    %c0_1 = arith.constant 0 : index
    %0 = vector.load %arg1[%c0, %c0_0, %c0_1] : memref<1x32x96xf32, #tpu.memory_space<vmem>>, vector<1x28x96xf32>
    %1 = vector.shape_cast %0 : vector<1x28x96xf32> to vector<28x96xf32>
    %c0_2 = arith.constant 0 : index
    %c0_3 = arith.constant 0 : index
    %c0_4 = arith.constant 0 : index
    %2 = vector.load %arg2[%c0_2, %c0_3, %c0_4] : memref<5x96x84xf32, #tpu.memory_space<vmem>>, vector<1x96x84xf32>
    %3 = vector.shape_cast %2 : vector<1x96x84xf32> to vector<96x84xf32>
    %cst = arith.constant dense<0.000000e+00> : vector<28x84xf32>
    %4 = tpu.matmul %1, %3, %cst {dimension_numbers = #tpu.dot_dimension_numbers<[1], [0], [0], [1], [0, 0, 1, 1], [], []>} : vector<28x96xf32>, vector<96x84xf32>, vector<28x84xf32> -> vector<28x84xf32>
    %c0_5 = arith.constant 0 : index
    %c0_6 = arith.constant 0 : index
    %c0_7 = arith.constant 0 : index
    %5 = vector.load %arg1[%c0_5, %c0_6, %c0_7] : memref<1x32x96xf32, #tpu.memory_space<vmem>>, vector<1x28x96xf32>
    %6 = vector.shape_cast %5 : vector<1x28x96xf32> to vector<28x96xf32>
    %c0_8 = arith.constant 0 : index
    %c0_9 = arith.constant 0 : index
    %c0_10 = arith.constant 0 : index
    %7 = vector.load %arg3[%c0_8, %c0_9, %c0_10] : memref<5x96x84xf32, #tpu.memory_space<vmem>>, vector<1x96x84xf32>
    %8 = vector.shape_cast %7 : vector<1x96x84xf32> to vector<96x84xf32>
    %cst_11 = arith.constant dense<0.000000e+00> : vector<28x84xf32>
    %9 = tpu.matmul %6, %8, %cst_11 {dimension_numbers = #tpu.dot_dimension_numbers<[1], [0], [0], [1], [0, 0, 1, 1], [], []>} : vector<28x96xf32>, vector<96x84xf32>, vector<28x84xf32> -> vector<28x84xf32>
    %c0_12 = arith.constant 0 : index
    %c1 = arith.constant 1 : index
    %c0_13 = arith.constant 0 : index
    %10 = vector.load %arg1[%c0_12, %c1, %c0_13] : memref<1x32x96xf32, #tpu.memory_space<vmem>>, vector<1x28x96xf32>
    %11 = vector.shape_cast %10 : vector<1x28x96xf32> to vector<28x96xf32>
    %c1_14 = arith.constant 1 : index
    %c0_15 = arith.constant 0 : index
    %c0_16 = arith.constant 0 : index
    %12 = vector.load %arg2[%c1_14, %c0_15, %c0_16] : memref<5x96x84xf32, #tpu.memory_space<vmem>>, vector<1x96x84xf32>
    %13 = vector.shape_cast %12 : vector<1x96x84xf32> to vector<96x84xf32>
    %cst_17 = arith.constant dense<0.000000e+00> : vector<28x84xf32>
    %14 = tpu.matmul %11, %13, %cst_17 {dimension_numbers = #tpu.dot_dimension_numbers<[1], [0], [0], [1], [0, 0, 1, 1], [], []>} : vector<28x96xf32>, vector<96x84xf32>, vector<28x84xf32> -> vector<28x84xf32>
    %15 = arith.addf %4, %14 : vector<28x84xf32>
    %c1_18 = arith.constant 1 : index
    %c0_19 = arith.constant 0 : index
    %c0_20 = arith.constant 0 : index
    %16 = vector.load %arg3[%c1_18, %c0_19, %c0_20] : memref<5x96x84xf32, #tpu.memory_space<vmem>>, vector<1x96x84xf32>
    %17 = vector.shape_cast %16 : vector<1x96x84xf32> to vector<96x84xf32>
    %cst_21 = arith.constant dense<0.000000e+00> : vector<28x84xf32>
    %18 = tpu.matmul %11, %17, %cst_21 {dimension_numbers = #tpu.dot_dimension_numbers<[1], [0], [0], [1], [0, 0, 1, 1], [], []>} : vector<28x96xf32>, vector<96x84xf32>, vector<28x84xf32> -> vector<28x84xf32>
    %19 = arith.addf %9, %18 : vector<28x84xf32>
    %c0_22 = arith.constant 0 : index
    %c2 = arith.constant 2 : index
    %c0_23 = arith.constant 0 : index
    %20 = vector.load %arg1[%c0_22, %c2, %c0_23] : memref<1x32x96xf32, #tpu.memory_space<vmem>>, vector<1x28x96xf32>
    %21 = vector.shape_cast %20 : vector<1x28x96xf32> to vector<28x96xf32>
    %c2_24 = arith.constant 2 : index
    %c0_25 = arith.constant 0 : index
    %c0_26 = arith.constant 0 : index
    %22 = vector.load %arg2[%c2_24, %c0_25, %c0_26] : memref<5x96x84xf32, #tpu.memory_space<vmem>>, vector<1x96x84xf32>
    %23 = vector.shape_cast %22 : vector<1x96x84xf32> to vector<96x84xf32>
    %cst_27 = arith.constant dense<0.000000e+00> : vector<28x84xf32>
    %24 = tpu.matmul %21, %23, %cst_27 {dimension_numbers = #tpu.dot_dimension_numbers<[1], [0], [0], [1], [0, 0, 1, 1], [], []>} : vector<28x96xf32>, vector<96x84xf32>, vector<28x84xf32> -> vector<28x84xf32>
    %25 = arith.addf %15, %24 : vector<28x84xf32>
    %c2_28 = arith.constant 2 : index
    %c0_29 = arith.constant 0 : index
    %c0_30 = arith.constant 0 : index
    %26 = vector.load %arg3[%c2_28, %c0_29, %c0_30] : memref<5x96x84xf32, #tpu.memory_space<vmem>>, vector<1x96x84xf32>
    %27 = vector.shape_cast %26 : vector<1x96x84xf32> to vector<96x84xf32>
    %cst_31 = arith.constant dense<0.000000e+00> : vector<28x84xf32>
    %28 = tpu.matmul %21, %27, %cst_31 {dimension_numbers = #tpu.dot_dimension_numbers<[1], [0], [0], [1], [0, 0, 1, 1], [], []>} : vector<28x96xf32>, vector<96x84xf32>, vector<28x84xf32> -> vector<28x84xf32>
    %29 = arith.addf %19, %28 : vector<28x84xf32>
    %c0_32 = arith.constant 0 : index
    %c3 = arith.constant 3 : index
    %c0_33 = arith.constant 0 : index
    %30 = vector.load %arg1[%c0_32, %c3, %c0_33] : memref<1x32x96xf32, #tpu.memory_space<vmem>>, vector<1x28x96xf32>
    %31 = vector.shape_cast %30 : vector<1x28x96xf32> to vector<28x96xf32>
    %c3_34 = arith.constant 3 : index
    %c0_35 = arith.constant 0 : index
    %c0_36 = arith.constant 0 : index
    %32 = vector.load %arg2[%c3_34, %c0_35, %c0_36] : memref<5x96x84xf32, #tpu.memory_space<vmem>>, vector<1x96x84xf32>
    %33 = vector.shape_cast %32 : vector<1x96x84xf32> to vector<96x84xf32>
    %cst_37 = arith.constant dense<0.000000e+00> : vector<28x84xf32>
    %34 = tpu.matmul %31, %33, %cst_37 {dimension_numbers = #tpu.dot_dimension_numbers<[1], [0], [0], [1], [0, 0, 1, 1], [], []>} : vector<28x96xf32>, vector<96x84xf32>, vector<28x84xf32> -> vector<28x84xf32>
    %35 = arith.addf %25, %34 : vector<28x84xf32>
    %c3_38 = arith.constant 3 : index
    %c0_39 = arith.constant 0 : index
    %c0_40 = arith.constant 0 : index
    %36 = vector.load %arg3[%c3_38, %c0_39, %c0_40] : memref<5x96x84xf32, #tpu.memory_space<vmem>>, vector<1x96x84xf32>
    %37 = vector.shape_cast %36 : vector<1x96x84xf32> to vector<96x84xf32>
    %cst_41 = arith.constant dense<0.000000e+00> : vector<28x84xf32>
    %38 = tpu.matmul %31, %37, %cst_41 {dimension_numbers = #tpu.dot_dimension_numbers<[1], [0], [0], [1], [0, 0, 1, 1], [], []>} : vector<28x96xf32>, vector<96x84xf32>, vector<28x84xf32> -> vector<28x84xf32>
    %39 = arith.addf %29, %38 : vector<28x84xf32>
    %c0_42 = arith.constant 0 : index
    %c4 = arith.constant 4 : index
    %c0_43 = arith.constant 0 : index
    %40 = vector.load %arg1[%c0_42, %c4, %c0_43] : memref<1x32x96xf32, #tpu.memory_space<vmem>>, vector<1x28x96xf32>
    %41 = vector.shape_cast %40 : vector<1x28x96xf32> to vector<28x96xf32>
    %c4_44 = arith.constant 4 : index
    %c0_45 = arith.constant 0 : index
    %c0_46 = arith.constant 0 : index
    %42 = vector.load %arg2[%c4_44, %c0_45, %c0_46] : memref<5x96x84xf32, #tpu.memory_space<vmem>>, vector<1x96x84xf32>
    %43 = vector.shape_cast %42 : vector<1x96x84xf32> to vector<96x84xf32>
    %cst_47 = arith.constant dense<0.000000e+00> : vector<28x84xf32>
    %44 = tpu.matmul %41, %43, %cst_47 {dimension_numbers = #tpu.dot_dimension_numbers<[1], [0], [0], [1], [0, 0, 1, 1], [], []>} : vector<28x96xf32>, vector<96x84xf32>, vector<28x84xf32> -> vector<28x84xf32>
    %45 = arith.addf %35, %44 : vector<28x84xf32>
    %c4_48 = arith.constant 4 : index
    %c0_49 = arith.constant 0 : index
    %c0_50 = arith.constant 0 : index
    %46 = vector.load %arg3[%c4_48, %c0_49, %c0_50] : memref<5x96x84xf32, #tpu.memory_space<vmem>>, vector<1x96x84xf32>
    %47 = vector.shape_cast %46 : vector<1x96x84xf32> to vector<96x84xf32>
    %cst_51 = arith.constant dense<0.000000e+00> : vector<28x84xf32>
    %48 = tpu.matmul %41, %47, %cst_51 {dimension_numbers = #tpu.dot_dimension_numbers<[1], [0], [0], [1], [0, 0, 1, 1], [], []>} : vector<28x96xf32>, vector<96x84xf32>, vector<28x84xf32> -> vector<28x84xf32>
    %49 = arith.addf %39, %48 : vector<28x84xf32>
    %c0_52 = arith.constant 0 : index
    %c0_53 = arith.constant 0 : index
    %50 = vector.load %arg4[%c0_52, %c0_53] : memref<1x84xf32, #tpu.memory_space<vmem>>, vector<1x84xf32>
    %51 = vector.broadcast %50 : vector<1x84xf32> to vector<28x84xf32>
    %52 = arith.addf %45, %51 : vector<28x84xf32>
    %cst_54 = arith.constant 0.000000e+00 : f32
    %53 = vector.broadcast %cst_54 : f32 to vector<28x84xf32>
    %54 = arith.maximumf %52, %53 : vector<28x84xf32>
    %55 = vector.broadcast %50 : vector<1x84xf32> to vector<28x84xf32>
    %56 = arith.addf %49, %55 : vector<28x84xf32>
    %cst_55 = arith.constant 0.000000e+00 : f32
    %57 = vector.broadcast %cst_55 : f32 to vector<28x84xf32>
    %58 = arith.maximumf %56, %57 : vector<28x84xf32>
    %59 = arith.maximumf %54, %58 : vector<28x84xf32>
    %60 = vector.shape_cast %59 : vector<28x84xf32> to vector<14x2x84xf32>
    %61 = vector.extract_strided_slice %60 {offsets = [0, 0, 0], sizes = [14, 1, 84], strides = [1, 1, 1]} : vector<14x2x84xf32> to vector<14x1x84xf32>
    %62 = vector.shape_cast %61 : vector<14x1x84xf32> to vector<14x84xf32>
    %63 = vector.extract_strided_slice %60 {offsets = [0, 1, 0], sizes = [14, 1, 84], strides = [1, 1, 1]} : vector<14x2x84xf32> to vector<14x1x84xf32>
    %64 = vector.shape_cast %63 : vector<14x1x84xf32> to vector<14x84xf32>
    %65 = arith.maximumf %62, %64 : vector<14x84xf32>
    %66 = vector.extract_strided_slice %65 {offsets = [0, 0], sizes = [10, 84], strides = [1, 1]} : vector<14x84xf32> to vector<10x84xf32>
    %c0_56 = arith.constant 0 : index
    %c0_57 = arith.constant 0 : index
    %c0_58 = arith.constant 0 : index
    %67 = vector.load %arg5[%c0_56, %c0_57, %c0_58] : memref<5x84x80xf32, #tpu.memory_space<vmem>>, vector<1x84x80xf32>
    %68 = vector.shape_cast %67 : vector<1x84x80xf32> to vector<84x80xf32>
    %cst_59 = arith.constant dense<0.000000e+00> : vector<10x80xf32>
    %69 = tpu.matmul %66, %68, %cst_59 {dimension_numbers = #tpu.dot_dimension_numbers<[1], [0], [0], [1], [0, 0, 1, 1], [], []>} : vector<10x84xf32>, vector<84x80xf32>, vector<10x80xf32> -> vector<10x80xf32>
    %70 = vector.extract_strided_slice %65 {offsets = [0, 0], sizes = [10, 84], strides = [1, 1]} : vector<14x84xf32> to vector<10x84xf32>
    %c0_60 = arith.constant 0 : index
    %c0_61 = arith.constant 0 : index
    %c0_62 = arith.constant 0 : index
    %71 = vector.load %arg6[%c0_60, %c0_61, %c0_62] : memref<5x84x80xf32, #tpu.memory_space<vmem>>, vector<1x84x80xf32>
    %72 = vector.shape_cast %71 : vector<1x84x80xf32> to vector<84x80xf32>
    %cst_63 = arith.constant dense<0.000000e+00> : vector<10x80xf32>
    %73 = tpu.matmul %70, %72, %cst_63 {dimension_numbers = #tpu.dot_dimension_numbers<[1], [0], [0], [1], [0, 0, 1, 1], [], []>} : vector<10x84xf32>, vector<84x80xf32>, vector<10x80xf32> -> vector<10x80xf32>
    %74 = vector.extract_strided_slice %65 {offsets = [1, 0], sizes = [10, 84], strides = [1, 1]} : vector<14x84xf32> to vector<10x84xf32>
    %c1_64 = arith.constant 1 : index
    %c0_65 = arith.constant 0 : index
    %c0_66 = arith.constant 0 : index
    %75 = vector.load %arg5[%c1_64, %c0_65, %c0_66] : memref<5x84x80xf32, #tpu.memory_space<vmem>>, vector<1x84x80xf32>
    %76 = vector.shape_cast %75 : vector<1x84x80xf32> to vector<84x80xf32>
    %cst_67 = arith.constant dense<0.000000e+00> : vector<10x80xf32>
    %77 = tpu.matmul %74, %76, %cst_67 {dimension_numbers = #tpu.dot_dimension_numbers<[1], [0], [0], [1], [0, 0, 1, 1], [], []>} : vector<10x84xf32>, vector<84x80xf32>, vector<10x80xf32> -> vector<10x80xf32>
    %78 = arith.addf %69, %77 : vector<10x80xf32>
    %c1_68 = arith.constant 1 : index
    %c0_69 = arith.constant 0 : index
    %c0_70 = arith.constant 0 : index
    %79 = vector.load %arg6[%c1_68, %c0_69, %c0_70] : memref<5x84x80xf32, #tpu.memory_space<vmem>>, vector<1x84x80xf32>
    %80 = vector.shape_cast %79 : vector<1x84x80xf32> to vector<84x80xf32>
    %cst_71 = arith.constant dense<0.000000e+00> : vector<10x80xf32>
    %81 = tpu.matmul %74, %80, %cst_71 {dimension_numbers = #tpu.dot_dimension_numbers<[1], [0], [0], [1], [0, 0, 1, 1], [], []>} : vector<10x84xf32>, vector<84x80xf32>, vector<10x80xf32> -> vector<10x80xf32>
    %82 = arith.addf %73, %81 : vector<10x80xf32>
    %83 = vector.extract_strided_slice %65 {offsets = [2, 0], sizes = [10, 84], strides = [1, 1]} : vector<14x84xf32> to vector<10x84xf32>
    %c2_72 = arith.constant 2 : index
    %c0_73 = arith.constant 0 : index
    %c0_74 = arith.constant 0 : index
    %84 = vector.load %arg5[%c2_72, %c0_73, %c0_74] : memref<5x84x80xf32, #tpu.memory_space<vmem>>, vector<1x84x80xf32>
    %85 = vector.shape_cast %84 : vector<1x84x80xf32> to vector<84x80xf32>
    %cst_75 = arith.constant dense<0.000000e+00> : vector<10x80xf32>
    %86 = tpu.matmul %83, %85, %cst_75 {dimension_numbers = #tpu.dot_dimension_numbers<[1], [0], [0], [1], [0, 0, 1, 1], [], []>} : vector<10x84xf32>, vector<84x80xf32>, vector<10x80xf32> -> vector<10x80xf32>
    %87 = arith.addf %78, %86 : vector<10x80xf32>
    %c2_76 = arith.constant 2 : index
    %c0_77 = arith.constant 0 : index
    %c0_78 = arith.constant 0 : index
    %88 = vector.load %arg6[%c2_76, %c0_77, %c0_78] : memref<5x84x80xf32, #tpu.memory_space<vmem>>, vector<1x84x80xf32>
    %89 = vector.shape_cast %88 : vector<1x84x80xf32> to vector<84x80xf32>
    %cst_79 = arith.constant dense<0.000000e+00> : vector<10x80xf32>
    %90 = tpu.matmul %83, %89, %cst_79 {dimension_numbers = #tpu.dot_dimension_numbers<[1], [0], [0], [1], [0, 0, 1, 1], [], []>} : vector<10x84xf32>, vector<84x80xf32>, vector<10x80xf32> -> vector<10x80xf32>
    %91 = arith.addf %82, %90 : vector<10x80xf32>
    %92 = vector.extract_strided_slice %65 {offsets = [3, 0], sizes = [10, 84], strides = [1, 1]} : vector<14x84xf32> to vector<10x84xf32>
    %c3_80 = arith.constant 3 : index
    %c0_81 = arith.constant 0 : index
    %c0_82 = arith.constant 0 : index
    %93 = vector.load %arg5[%c3_80, %c0_81, %c0_82] : memref<5x84x80xf32, #tpu.memory_space<vmem>>, vector<1x84x80xf32>
    %94 = vector.shape_cast %93 : vector<1x84x80xf32> to vector<84x80xf32>
    %cst_83 = arith.constant dense<0.000000e+00> : vector<10x80xf32>
    %95 = tpu.matmul %92, %94, %cst_83 {dimension_numbers = #tpu.dot_dimension_numbers<[1], [0], [0], [1], [0, 0, 1, 1], [], []>} : vector<10x84xf32>, vector<84x80xf32>, vector<10x80xf32> -> vector<10x80xf32>
    %96 = arith.addf %87, %95 : vector<10x80xf32>
    %c3_84 = arith.constant 3 : index
    %c0_85 = arith.constant 0 : index
    %c0_86 = arith.constant 0 : index
    %97 = vector.load %arg6[%c3_84, %c0_85, %c0_86] : memref<5x84x80xf32, #tpu.memory_space<vmem>>, vector<1x84x80xf32>
    %98 = vector.shape_cast %97 : vector<1x84x80xf32> to vector<84x80xf32>
    %cst_87 = arith.constant dense<0.000000e+00> : vector<10x80xf32>
    %99 = tpu.matmul %92, %98, %cst_87 {dimension_numbers = #tpu.dot_dimension_numbers<[1], [0], [0], [1], [0, 0, 1, 1], [], []>} : vector<10x84xf32>, vector<84x80xf32>, vector<10x80xf32> -> vector<10x80xf32>
    %100 = arith.addf %91, %99 : vector<10x80xf32>
    %101 = vector.extract_strided_slice %65 {offsets = [4, 0], sizes = [10, 84], strides = [1, 1]} : vector<14x84xf32> to vector<10x84xf32>
    %c4_88 = arith.constant 4 : index
    %c0_89 = arith.constant 0 : index
    %c0_90 = arith.constant 0 : index
    %102 = vector.load %arg5[%c4_88, %c0_89, %c0_90] : memref<5x84x80xf32, #tpu.memory_space<vmem>>, vector<1x84x80xf32>
    %103 = vector.shape_cast %102 : vector<1x84x80xf32> to vector<84x80xf32>
    %cst_91 = arith.constant dense<0.000000e+00> : vector<10x80xf32>
    %104 = tpu.matmul %101, %103, %cst_91 {dimension_numbers = #tpu.dot_dimension_numbers<[1], [0], [0], [1], [0, 0, 1, 1], [], []>} : vector<10x84xf32>, vector<84x80xf32>, vector<10x80xf32> -> vector<10x80xf32>
    %105 = arith.addf %96, %104 : vector<10x80xf32>
    %c4_92 = arith.constant 4 : index
    %c0_93 = arith.constant 0 : index
    %c0_94 = arith.constant 0 : index
    %106 = vector.load %arg6[%c4_92, %c0_93, %c0_94] : memref<5x84x80xf32, #tpu.memory_space<vmem>>, vector<1x84x80xf32>
    %107 = vector.shape_cast %106 : vector<1x84x80xf32> to vector<84x80xf32>
    %cst_95 = arith.constant dense<0.000000e+00> : vector<10x80xf32>
    %108 = tpu.matmul %101, %107, %cst_95 {dimension_numbers = #tpu.dot_dimension_numbers<[1], [0], [0], [1], [0, 0, 1, 1], [], []>} : vector<10x84xf32>, vector<84x80xf32>, vector<10x80xf32> -> vector<10x80xf32>
    %109 = arith.addf %100, %108 : vector<10x80xf32>
    %c0_96 = arith.constant 0 : index
    %c0_97 = arith.constant 0 : index
    %110 = vector.load %arg7[%c0_96, %c0_97] : memref<1x80xf32, #tpu.memory_space<vmem>>, vector<1x80xf32>
    %111 = vector.broadcast %110 : vector<1x80xf32> to vector<10x80xf32>
    %112 = arith.addf %105, %111 : vector<10x80xf32>
    %cst_98 = arith.constant 0.000000e+00 : f32
    %113 = vector.broadcast %cst_98 : f32 to vector<10x80xf32>
    %114 = arith.maximumf %112, %113 : vector<10x80xf32>
    %115 = vector.broadcast %110 : vector<1x80xf32> to vector<10x80xf32>
    %116 = arith.addf %109, %115 : vector<10x80xf32>
    %cst_99 = arith.constant 0.000000e+00 : f32
    %117 = vector.broadcast %cst_99 : f32 to vector<10x80xf32>
    %118 = arith.maximumf %116, %117 : vector<10x80xf32>
    %119 = arith.maximumf %114, %118 : vector<10x80xf32>
    %120 = vector.shape_cast %119 : vector<10x80xf32> to vector<5x2x80xf32>
    %121 = vector.extract_strided_slice %120 {offsets = [0, 0, 0], sizes = [5, 1, 80], strides = [1, 1, 1]} : vector<5x2x80xf32> to vector<5x1x80xf32>
    %122 = vector.shape_cast %121 : vector<5x1x80xf32> to vector<5x80xf32>
    %123 = vector.extract_strided_slice %120 {offsets = [0, 1, 0], sizes = [5, 1, 80], strides = [1, 1, 1]} : vector<5x2x80xf32> to vector<5x1x80xf32>
    %124 = vector.shape_cast %123 : vector<5x1x80xf32> to vector<5x80xf32>
    %125 = arith.maximumf %122, %124 : vector<5x80xf32>
    %126 = vector.extract_strided_slice %125 {offsets = [0, 0], sizes = [1, 80], strides = [1, 1]} : vector<5x80xf32> to vector<1x80xf32>
    %c0_100 = arith.constant 0 : index
    %c0_101 = arith.constant 0 : index
    %c0_102 = arith.constant 0 : index
    %127 = vector.load %arg8[%c0_100, %c0_101, %c0_102] : memref<5x80x120xf32, #tpu.memory_space<vmem>>, vector<1x80x120xf32>
    %128 = vector.shape_cast %127 : vector<1x80x120xf32> to vector<80x120xf32>
    %cst_103 = arith.constant dense<0.000000e+00> : vector<1x120xf32>
    %129 = tpu.matmul %126, %128, %cst_103 {dimension_numbers = #tpu.dot_dimension_numbers<[1], [0], [0], [1], [0, 0, 1, 1], [], []>} : vector<1x80xf32>, vector<80x120xf32>, vector<1x120xf32> -> vector<1x120xf32>
    %130 = vector.extract_strided_slice %125 {offsets = [1, 0], sizes = [1, 80], strides = [1, 1]} : vector<5x80xf32> to vector<1x80xf32>
    %c1_104 = arith.constant 1 : index
    %c0_105 = arith.constant 0 : index
    %c0_106 = arith.constant 0 : index
    %131 = vector.load %arg8[%c1_104, %c0_105, %c0_106] : memref<5x80x120xf32, #tpu.memory_space<vmem>>, vector<1x80x120xf32>
    %132 = vector.shape_cast %131 : vector<1x80x120xf32> to vector<80x120xf32>
    %cst_107 = arith.constant dense<0.000000e+00> : vector<1x120xf32>
    %133 = tpu.matmul %130, %132, %cst_107 {dimension_numbers = #tpu.dot_dimension_numbers<[1], [0], [0], [1], [0, 0, 1, 1], [], []>} : vector<1x80xf32>, vector<80x120xf32>, vector<1x120xf32> -> vector<1x120xf32>
    %134 = arith.addf %129, %133 : vector<1x120xf32>
    %135 = vector.extract_strided_slice %125 {offsets = [2, 0], sizes = [1, 80], strides = [1, 1]} : vector<5x80xf32> to vector<1x80xf32>
    %c2_108 = arith.constant 2 : index
    %c0_109 = arith.constant 0 : index
    %c0_110 = arith.constant 0 : index
    %136 = vector.load %arg8[%c2_108, %c0_109, %c0_110] : memref<5x80x120xf32, #tpu.memory_space<vmem>>, vector<1x80x120xf32>
    %137 = vector.shape_cast %136 : vector<1x80x120xf32> to vector<80x120xf32>
    %cst_111 = arith.constant dense<0.000000e+00> : vector<1x120xf32>
    %138 = tpu.matmul %135, %137, %cst_111 {dimension_numbers = #tpu.dot_dimension_numbers<[1], [0], [0], [1], [0, 0, 1, 1], [], []>} : vector<1x80xf32>, vector<80x120xf32>, vector<1x120xf32> -> vector<1x120xf32>
    %139 = arith.addf %134, %138 : vector<1x120xf32>
    %140 = vector.extract_strided_slice %125 {offsets = [3, 0], sizes = [1, 80], strides = [1, 1]} : vector<5x80xf32> to vector<1x80xf32>
    %c3_112 = arith.constant 3 : index
    %c0_113 = arith.constant 0 : index
    %c0_114 = arith.constant 0 : index
    %141 = vector.load %arg8[%c3_112, %c0_113, %c0_114] : memref<5x80x120xf32, #tpu.memory_space<vmem>>, vector<1x80x120xf32>
    %142 = vector.shape_cast %141 : vector<1x80x120xf32> to vector<80x120xf32>
    %cst_115 = arith.constant dense<0.000000e+00> : vector<1x120xf32>
    %143 = tpu.matmul %140, %142, %cst_115 {dimension_numbers = #tpu.dot_dimension_numbers<[1], [0], [0], [1], [0, 0, 1, 1], [], []>} : vector<1x80xf32>, vector<80x120xf32>, vector<1x120xf32> -> vector<1x120xf32>
    %144 = arith.addf %139, %143 : vector<1x120xf32>
    %145 = vector.extract_strided_slice %125 {offsets = [4, 0], sizes = [1, 80], strides = [1, 1]} : vector<5x80xf32> to vector<1x80xf32>
    %c4_116 = arith.constant 4 : index
    %c0_117 = arith.constant 0 : index
    %c0_118 = arith.constant 0 : index
    %146 = vector.load %arg8[%c4_116, %c0_117, %c0_118] : memref<5x80x120xf32, #tpu.memory_space<vmem>>, vector<1x80x120xf32>
    %147 = vector.shape_cast %146 : vector<1x80x120xf32> to vector<80x120xf32>
    %cst_119 = arith.constant dense<0.000000e+00> : vector<1x120xf32>
    %148 = tpu.matmul %145, %147, %cst_119 {dimension_numbers = #tpu.dot_dimension_numbers<[1], [0], [0], [1], [0, 0, 1, 1], [], []>} : vector<1x80xf32>, vector<80x120xf32>, vector<1x120xf32> -> vector<1x120xf32>
    %149 = arith.addf %144, %148 : vector<1x120xf32>
    %c0_120 = arith.constant 0 : index
    %c0_121 = arith.constant 0 : index
    %150 = vector.load %arg9[%c0_120, %c0_121] : memref<1x120xf32, #tpu.memory_space<vmem>>, vector<1x120xf32>
    %151 = arith.addf %149, %150 : vector<1x120xf32>
    %cst_122 = arith.constant 0.000000e+00 : f32
    %152 = vector.broadcast %cst_122 : f32 to vector<1x120xf32>
    %153 = arith.maximumf %151, %152 : vector<1x120xf32>
    %c0_123 = arith.constant 0 : index
    %c0_124 = arith.constant 0 : index
    %154 = vector.load %arg10[%c0_123, %c0_124] : memref<120x84xf32, #tpu.memory_space<vmem>>, vector<120x84xf32>
    %cst_125 = arith.constant dense<0.000000e+00> : vector<1x84xf32>
    %155 = tpu.matmul %153, %154, %cst_125 {dimension_numbers = #tpu.dot_dimension_numbers<[1], [0], [0], [1], [0, 0, 1, 1], [], []>} : vector<1x120xf32>, vector<120x84xf32>, vector<1x84xf32> -> vector<1x84xf32>
    %c0_126 = arith.constant 0 : index
    %c0_127 = arith.constant 0 : index
    %156 = vector.load %arg11[%c0_126, %c0_127] : memref<1x84xf32, #tpu.memory_space<vmem>>, vector<1x84xf32>
    %157 = arith.addf %155, %156 : vector<1x84xf32>
    %cst_128 = arith.constant 0.000000e+00 : f32
    %158 = vector.broadcast %cst_128 : f32 to vector<1x84xf32>
    %159 = arith.maximumf %157, %158 : vector<1x84xf32>
    %c0_129 = arith.constant 0 : index
    %c0_130 = arith.constant 0 : index
    %160 = vector.load %arg12[%c0_129, %c0_130] : memref<84x10xf32, #tpu.memory_space<vmem>>, vector<84x10xf32>
    %cst_131 = arith.constant dense<0.000000e+00> : vector<1x10xf32>
    %161 = tpu.matmul %159, %160, %cst_131 {dimension_numbers = #tpu.dot_dimension_numbers<[1], [0], [0], [1], [0, 0, 1, 1], [], []>} : vector<1x84xf32>, vector<84x10xf32>, vector<1x10xf32> -> vector<1x10xf32>
    %c0_132 = arith.constant 0 : index
    %c0_133 = arith.constant 0 : index
    %162 = vector.load %arg13[%c0_132, %c0_133] : memref<1x10xf32, #tpu.memory_space<vmem>>, vector<1x10xf32>
    %163 = arith.addf %161, %162 : vector<1x10xf32>
    %164 = vector.shape_cast %163 : vector<1x10xf32> to vector<1x1x10xf32>
    %c0_134 = arith.constant 0 : index
    %c0_135 = arith.constant 0 : index
    %c0_136 = arith.constant 0 : index
    %165 = vector.load %arg14[%c0_134, %c0_135, %c0_136] : memref<1x1x10xf32, #tpu.memory_space<vmem>>, vector<1x1x10xf32>
    tpu.vector_store %arg14[%c0_134, %c0_135, %c0_136], %164 {strides = array<i32>} : memref<1x1x10xf32, #tpu.memory_space<vmem>>, vector<1x1x10xf32>,
    return
  }
  func.func @transform_0(%arg0: i32) -> (i32, i32, i32) {
    %c0_i32 = arith.constant 0 : i32
    %c0_i32_0 = arith.constant 0 : i32
    %c0_i32_1 = arith.constant 0 : i32
    return %arg0, %c0_i32, %c0_i32_0 : i32, i32, i32
  }
  func.func @transform_1(%arg0: i32) -> (i32, i32, i32) {
    %c0_i32 = arith.constant 0 : i32
    %c0_i32_0 = arith.constant 0 : i32
    %c0_i32_1 = arith.constant 0 : i32
    %c0_i32_2 = arith.constant 0 : i32
    return %c0_i32, %c0_i32_0, %c0_i32_1 : i32, i32, i32
  }
  func.func @transform_2(%arg0: i32) -> (i32, i32, i32) {
    %c0_i32 = arith.constant 0 : i32
    %c0_i32_0 = arith.constant 0 : i32
    %c0_i32_1 = arith.constant 0 : i32
    %c0_i32_2 = arith.constant 0 : i32
    return %c0_i32, %c0_i32_0, %c0_i32_1 : i32, i32, i32
  }
  func.func @transform_3(%arg0: i32) -> (i32, i32) {
    %c0_i32 = arith.constant 0 : i32
    %c0_i32_0 = arith.constant 0 : i32
    %c0_i32_1 = arith.constant 0 : i32
    return %c0_i32, %c0_i32_0 : i32, i32
  }
  func.func @transform_4(%arg0: i32) -> (i32, i32, i32) {
    %c0_i32 = arith.constant 0 : i32
    %c0_i32_0 = arith.constant 0 : i32
    %c0_i32_1 = arith.constant 0 : i32
    %c0_i32_2 = arith.constant 0 : i32
    return %c0_i32, %c0_i32_0, %c0_i32_1 : i32, i32, i32
  }
  func.func @transform_5(%arg0: i32) -> (i32, i32, i32) {
    %c0_i32 = arith.constant 0 : i32
    %c0_i32_0 = arith.constant 0 : i32
    %c0_i32_1 = arith.constant 0 : i32
    %c0_i32_2 = arith.constant 0 : i32
    return %c0_i32, %c0_i32_0, %c0_i32_1 : i32, i32, i32
  }
  func.func @transform_6(%arg0: i32) -> (i32, i32) {
    %c0_i32 = arith.constant 0 : i32
    %c0_i32_0 = arith.constant 0 : i32
    %c0_i32_1 = arith.constant 0 : i32
    return %c0_i32, %c0_i32_0 : i32, i32
  }
  func.func @transform_7(%arg0: i32) -> (i32, i32, i32) {
    %c0_i32 = arith.constant 0 : i32
    %c0_i32_0 = arith.constant 0 : i32
    %c0_i32_1 = arith.constant 0 : i32
    %c0_i32_2 = arith.constant 0 : i32
    return %c0_i32, %c0_i32_0, %c0_i32_1 : i32, i32, i32
  }
  func.func @transform_8(%arg0: i32) -> (i32, i32) {
    %c0_i32 = arith.constant 0 : i32
    %c0_i32_0 = arith.constant 0 : i32
    %c0_i32_1 = arith.constant 0 : i32
    return %c0_i32, %c0_i32_0 : i32, i32
  }
  func.func @transform_9(%arg0: i32) -> (i32, i32) {
    %c0_i32 = arith.constant 0 : i32
    %c0_i32_0 = arith.constant 0 : i32
    %c0_i32_1 = arith.constant 0 : i32
    return %c0_i32, %c0_i32_0 : i32, i32
  }
  func.func @transform_10(%arg0: i32) -> (i32, i32) {
    %c0_i32 = arith.constant 0 : i32
    %c0_i32_0 = arith.constant 0 : i32
    %c0_i32_1 = arith.constant 0 : i32
    return %c0_i32, %c0_i32_0 : i32, i32
  }
  func.func @transform_11(%arg0: i32) -> (i32, i32) {
    %c0_i32 = arith.constant 0 : i32
    %c0_i32_0 = arith.constant 0 : i32
    %c0_i32_1 = arith.constant 0 : i32
    return %c0_i32, %c0_i32_0 : i32, i32
  }
  func.func @transform_12(%arg0: i32) -> (i32, i32) {
    %c0_i32 = arith.constant 0 : i32
    %c0_i32_0 = arith.constant 0 : i32
    %c0_i32_1 = arith.constant 0 : i32
    return %c0_i32, %c0_i32_0 : i32, i32
  }
  func.func @transform_13(%arg0: i32) -> (i32, i32, i32) {
    %c0_i32 = arith.constant 0 : i32
    %c0_i32_0 = arith.constant 0 : i32
    %c0_i32_1 = arith.constant 0 : i32
    return %arg0, %c0_i32, %c0_i32_0 : i32, i32, i32
  }
}

</mosaic_0001>

<llo_original>
// kernel: tile.13
$region0: #{tile.13}
  #allocation0 [shape = 's32[1]{0}', space=sflag, size = 0x4, scoped, tag = 'scoped memory for tile.13']
  %s0 = inlined_call_operand.vmem [shape: f32[6], index: 0, kind: input, shape index: {}]
  %s1 = inlined_call_operand.vmem [shape: f32[14,6], index: 1, kind: output, shape index: {}]
  // Predicated region
  $region2: #{tile.13} parent=0 // pred_check
    _
  $region3: #{tile.13} parent=0 // pred_check_branch
    %3 = sbr.rel (0) target = $region5
  $region4: #{tile.13} parent=0 // pred_region
    _
  $region5: #{tile.13} parent=0 // pred_fallthru
    _
  %v4 = vld [vmem:[%s0] ss:$0 sm:$0xff]
  %5 = vst [vmem:[%s1] sm:$0xff] %v4
  %s6 = scalar_lea.vmem %s1, 8
  %7 = vst [vmem:[%s6] sm:$0xff] %v4

// kernel: tile.14
$region0: #{tile.14}
  %s0 = inlined_call_operand.vmem [shape: f32[14,6], index: 0, kind: input, shape index: {}]
  %s1 = inlined_call_operand.vmem [shape: f32[1,84], index: 1, kind: output, shape index: {}]
  $region1: #{tile.14} parent=0
    #allocation0 [shape = 'u8[4096]{0}', space=vmem, size = 0x1000, scoped, tag = 'scoped mem for output reshape']
    %v2 = vld [vmem:[%s0] sm:$0x1]
    %vm3 = vcmask 48128
    %4 = vst.msk [vmem:[#allocation0] sm:$0x1] %vm3, %v2
    %s5 = scalar_lea.vmem %s0, 13
    %v6 = vld [vmem:[%s5] sm:$0x1]
    %7 = vrot.lane.b32.xlu0 %v6, 78
    %v8 = vpop.permute.xlu0 %7
    %vm9 = vcmask 687728
    %10 = vst.msk [vmem:[#allocation0] sm:$0x1] %vm9, %v8
    %s11 = scalar_lea.vmem %s0, 12
    %v12 = vld [vmem:[%s11] sm:$0x1]
    %13 = vrot.lane.b32.xlu0 %v12, 72
    %v14 = vpop.permute.xlu0 %13
    %vm15 = vcmask 638528
    %16 = vst.msk [vmem:[#allocation0] sm:$0x1] %vm15, %v14
    %s17 = scalar_lea.vmem %s0, 11
    %v18 = vld [vmem:[%s17] sm:$0x1]
    %19 = vrot.lane.b32.xlu0 %v18, 66
    %v20 = vpop.permute.xlu0 %19
    %vm21 = vcmask 589328
    %22 = vst.msk [vmem:[#allocation0] sm:$0x1] %vm21, %v20
    %s23 = scalar_lea.vmem %s0, 10
    %v24 = vld [vmem:[%s23] sm:$0x1]
    %25 = vrot.lane.b32.xlu0 %v24, 60
    %v26 = vpop.permute.xlu0 %25
    %vm27 = vcmask 540128
    %28 = vst.msk [vmem:[#allocation0] sm:$0x1] %vm27, %v26
    %s29 = scalar_lea.vmem %s0, 9
    %v30 = vld [vmem:[%s29] sm:$0x1]
    %31 = vrot.lane.b32.xlu0 %v30, 54
    %v32 = vpop.permute.xlu0 %31
    %vm33 = vcmask 490928
    %34 = vst.msk [vmem:[#allocation0] sm:$0x1] %vm33, %v32
    %s35 = scalar_lea.vmem %s0, 8
    %v36 = vld [vmem:[%s35] sm:$0x1]
    %37 = vrot.lane.b32.xlu0 %v36, 48
    %v38 = vpop.permute.xlu0 %37
    %vm39 = vcmask 441728
    %40 = vst.msk [vmem:[#allocation0] sm:$0x1] %vm39, %v38
    %s41 = scalar_lea.vmem %s0, 7
    %v42 = vld [vmem:[%s41] sm:$0x1]
    %43 = vrot.lane.b32.xlu0 %v42, 42
    %v44 = vpop.permute.xlu0 %43
    %vm45 = vcmask 392528
    %46 = vst.msk [vmem:[#allocation0] sm:$0x1] %vm45, %v44
    %s47 = scalar_lea.vmem %s0, 6
    %v48 = vld [vmem:[%s47] sm:$0x1]
    %49 = vrot.lane.b32.xlu0 %v48, 36
    %v50 = vpop.permute.xlu0 %49
    %vm51 = vcmask 343328
    %52 = vst.msk [vmem:[#allocation0] sm:$0x1] %vm51, %v50
    %s53 = scalar_lea.vmem %s0, 5
    %v54 = vld [vmem:[%s53] sm:$0x1]
    %55 = vrot.lane.b32.xlu0 %v54, 30
    %v56 = vpop.permute.xlu0 %55
    %vm57 = vcmask 294128
    %58 = vst.msk [vmem:[#allocation0] sm:$0x1] %vm57, %v56
    %s59 = scalar_lea.vmem %s0, 4
    %v60 = vld [vmem:[%s59] sm:$0x1]
    %61 = vrot.lane.b32.xlu0 %v60, 24
    %v62 = vpop.permute.xlu0 %61
    %vm63 = vcmask 244928
    %64 = vst.msk [vmem:[#allocation0] sm:$0x1] %vm63, %v62
    %s65 = scalar_lea.vmem %s0, 3
    %v66 = vld [vmem:[%s65] sm:$0x1]
    %67 = vrot.lane.b32.xlu0 %v66, 18
    %v68 = vpop.permute.xlu0 %67
    %vm69 = vcmask 195728
    %70 = vst.msk [vmem:[#allocation0] sm:$0x1] %vm69, %v68
    %s71 = scalar_lea.vmem %s0, 2
    %v72 = vld [vmem:[%s71] sm:$0x1]
    %73 = vrot.lane.b32.xlu0 %v72, 12
    %v74 = vpop.permute.xlu0 %73
    %vm75 = vcmask 146528
    %76 = vst.msk [vmem:[#allocation0] sm:$0x1] %vm75, %v74
    %s77 = scalar_lea.vmem %s0, 1
    %v78 = vld [vmem:[%s77] sm:$0x1]
    %79 = vrot.lane.b32.xlu0 %v78, 6
    %v80 = vpop.permute.xlu0 %79
    %vm81 = vcmask 97328
    %82 = vst.msk [vmem:[#allocation0] sm:$0x1] %vm81, %v80
    %s84 = sshllo.u32 0, 1
    %v86 = vld [vmem:[#allocation0] sm:%s84]
    %s87 = sshllo.u32 0, 1
    %88 = vst [vmem:[%s1] sm:%s87] %v86

// kernel: tile.18
$region0: #{tile.18}
  #allocation0 [shape = 's32[1]{0}', space=sflag, size = 0x4, scoped, tag = 'scoped memory for tile.18']
  %s0 = inlined_call_operand.vmem [shape: f32[16], index: 0, kind: input, shape index: {}]
  %s1 = inlined_call_operand.vmem [shape: f32[5,16], index: 1, kind: output, shape index: {}]
  // Predicated region
  $region2: #{tile.18} parent=0 // pred_check
    _
  $region3: #{tile.18} parent=0 // pred_check_branch
    %3 = sbr.rel (0) target = $region5
  $region4: #{tile.18} parent=0 // pred_region
    _
  $region5: #{tile.18} parent=0 // pred_fallthru
    _
  %v4 = vld [vmem:[%s0] ss:$0 sm:$0xff]
  %5 = vst [vmem:[%s1] sm:$0xff] %v4

// kernel: tile.19
$region0: #{tile.19}
  %s0 = inlined_call_operand.vmem [shape: f32[5,16], index: 0, kind: input, shape index: {}]
  %s1 = inlined_call_operand.vmem [shape: f32[1,80], index: 1, kind: output, shape index: {}]
  $region1: #{tile.19} parent=0
    #allocation0 [shape = 'u8[4096]{0}', space=vmem, size = 0x1000, scoped, tag = 'scoped mem for output reshape']
    %v2 = vld [vmem:[%s0] sm:$0x1]
    %vm3 = vcmask 130048
    %4 = vst.msk [vmem:[#allocation0] sm:$0x1] %vm3, %v2
    %s5 = scalar_lea.vmem %s0, 4
    %v6 = vld [vmem:[%s5] sm:$0x1]
    %7 = vrot.lane.b32.xlu0 %v6, 64
    %v8 = vpop.permute.xlu0 %7
    %vm9 = vcmask 654848
    %10 = vst.msk [vmem:[#allocation0] sm:$0x1] %vm9, %v8
    %s11 = scalar_lea.vmem %s0, 3
    %v12 = vld [vmem:[%s11] sm:$0x1]
    %13 = vrot.lane.b32.xlu0 %v12, 48
    %v14 = vpop.permute.xlu0 %13
    %vm15 = vcmask 523648
    %16 = vst.msk [vmem:[#allocation0] sm:$0x1] %vm15, %v14
    %s17 = scalar_lea.vmem %s0, 2
    %v18 = vld [vmem:[%s17] sm:$0x1]
    %19 = vrot.lane.b32.xlu0 %v18, 32
    %v20 = vpop.permute.xlu0 %19
    %vm21 = vcmask 392448
    %22 = vst.msk [vmem:[#allocation0] sm:$0x1] %vm21, %v20
    %s23 = scalar_lea.vmem %s0, 1
    %v24 = vld [vmem:[%s23] sm:$0x1]
    %25 = vrot.lane.b32.xlu0 %v24, 16
    %v26 = vpop.permute.xlu0 %25
    %vm27 = vcmask 261248
    %28 = vst.msk [vmem:[#allocation0] sm:$0x1] %vm27, %v26
    %s30 = sshllo.u32 0, 1
    %v32 = vld [vmem:[#allocation0] sm:%s30]
    %s33 = sshllo.u32 0, 1
    %34 = vst [vmem:[%s1] sm:%s33] %v32

// kernel: net_forward.1
$region0: #{net_forward.1}
  #allocation0 [shape = 'u32[]', space=smem, size = 0x4, offset = 0x4, fixed_abs, tag = 'smem constant byte address 0x4 - core index']
  #allocation1 [shape = 'u32[144,128]{1,0:T(1,128)}', space=vmem, size = 0x12000, scoped, tag = 'internal scratch']
  %s0 = inlined_call_operand.vmem [shape: f32[2,32,96], index: 0, kind: input, shape index: {}]
  %s1 = inlined_call_operand.vmem [shape: f32[5,96,84], index: 1, kind: input, shape index: {}]
  %s2 = inlined_call_operand.vmem [shape: f32[5,96,84], index: 2, kind: input, shape index: {}]
  %s3 = inlined_call_operand.vmem [shape: f32[1,84], index: 3, kind: input, shape index: {}]
  %s4 = inlined_call_operand.vmem [shape: f32[5,84,80], index: 4, kind: input, shape index: {}]
  %s5 = inlined_call_operand.vmem [shape: f32[5,84,80], index: 5, kind: input, shape index: {}]
  %s6 = inlined_call_operand.vmem [shape: f32[1,80], index: 6, kind: input, shape index: {}]
  %s7 = inlined_call_operand.vmem [shape: f32[5,80,120], index: 7, kind: input, shape index: {}]
  %s8 = inlined_call_operand.vmem [shape: f32[1,120], index: 8, kind: input, shape index: {}]
  %s9 = inlined_call_operand.vmem [shape: f32[120,84], index: 9, kind: input, shape index: {}]
  %s10 = inlined_call_operand.vmem [shape: f32[1,84], index: 10, kind: input, shape index: {}]
  %s11 = inlined_call_operand.vmem [shape: f32[84,10], index: 11, kind: input, shape index: {}]
  %s12 = inlined_call_operand.vmem [shape: f32[1,10], index: 12, kind: input, shape index: {}]
  %s13 = inlined_call_operand.hbm [shape: f32[2,1,10], index: 13, kind: output, shape index: {}]
  %s14 = sld [smem:[#allocation0]]
  $region85: #{net_forward.1} parent=0
    _
  %s16 = ssub.s32 1, %s14
  %s17 = scalar_select 0, %s16, %s14
  $region1: #{net_forward.1} parent=0
    #allocation2 [shape = 'u8[1024]{0}', space=vmem, size = 0x400, scoped, tag = 'output window, operand 0']
    #allocation3 [shape = 's32[2]{0}', space=sflag, size = 0x8, scoped, tag = 'scoped memory for net_forward.1']
    %18 = vsyncpa [#allocation3], 0
    %s19 = scalar_lea.sflag [#allocation3], 1
    %20 = vsyncpa %s19, 0
    loop: start=0, step=1, limit=4
    $region2: #{net_forward.1} parent=1 // loop_pre_header
      _
    $region3: #{net_forward.1} parent=1 // loop_header
      %s22 = sphi 0, %s26
      %p23 = scmp.ge.s32.totalorder %s22, 4
      %s32 = sphi 0, %s34
      %s35 = sphi 0, %s32
      %s36 = sphi 0, %s35
      %s52 = sphi 0, %s36
      %s56 = sphi 0, %s56
      %s58 = sphi 0, %s56
      %s59 = sphi 0, %s58
      %s73 = sphi 0, %s59
      %s77 = sphi 0, %s77
      %s79 = sphi 0, %s77
      %s80 = sphi 0, %s79
      %s94 = sphi 0, %s80
      %s98 = sphi 0, %s98
      %s100 = sphi 0, %s98
      %s101 = sphi 0, %s100
      %s115 = sphi 0, %s101
      %s119 = sphi 0, %s119
      %s121 = sphi 0, %s119
      %s122 = sphi 0, %s121
      %s136 = sphi 0, %s122
      %s140 = sphi 0, %s140
      %s142 = sphi 0, %s140
      %s143 = sphi 0, %s142
      %s157 = sphi 0, %s143
      %s161 = sphi 0, %s161
      %s163 = sphi 0, %s161
      %s164 = sphi 0, %s163
      %s178 = sphi 0, %s164
      %s182 = sphi 0, %s182
      %s184 = sphi 0, %s182
      %s185 = sphi 0, %s184
      %s199 = sphi 0, %s185
      %s203 = sphi 0, %s203
      %s205 = sphi 0, %s203
      %s206 = sphi 0, %s205
      %s220 = sphi 0, %s206
      %s224 = sphi 0, %s224
      %s226 = sphi 0, %s224
      %s227 = sphi 0, %s226
      %s241 = sphi 0, %s227
      %s245 = sphi 0, %s245
      %s247 = sphi 0, %s245
      %s248 = sphi 0, %s247
      %s262 = sphi 0, %s248
      %s266 = sphi 0, %s266
      %s268 = sphi 0, %s266
      %s269 = sphi 0, %s268
      %s283 = sphi 0, %s269
      %s287 = sphi 0, %s287
      %s289 = sphi 0, %s287
      %s290 = sphi 0, %s289
      %s304 = sphi 0, %s290
      %s310 = sphi 0, %s312
      %s313 = sphi 0, %s310
      %s314 = sphi 0, %s313
      %s330 = sphi 0, %s314
    $region4: #{net_forward.1} parent=1 // loop_header_branch
      %25 = sbr.rel (%p23) target = $region8
    $region5: #{net_forward.1} parent=1 // loop_body
      %s27 = ssub.s32 %s22, 1
      %s28 = ssub.s32 %s22, 2
      %s29 = sadd.s32 %s22, 1
      %s30 = ssub.s32 %s22, %s29
      %p31 = scmp.eq.s32.totalorder %s30, 0
      %s33 = sadd.s32 %s32, 1
      %s34 = scalar_select %p31, %s32, %s33
      %p37 = pneg %p31
      %p38 = scmp.eq.s32.totalorder %s22, 1
      %p39 = por %p37, %p38
      %p40 = scmp.ne.s32.totalorder %s32, %s35
      %p41 = scmp.eq.s32.totalorder %s22, 0
      %p42 = por %p40, %p41
      %p43 = scmp.ne.s32.totalorder %s32, %s35
      %p44 = scmp.eq.s32.totalorder %s27, 1
      %p45 = por %p43, %p44
      %p46 = scmp.ne.s32.totalorder %s35, %s36
      %p47 = scmp.eq.s32.totalorder %s27, 0
      %p48 = por %p46, %p47
      %p49 = scmp.ne.s32.totalorder %s35, %s36
      %p50 = scmp.eq.s32.totalorder %s28, 1
      %p51 = por %p49, %p50
      %p53 = scmp.ne.s32.totalorder %s36, %s52
      %p54 = scmp.eq.s32.totalorder %s28, 0
      %p55 = por %p53, %p54
      %s57 = sadd.s32 %s56, 1
      %p60 = scmp.eq.s32.totalorder %s22, 1
      %p61 = scmp.ne.s32.totalorder %s56, %s58
      %p62 = scmp.eq.s32.totalorder %s22, 0
      %p63 = por %p61, %p62
      %p64 = scmp.ne.s32.totalorder %s56, %s58
      %p65 = scmp.eq.s32.totalorder %s27, 1
      %p66 = por %p64, %p65
      %p67 = scmp.ne.s32.totalorder %s58, %s59
      %p68 = scmp.eq.s32.totalorder %s27, 0
      %p69 = por %p67, %p68
      %p70 = scmp.ne.s32.totalorder %s58, %s59
      %p71 = scmp.eq.s32.totalorder %s28, 1
      %p72 = por %p70, %p71
      %p74 = scmp.ne.s32.totalorder %s59, %s73
      %p75 = scmp.eq.s32.totalorder %s28, 0
      %p76 = por %p74, %p75
      %s78 = sadd.s32 %s77, 1
      %p81 = scmp.eq.s32.totalorder %s22, 1
      %p82 = scmp.ne.s32.totalorder %s77, %s79
      %p83 = scmp.eq.s32.totalorder %s22, 0
      %p84 = por %p82, %p83
      %p85 = scmp.ne.s32.totalorder %s77, %s79
      %p86 = scmp.eq.s32.totalorder %s27, 1
      %p87 = por %p85, %p86
      %p88 = scmp.ne.s32.totalorder %s79, %s80
      %p89 = scmp.eq.s32.totalorder %s27, 0
      %p90 = por %p88, %p89
      %p91 = scmp.ne.s32.totalorder %s79, %s80
      %p92 = scmp.eq.s32.totalorder %s28, 1
      %p93 = por %p91, %p92
      %p95 = scmp.ne.s32.totalorder %s80, %s94
      %p96 = scmp.eq.s32.totalorder %s28, 0
      %p97 = por %p95, %p96
      %s99 = sadd.s32 %s98, 1
      %p102 = scmp.eq.s32.totalorder %s22, 1
      %p103 = scmp.ne.s32.totalorder %s98, %s100
      %p104 = scmp.eq.s32.totalorder %s22, 0
      %p105 = por %p103, %p104
      %p106 = scmp.ne.s32.totalorder %s98, %s100
      %p107 = scmp.eq.s32.totalorder %s27, 1
      %p108 = por %p106, %p107
      %p109 = scmp.ne.s32.totalorder %s100, %s101
      %p110 = scmp.eq.s32.totalorder %s27, 0
      %p111 = por %p109, %p110
      %p112 = scmp.ne.s32.totalorder %s100, %s101
      %p113 = scmp.eq.s32.totalorder %s28, 1
      %p114 = por %p112, %p113
      %p116 = scmp.ne.s32.totalorder %s101, %s115
      %p117 = scmp.eq.s32.totalorder %s28, 0
      %p118 = por %p116, %p117
      %s120 = sadd.s32 %s119, 1
      %p123 = scmp.eq.s32.totalorder %s22, 1
      %p124 = scmp.ne.s32.totalorder %s119, %s121
      %p125 = scmp.eq.s32.totalorder %s22, 0
      %p126 = por %p124, %p125
      %p127 = scmp.ne.s32.totalorder %s119, %s121
      %p128 = scmp.eq.s32.totalorder %s27, 1
      %p129 = por %p127, %p128
      %p130 = scmp.ne.s32.totalorder %s121, %s122
      %p131 = scmp.eq.s32.totalorder %s27, 0
      %p132 = por %p130, %p131
      %p133 = scmp.ne.s32.totalorder %s121, %s122
      %p134 = scmp.eq.s32.totalorder %s28, 1
      %p135 = por %p133, %p134
      %p137 = scmp.ne.s32.totalorder %s122, %s136
      %p138 = scmp.eq.s32.totalorder %s28, 0
      %p139 = por %p137, %p138
      %s141 = sadd.s32 %s140, 1
      %p144 = scmp.eq.s32.totalorder %s22, 1
      %p145 = scmp.ne.s32.totalorder %s140, %s142
      %p146 = scmp.eq.s32.totalorder %s22, 0
      %p147 = por %p145, %p146
      %p148 = scmp.ne.s32.totalorder %s140, %s142
      %p149 = scmp.eq.s32.totalorder %s27, 1
      %p150 = por %p148, %p149
      %p151 = scmp.ne.s32.totalorder %s142, %s143
      %p152 = scmp.eq.s32.totalorder %s27, 0
      %p153 = por %p151, %p152
      %p154 = scmp.ne.s32.totalorder %s142, %s143
      %p155 = scmp.eq.s32.totalorder %s28, 1
      %p156 = por %p154, %p155
      %p158 = scmp.ne.s32.totalorder %s143, %s157
      %p159 = scmp.eq.s32.totalorder %s28, 0
      %p160 = por %p158, %p159
      %s162 = sadd.s32 %s161, 1
      %p165 = scmp.eq.s32.totalorder %s22, 1
      %p166 = scmp.ne.s32.totalorder %s161, %s163
      %p167 = scmp.eq.s32.totalorder %s22, 0
      %p168 = por %p166, %p167
      %p169 = scmp.ne.s32.totalorder %s161, %s163
      %p170 = scmp.eq.s32.totalorder %s27, 1
      %p171 = por %p169, %p170
      %p172 = scmp.ne.s32.totalorder %s163, %s164
      %p173 = scmp.eq.s32.totalorder %s27, 0
      %p174 = por %p172, %p173
      %p175 = scmp.ne.s32.totalorder %s163, %s164
      %p176 = scmp.eq.s32.totalorder %s28, 1
      %p177 = por %p175, %p176
      %p179 = scmp.ne.s32.totalorder %s164, %s178
      %p180 = scmp.eq.s32.totalorder %s28, 0
      %p181 = por %p179, %p180
      %s183 = sadd.s32 %s182, 1
      %p186 = scmp.eq.s32.totalorder %s22, 1
      %p187 = scmp.ne.s32.totalorder %s182, %s184
      %p188 = scmp.eq.s32.totalorder %s22, 0
      %p189 = por %p187, %p188
      %p190 = scmp.ne.s32.totalorder %s182, %s184
      %p191 = scmp.eq.s32.totalorder %s27, 1
      %p192 = por %p190, %p191
      %p193 = scmp.ne.s32.totalorder %s184, %s185
      %p194 = scmp.eq.s32.totalorder %s27, 0
      %p195 = por %p193, %p194
      %p196 = scmp.ne.s32.totalorder %s184, %s185
      %p197 = scmp.eq.s32.totalorder %s28, 1
      %p198 = por %p196, %p197
      %p200 = scmp.ne.s32.totalorder %s185, %s199
      %p201 = scmp.eq.s32.totalorder %s28, 0
      %p202 = por %p200, %p201
      %s204 = sadd.s32 %s203, 1
      %p207 = scmp.eq.s32.totalorder %s22, 1
      %p208 = scmp.ne.s32.totalorder %s203, %s205
      %p209 = scmp.eq.s32.totalorder %s22, 0
      %p210 = por %p208, %p209
      %p211 = scmp.ne.s32.totalorder %s203, %s205
      %p212 = scmp.eq.s32.totalorder %s27, 1
      %p213 = por %p211, %p212
      %p214 = scmp.ne.s32.totalorder %s205, %s206
      %p215 = scmp.eq.s32.totalorder %s27, 0
      %p216 = por %p214, %p215
      %p217 = scmp.ne.s32.totalorder %s205, %s206
      %p218 = scmp.eq.s32.totalorder %s28, 1
      %p219 = por %p217, %p218
      %p221 = scmp.ne.s32.totalorder %s206, %s220
      %p222 = scmp.eq.s32.totalorder %s28, 0
      %p223 = por %p221, %p222
      %s225 = sadd.s32 %s224, 1
      %p228 = scmp.eq.s32.totalorder %s22, 1
      %p229 = scmp.ne.s32.totalorder %s224, %s226
      %p230 = scmp.eq.s32.totalorder %s22, 0
      %p231 = por %p229, %p230
      %p232 = scmp.ne.s32.totalorder %s224, %s226
      %p233 = scmp.eq.s32.totalorder %s27, 1
      %p234 = por %p232, %p233
      %p235 = scmp.ne.s32.totalorder %s226, %s227
      %p236 = scmp.eq.s32.totalorder %s27, 0
      %p237 = por %p235, %p236
      %p238 = scmp.ne.s32.totalorder %s226, %s227
      %p239 = scmp.eq.s32.totalorder %s28, 1
      %p240 = por %p238, %p239
      %p242 = scmp.ne.s32.totalorder %s227, %s241
      %p243 = scmp.eq.s32.totalorder %s28, 0
      %p244 = por %p242, %p243
      %s246 = sadd.s32 %s245, 1
      %p249 = scmp.eq.s32.totalorder %s22, 1
      %p250 = scmp.ne.s32.totalorder %s245, %s247
      %p251 = scmp.eq.s32.totalorder %s22, 0
      %p252 = por %p250, %p251
      %p253 = scmp.ne.s32.totalorder %s245, %s247
      %p254 = scmp.eq.s32.totalorder %s27, 1
      %p255 = por %p253, %p254
      %p256 = scmp.ne.s32.totalorder %s247, %s248
      %p257 = scmp.eq.s32.totalorder %s27, 0
      %p258 = por %p256, %p257
      %p259 = scmp.ne.s32.totalorder %s247, %s248
      %p260 = scmp.eq.s32.totalorder %s28, 1
      %p261 = por %p259, %p260
      %p263 = scmp.ne.s32.totalorder %s248, %s262
      %p264 = scmp.eq.s32.totalorder %s28, 0
      %p265 = por %p263, %p264
      %s267 = sadd.s32 %s266, 1
      %p270 = scmp.eq.s32.totalorder %s22, 1
      %p271 = scmp.ne.s32.totalorder %s266, %s268
      %p272 = scmp.eq.s32.totalorder %s22, 0
      %p273 = por %p271, %p272
      %p274 = scmp.ne.s32.totalorder %s266, %s268
      %p275 = scmp.eq.s32.totalorder %s27, 1
      %p276 = por %p274, %p275
      %p277 = scmp.ne.s32.totalorder %s268, %s269
      %p278 = scmp.eq.s32.totalorder %s27, 0
      %p279 = por %p277, %p278
      %p280 = scmp.ne.s32.totalorder %s268, %s269
      %p281 = scmp.eq.s32.totalorder %s28, 1
      %p282 = por %p280, %p281
      %p284 = scmp.ne.s32.totalorder %s269, %s283
      %p285 = scmp.eq.s32.totalorder %s28, 0
      %p286 = por %p284, %p285
      %s288 = sadd.s32 %s287, 1
      %p291 = scmp.eq.s32.totalorder %s22, 1
      %p292 = scmp.ne.s32.totalorder %s287, %s289
      %p293 = scmp.eq.s32.totalorder %s22, 0
      %p294 = por %p292, %p293
      %p295 = scmp.ne.s32.totalorder %s287, %s289
      %p296 = scmp.eq.s32.totalorder %s27, 1
      %p297 = por %p295, %p296
      %p298 = scmp.ne.s32.totalorder %s289, %s290
      %p299 = scmp.eq.s32.totalorder %s27, 0
      %p300 = por %p298, %p299
      %p301 = scmp.ne.s32.totalorder %s289, %s290
      %p302 = scmp.eq.s32.totalorder %s28, 1
      %p303 = por %p301, %p302
      %p305 = scmp.ne.s32.totalorder %s290, %s304
      %p306 = scmp.eq.s32.totalorder %s28, 0
      %p307 = por %p305, %p306
      %s308 = ssub.s32 %s22, %s29
      %p309 = scmp.eq.s32.totalorder %s308, 0
      %s311 = sadd.s32 %s310, 1
      %s312 = scalar_select %p309, %s310, %s311
      %p315 = pneg %p309
      %p316 = scmp.eq.s32.totalorder %s22, 1
      %p317 = por %p315, %p316
      %p318 = scmp.ne.s32.totalorder %s310, %s313
      %p319 = scmp.eq.s32.totalorder %s22, 0
      %p320 = por %p318, %p319
      %p321 = scmp.ne.s32.totalorder %s310, %s313
      %p322 = scmp.eq.s32.totalorder %s27, 1
      %p323 = por %p321, %p322
      %p324 = scmp.ne.s32.totalorder %s313, %s314
      %p325 = scmp.eq.s32.totalorder %s27, 0
      %p326 = por %p324, %p325
      %p327 = scmp.ne.s32.totalorder %s313, %s314
      %p328 = scmp.eq.s32.totalorder %s28, 1
      %p329 = por %p327, %p328
      %p331 = scmp.ne.s32.totalorder %s314, %s330
      %p332 = scmp.eq.s32.totalorder %s28, 0
      %p333 = por %p331, %p332
      %p334 = scmp.le.s32.totalorder 1, %s22
      %p335 = scmp.lt.s32.totalorder %s22, 3
      %p336 = pnand %p334, %p335
      %p337 = pneg %p336
      // Predicated region
      $region9: #{net_forward.1} parent=5 // pred_check
        _
      $region10: #{net_forward.1} parent=5 // pred_check_branch
        %339 = sbr.rel (%p336) target = $region12
      $region11: #{net_forward.1} parent=5 // pred_region
        %s340 = ssub.s32 %s22, 1
        // Predicated region
        $region13: #{net_forward.1} parent=11 // pred_check
          %p341 = pneg %p69
        $region14: #{net_forward.1} parent=11 // pred_check_branch
          %343 = sbr.rel (%p341) target = $region16
        $region15: #{net_forward.1} parent=11 // pred_region
          _
        $region16: #{net_forward.1} parent=11 // pred_fallthru
          _
        // Predicated region
        $region17: #{net_forward.1} parent=11 // pred_check
          %p344 = pneg %p90
        $region18: #{net_forward.1} parent=11 // pred_check_branch
          %346 = sbr.rel (%p344) target = $region20
        $region19: #{net_forward.1} parent=11 // pred_region
          _
        $region20: #{net_forward.1} parent=11 // pred_fallthru
          _
        // Predicated region
        $region21: #{net_forward.1} parent=11 // pred_check
          %p347 = pneg %p111
        $region22: #{net_forward.1} parent=11 // pred_check_branch
          %349 = sbr.rel (%p347) target = $region24
        $region23: #{net_forward.1} parent=11 // pred_region
          _
        $region24: #{net_forward.1} parent=11 // pred_fallthru
          _
        // Predicated region
        $region25: #{net_forward.1} parent=11 // pred_check
          %p350 = pneg %p132
        $region26: #{net_forward.1} parent=11 // pred_check_branch
          %352 = sbr.rel (%p350) target = $region28
        $region27: #{net_forward.1} parent=11 // pred_region
          _
        $region28: #{net_forward.1} parent=11 // pred_fallthru
          _
        // Predicated region
        $region29: #{net_forward.1} parent=11 // pred_check
          %p353 = pneg %p153
        $region30: #{net_forward.1} parent=11 // pred_check_branch
          %355 = sbr.rel (%p353) target = $region32
        $region31: #{net_forward.1} parent=11 // pred_region
          _
        $region32: #{net_forward.1} parent=11 // pred_fallthru
          _
        // Predicated region
        $region33: #{net_forward.1} parent=11 // pred_check
          %p356 = pneg %p174
        $region34: #{net_forward.1} parent=11 // pred_check_branch
          %358 = sbr.rel (%p356) target = $region36
        $region35: #{net_forward.1} parent=11 // pred_region
          _
        $region36: #{net_forward.1} parent=11 // pred_fallthru
          _
        // Predicated region
        $region37: #{net_forward.1} parent=11 // pred_check
          %p359 = pneg %p195
        $region38: #{net_forward.1} parent=11 // pred_check_branch
          %361 = sbr.rel (%p359) target = $region40
        $region39: #{net_forward.1} parent=11 // pred_region
          _
        $region40: #{net_forward.1} parent=11 // pred_fallthru
          _
        // Predicated region
        $region41: #{net_forward.1} parent=11 // pred_check
          %p362 = pneg %p216
        $region42: #{net_forward.1} parent=11 // pred_check_branch
          %364 = sbr.rel (%p362) target = $region44
        $region43: #{net_forward.1} parent=11 // pred_region
          _
        $region44: #{net_forward.1} parent=11 // pred_fallthru
          _
        // Predicated region
        $region45: #{net_forward.1} parent=11 // pred_check
          %p365 = pneg %p237
        $region46: #{net_forward.1} parent=11 // pred_check_branch
          %367 = sbr.rel (%p365) target = $region48
        $region47: #{net_forward.1} parent=11 // pred_region
          _
        $region48: #{net_forward.1} parent=11 // pred_fallthru
          _
        // Predicated region
        $region49: #{net_forward.1} parent=11 // pred_check
          %p368 = pneg %p258
        $region50: #{net_forward.1} parent=11 // pred_check_branch
          %370 = sbr.rel (%p368) target = $region52
        $region51: #{net_forward.1} parent=11 // pred_region
          _
        $region52: #{net_forward.1} parent=11 // pred_fallthru
          _
        // Predicated region
        $region53: #{net_forward.1} parent=11 // pred_check
          %p371 = pneg %p279
        $region54: #{net_forward.1} parent=11 // pred_check_branch
          %373 = sbr.rel (%p371) target = $region56
        $region55: #{net_forward.1} parent=11 // pred_region
          _
        $region56: #{net_forward.1} parent=11 // pred_fallthru
          _
        // Predicated region
        $region57: #{net_forward.1} parent=11 // pred_check
          %p374 = pneg %p300
        $region58: #{net_forward.1} parent=11 // pred_check_branch
          %376 = sbr.rel (%p374) target = $region60
        $region59: #{net_forward.1} parent=11 // pred_region
          _
        $region60: #{net_forward.1} parent=11 // pred_fallthru
          _
      $region12: #{net_forward.1} parent=5 // pred_fallthru
        _
      %p377 = scmp.lt.s32.totalorder %s22, 2
      // Predicated region
      $region61: #{net_forward.1} parent=5 // pred_check
        %p378 = pneg %p377
      $region62: #{net_forward.1} parent=5 // pred_check_branch
        %380 = sbr.rel (%p378) target = $region64
      $region63: #{net_forward.1} parent=5 // pred_region
        // Predicated region
        $region65: #{net_forward.1} parent=63 // pred_check
          %p381 = pneg %p42
        $region66: #{net_forward.1} parent=63 // pred_check_branch
          %383 = sbr.rel (%p381) target = $region68
        $region67: #{net_forward.1} parent=63 // pred_region
          %p384 = scmp.lt.s32.totalorder %s22, 1
          %s385 = scalar_select %p384, %s22, 1
          %s386 = smul.addr %s385, 4
          %s387 = smul.addr %s386, 8
          %s388 = scalar_lea.vmem %s0, %s387
        $region68: #{net_forward.1} parent=63 // pred_fallthru
          _
      $region64: #{net_forward.1} parent=5 // pred_fallthru
        _
      %p389 = scmp.le.s32.totalorder 1, %s22
      %p390 = scmp.lt.s32.totalorder %s22, 3
      %p391 = pnand %p389, %p390
      %p392 = pneg %p391
      // Predicated region
      $region69: #{net_forward.1} parent=5 // pred_check
        _
      $region70: #{net_forward.1} parent=5 // pred_check_branch
        %394 = sbr.rel (%p391) target = $region72
      $region71: #{net_forward.1} parent=5 // pred_region
        %s395 = ssub.s32 %s22, 1
        %p396 = scmp.lt.s32.totalorder %s27, 1
        %s397 = scalar_select %p396, %s27, 1
        %s398 = smul.addr %s397, 4
        %s399 = smul.addr %s398, 8
        %s400 = scalar_lea.vmem %s0, %s399
        %p401 = pneg %p48
        %p402 = pneg %p45
        %p403 = pneg %p69
        %p404 = pneg %p66
        %p405 = pneg %p90
        %p406 = pneg %p87
        %p407 = pneg %p111
        %p408 = pneg %p108
        %p409 = pneg %p132
        %p410 = pneg %p129
        %p411 = pneg %p153
        %p412 = pneg %p150
        %p413 = pneg %p174
        %p414 = pneg %p171
        %p415 = pneg %p195
        %p416 = pneg %p192
        %p417 = pneg %p216
        %p418 = pneg %p213
        %p419 = pneg %p237
        %p420 = pneg %p234
        %p421 = pneg %p258
        %p422 = pneg %p255
        %p423 = pneg %p279
        %p424 = pneg %p276
        %p425 = pneg %p300
        %p426 = pneg %p297
        %p427 = pneg %p326
        %p428 = pneg %p323
        %s429 = sand.u32 %s313, 1
        %s430 = scalar_lea.sflag [#allocation3], %s429
        %s431 = sand.u32 %s313, 1
        %s432 = scalar_lea.vmem [#allocation2], %s431
        %p433 = scmp.lt.s32.totalorder %s27, 1
        %s434 = scalar_select %p433, %s27, 1
        %s435 = smul.addr %s434, 4
        %s436 = smul.addr %s435, 8
        %s437 = scalar_lea.vmem %s0, %s436
        %v438 = vld [vmem:[%s437] sm:$0xff]
        %v439 = vld [vmem:[%s437 + $0x8] sm:$0xff]
        %v440 = vld [vmem:[%s437 + $0x10] sm:$0xff]
        %v441 = vld [vmem:[%s437 + $0x18] sm:$0xf]
        %v442 = vld [vmem:[%s1] sm:$0xff]
        %v443 = vld [vmem:[%s1 + $0x8] sm:$0xff]
        %v444 = vld [vmem:[%s1 + $0x10] sm:$0xff]
        %v445 = vld [vmem:[%s1 + $0x18] sm:$0xff]
        %v446 = vld [vmem:[%s1 + $0x20] sm:$0xff]
        %v447 = vld [vmem:[%s1 + $0x28] sm:$0xff]
        %v448 = vld [vmem:[%s1 + $0x30] sm:$0xff]
        %v449 = vld [vmem:[%s1 + $0x38] sm:$0xff]
        %v450 = vld [vmem:[%s1 + $0x40] sm:$0xff]
        %v451 = vld [vmem:[%s1 + $0x48] sm:$0xff]
        %v452 = vld [vmem:[%s1 + $0x50] sm:$0xff]
        %v453 = vld [vmem:[%s1 + $0x58] sm:$0xff]
        %v454 = vld [vmem:[%s2] sm:$0xff]
        %v455 = vld [vmem:[%s2 + $0x8] sm:$0xff]
        %v456 = vld [vmem:[%s2 + $0x10] sm:$0xff]
        %v457 = vld [vmem:[%s2 + $0x18] sm:$0xff]
        %v458 = vld [vmem:[%s2 + $0x20] sm:$0xff]
        %v459 = vld [vmem:[%s2 + $0x28] sm:$0xff]
        %v460 = vld [vmem:[%s2 + $0x30] sm:$0xff]
        %v461 = vld [vmem:[%s2 + $0x38] sm:$0xff]
        %v462 = vld [vmem:[%s2 + $0x40] sm:$0xff]
        %v463 = vld [vmem:[%s2 + $0x48] sm:$0xff]
        %v464 = vld [vmem:[%s2 + $0x50] sm:$0xff]
        %v465 = vld [vmem:[%s2 + $0x58] sm:$0xff]
        %v466 = vld [vmem:[%s437 + $0x1] sm:$0xff]
        %v467 = vld [vmem:[%s437 + $0x9] sm:$0xff]
        %v468 = vld [vmem:[%s437 + $0x11] sm:$0xff]
        %v469 = vld [vmem:[%s437 + $0x19] sm:$0xf]
        %s470 = scalar_lea.vmem %s1, 96
        %v471 = vld [vmem:[%s470] sm:$0xff]
        %v472 = vld [vmem:[%s470 + $0x8] sm:$0xff]
        %v473 = vld [vmem:[%s470 + $0x10] sm:$0xff]
        %v474 = vld [vmem:[%s470 + $0x18] sm:$0xff]
        %v475 = vld [vmem:[%s470 + $0x20] sm:$0xff]
        %v476 = vld [vmem:[%s470 + $0x28] sm:$0xff]
        %v477 = vld [vmem:[%s470 + $0x30] sm:$0xff]
        %v478 = vld [vmem:[%s470 + $0x38] sm:$0xff]
        %v479 = vld [vmem:[%s470 + $0x40] sm:$0xff]
        %v480 = vld [vmem:[%s470 + $0x48] sm:$0xff]
        %v481 = vld [vmem:[%s470 + $0x50] sm:$0xff]
        %v482 = vld [vmem:[%s470 + $0x58] sm:$0xff]
        %vm483 = vcmask 785408
        %v485 = vsel %vm483, %v466, 0
        %v488 = vsel %vm483, %v467, 0
        %v491 = vsel %vm483, %v468, 0
        %v494 = vsel %vm483, %v469, 0
        %496 = vmatprep.subr.mxu0 0.0
        %497 = vmatpush1.msra.mxu0 %v471
        %498 = vmatprep.subr.mxu0 0.0
        %499 = vmatpush1.msra.mxu0 %v472
        %500 = vmatprep.subr.mxu0 0.0
        %501 = vmatpush1.msra.mxu0 %v473
        %502 = vmatprep.subr.mxu0 0.0
        %503 = vmatpush1.msra.mxu0 %v474
        %504 = vmatprep.subr.mxu0 0.0
        %505 = vmatpush1.msra.mxu0 %v475
        %506 = vmatprep.subr.mxu0 0.0
        %507 = vmatpush1.msra.mxu0 %v476
        %508 = vmatprep.subr.mxu0 0.0
        %509 = vmatpush1.msra.mxu0 %v477
        %510 = vmatprep.subr.mxu0 0.0
        %511 = vmatpush1.msra.mxu0 %v478
        %512 = vmatprep.subr.mxu0 0.0
        %513 = vmatpush1.msra.mxu0 %v479
        %514 = vmatprep.subr.mxu0 0.0
        %515 = vmatpush1.msra.mxu0 %v480
        %516 = vmatprep.subr.mxu0 0.0
        %517 = vmatpush1.msra.mxu0 %v481
        %518 = vmatprep.subr.mxu0 0.0
        %519 = vmatpush1.msra.mxu0 %v482
        %520 = vmatprep.subr.mxu0 0.0
        %521 = vmatpush1.msra.mxu0 0.0
        %522 = vmatprep.subr.mxu0 0.0
        %523 = vmatpush1.msra.mxu0 0.0
        %524 = vmatprep.subr.mxu0 0.0
        %525 = vmatpush1.msra.mxu0 0.0
        %526 = vmatprep.subr.mxu0 0.0
        %527 = vmatpush1.msra.mxu0 0.0
        %528 = vmatprep.subr.mxu0 0.0
        %529 = vmatpush1.msra.mxu0 0.0
        %530 = vmatprep.subr.mxu0 0.0
        %531 = vmatpush1.msra.mxu0 0.0
        %532 = vmatprep.subr.mxu0 0.0
        %533 = vmatpush1.msra.mxu0 0.0
        %534 = vmatprep.subr.mxu0 0.0
        %535 = vmatpush1.msra.mxu0 0.0
        %536 = vmatprep.subr.mxu0 0.0
        %537 = vmatpush1.msra.mxu0 0.0
        %538 = vmatprep.subr.mxu0 0.0
        %539 = vmatpush1.msra.mxu0 0.0
        %540 = vmatprep.subr.mxu0 0.0
        %541 = vmatpush1.msra.mxu0 0.0
        %542 = vmatprep.subr.mxu0 0.0
        %543 = vmatpush1.msra.mxu0 0.0
        %544 = vmatprep.subr.mxu0 0.0
        %545 = vmatpush1.msra.mxu0 0.0
        %546 = vmatprep.subr.mxu0 0.0
        %547 = vmatpush1.msra.mxu0 0.0
        %548 = vmatprep.subr.mxu0 0.0
        %549 = vmatpush1.msra.mxu0 0.0
        %550 = vmatprep.subr.mxu0 0.0
        %551 = vmatpush1.msra.mxu0 0.0
        %552 = vmatprep.subr.mxu0 0.0
        %553 = vmatpush1.msra.mxu0 0.0
        %554 = vmatprep.subr.mxu0 0.0
        %555 = vmatpush1.msra.mxu0 0.0
        %556 = vmatprep.subr.mxu0 0.0
        %557 = vmatpush1.msra.mxu0 0.0
        %558 = vmatprep.subr.mxu0 0.0
        %559 = vmatpush1.msra.mxu0 0.0
        %560 = vmatprep.mubr.f32.mxu0 0.0
        %561 = vmatmul.mubr.f32.gmra.mrb[0].mxu0 %v485
        %v562 = vpop.f32.mrb[0].mxu0
        %v563 = vadd.f32 0.0, %v562
        %v564 = vpop.f32.mrb[0].mxu0
        %565 = vmatprep.mubr.f32.mxu0 0.0
        %566 = vmatmul.mubr.f32.gmra.mrb[0].mxu0 %v488
        %v567 = vpop.f32.mrb[0].mxu0
        %v568 = vadd.f32 0.0, %v567
        %v569 = vpop.f32.mrb[0].mxu0
        %570 = vmatprep.mubr.f32.mxu0 0.0
        %571 = vmatmul.mubr.f32.gmra.mrb[0].mxu0 %v491
        %v572 = vpop.f32.mrb[0].mxu0
        %v573 = vadd.f32 0.0, %v572
        %v574 = vpop.f32.mrb[0].mxu0
        %575 = vmatprep.mubr.f32.mxu0 0.0
        %576 = vmatmul.mubr.f32.gmra.mrb[0].mxu0 %v494
        %v577 = vpop.f32.mrb[0].mxu0
        %v578 = vadd.f32 0.0, %v577
        %v579 = vpop.f32.mrb[0].mxu0
        %580 = vdwg.mxu0
        %v582 = vsel %vm483, %v438, 0
        %v585 = vsel %vm483, %v439, 0
        %v588 = vsel %vm483, %v440, 0
        %v591 = vsel %vm483, %v441, 0
        %593 = vmatprep.subr.mxu0 0.0
        %594 = vmatpush1.msra.mxu0 %v442
        %595 = vmatprep.subr.mxu0 0.0
        %596 = vmatpush1.msra.mxu0 %v443
        %597 = vmatprep.subr.mxu0 0.0
        %598 = vmatpush1.msra.mxu0 %v444
        %599 = vmatprep.subr.mxu0 0.0
        %600 = vmatpush1.msra.mxu0 %v445
        %601 = vmatprep.subr.mxu0 0.0
        %602 = vmatpush1.msra.mxu0 %v446
        %603 = vmatprep.subr.mxu0 0.0
        %604 = vmatpush1.msra.mxu0 %v447
        %605 = vmatprep.subr.mxu0 0.0
        %606 = vmatpush1.msra.mxu0 %v448
        %607 = vmatprep.subr.mxu0 0.0
        %608 = vmatpush1.msra.mxu0 %v449
        %609 = vmatprep.subr.mxu0 0.0
        %610 = vmatpush1.msra.mxu0 %v450
        %611 = vmatprep.subr.mxu0 0.0
        %612 = vmatpush1.msra.mxu0 %v451
        %613 = vmatprep.subr.mxu0 0.0
        %614 = vmatpush1.msra.mxu0 %v452
        %615 = vmatprep.subr.mxu0 0.0
        %616 = vmatpush1.msra.mxu0 %v453
        %617 = vmatprep.subr.mxu0 0.0
        %618 = vmatpush1.msra.mxu0 0.0
        %619 = vmatprep.subr.mxu0 0.0
        %620 = vmatpush1.msra.mxu0 0.0
        %621 = vmatprep.subr.mxu0 0.0
        %622 = vmatpush1.msra.mxu0 0.0
        %623 = vmatprep.subr.mxu0 0.0
        %624 = vmatpush1.msra.mxu0 0.0
        %625 = vmatprep.subr.mxu0 0.0
        %626 = vmatpush1.msra.mxu0 0.0
        %627 = vmatprep.subr.mxu0 0.0
        %628 = vmatpush1.msra.mxu0 0.0
        %629 = vmatprep.subr.mxu0 0.0
        %630 = vmatpush1.msra.mxu0 0.0
        %631 = vmatprep.subr.mxu0 0.0
        %632 = vmatpush1.msra.mxu0 0.0
        %633 = vmatprep.subr.mxu0 0.0
        %634 = vmatpush1.msra.mxu0 0.0
        %635 = vmatprep.subr.mxu0 0.0
        %636 = vmatpush1.msra.mxu0 0.0
        %637 = vmatprep.subr.mxu0 0.0
        %638 = vmatpush1.msra.mxu0 0.0
        %639 = vmatprep.subr.mxu0 0.0
        %640 = vmatpush1.msra.mxu0 0.0
        %641 = vmatprep.subr.mxu0 0.0
        %642 = vmatpush1.msra.mxu0 0.0
        %643 = vmatprep.subr.mxu0 0.0
        %644 = vmatpush1.msra.mxu0 0.0
        %645 = vmatprep.subr.mxu0 0.0
        %646 = vmatpush1.msra.mxu0 0.0
        %647 = vmatprep.subr.mxu0 0.0
        %648 = vmatpush1.msra.mxu0 0.0
        %649 = vmatprep.subr.mxu0 0.0
        %650 = vmatpush1.msra.mxu0 0.0
        %651 = vmatprep.subr.mxu0 0.0
        %652 = vmatpush1.msra.mxu0 0.0
        %653 = vmatprep.subr.mxu0 0.0
        %654 = vmatpush1.msra.mxu0 0.0
        %655 = vmatprep.subr.mxu0 0.0
        %656 = vmatpush1.msra.mxu0 0.0
        %657 = vmatprep.mubr.f32.mxu0 0.0
        %658 = vmatmul.mubr.f32.gmra.mrb[0].mxu0 %v582
        %v659 = vpop.f32.mrb[0].mxu0
        %v660 = vadd.f32 %v563, %v659
        %v661 = vpop.f32.mrb[0].mxu0
        %662 = vmatprep.mubr.f32.mxu0 0.0
        %663 = vmatmul.mubr.f32.gmra.mrb[0].mxu0 %v585
        %v664 = vpop.f32.mrb[0].mxu0
        %v665 = vadd.f32 %v568, %v664
        %v666 = vpop.f32.mrb[0].mxu0
        %667 = vmatprep.mubr.f32.mxu0 0.0
        %668 = vmatmul.mubr.f32.gmra.mrb[0].mxu0 %v588
        %v669 = vpop.f32.mrb[0].mxu0
        %v670 = vadd.f32 %v573, %v669
        %v671 = vpop.f32.mrb[0].mxu0
        %672 = vmatprep.mubr.f32.mxu0 0.0
        %673 = vmatmul.mubr.f32.gmra.mrb[0].mxu0 %v591
        %v674 = vpop.f32.mrb[0].mxu0
        %v675 = vadd.f32 %v578, %v674
        %v676 = vpop.f32.mrb[0].mxu0
        %677 = vdwg.mxu0
        %s678 = scalar_lea.vmem %s2, 96
        %v679 = vld [vmem:[%s678] sm:$0xff]
        %v680 = vld [vmem:[%s678 + $0x8] sm:$0xff]
        %v681 = vld [vmem:[%s678 + $0x10] sm:$0xff]
        %v682 = vld [vmem:[%s678 + $0x18] sm:$0xff]
        %v683 = vld [vmem:[%s678 + $0x20] sm:$0xff]
        %v684 = vld [vmem:[%s678 + $0x28] sm:$0xff]
        %v685 = vld [vmem:[%s678 + $0x30] sm:$0xff]
        %v686 = vld [vmem:[%s678 + $0x38] sm:$0xff]
        %v687 = vld [vmem:[%s678 + $0x40] sm:$0xff]
        %v688 = vld [vmem:[%s678 + $0x48] sm:$0xff]
        %v689 = vld [vmem:[%s678 + $0x50] sm:$0xff]
        %v690 = vld [vmem:[%s678 + $0x58] sm:$0xff]
        %691 = vmatprep.subr.mxu0 0.0
        %692 = vmatpush1.msra.mxu0 %v679
        %693 = vmatprep.subr.mxu0 0.0
        %694 = vmatpush1.msra.mxu0 %v680
        %695 = vmatprep.subr.mxu0 0.0
        %696 = vmatpush1.msra.mxu0 %v681
        %697 = vmatprep.subr.mxu0 0.0
        %698 = vmatpush1.msra.mxu0 %v682
        %699 = vmatprep.subr.mxu0 0.0
        %700 = vmatpush1.msra.mxu0 %v683
        %701 = vmatprep.subr.mxu0 0.0
        %702 = vmatpush1.msra.mxu0 %v684
        %703 = vmatprep.subr.mxu0 0.0
        %704 = vmatpush1.msra.mxu0 %v685
        %705 = vmatprep.subr.mxu0 0.0
        %706 = vmatpush1.msra.mxu0 %v686
        %707 = vmatprep.subr.mxu0 0.0
        %708 = vmatpush1.msra.mxu0 %v687
        %709 = vmatprep.subr.mxu0 0.0
        %710 = vmatpush1.msra.mxu0 %v688
        %711 = vmatprep.subr.mxu0 0.0
        %712 = vmatpush1.msra.mxu0 %v689
        %713 = vmatprep.subr.mxu0 0.0
        %714 = vmatpush1.msra.mxu0 %v690
        %715 = vmatprep.subr.mxu0 0.0
        %716 = vmatpush1.msra.mxu0 0.0
        %717 = vmatprep.subr.mxu0 0.0
        %718 = vmatpush1.msra.mxu0 0.0
        %719 = vmatprep.subr.mxu0 0.0
        %720 = vmatpush1.msra.mxu0 0.0
        %721 = vmatprep.subr.mxu0 0.0
        %722 = vmatpush1.msra.mxu0 0.0
        %723 = vmatprep.subr.mxu0 0.0
        %724 = vmatpush1.msra.mxu0 0.0
        %725 = vmatprep.subr.mxu0 0.0
        %726 = vmatpush1.msra.mxu0 0.0
        %727 = vmatprep.subr.mxu0 0.0
        %728 = vmatpush1.msra.mxu0 0.0
        %729 = vmatprep.subr.mxu0 0.0
        %730 = vmatpush1.msra.mxu0 0.0
        %731 = vmatprep.subr.mxu0 0.0
        %732 = vmatpush1.msra.mxu0 0.0
        %733 = vmatprep.subr.mxu0 0.0
        %734 = vmatpush1.msra.mxu0 0.0
        %735 = vmatprep.subr.mxu0 0.0
        %736 = vmatpush1.msra.mxu0 0.0
        %737 = vmatprep.subr.mxu0 0.0
        %738 = vmatpush1.msra.mxu0 0.0
        %739 = vmatprep.subr.mxu0 0.0
        %740 = vmatpush1.msra.mxu0 0.0
        %741 = vmatprep.subr.mxu0 0.0
        %742 = vmatpush1.msra.mxu0 0.0
        %743 = vmatprep.subr.mxu0 0.0
        %744 = vmatpush1.msra.mxu0 0.0
        %745 = vmatprep.subr.mxu0 0.0
        %746 = vmatpush1.msra.mxu0 0.0
        %747 = vmatprep.subr.mxu0 0.0
        %748 = vmatpush1.msra.mxu0 0.0
        %749 = vmatprep.subr.mxu0 0.0
        %750 = vmatpush1.msra.mxu0 0.0
        %751 = vmatprep.subr.mxu0 0.0
        %752 = vmatpush1.msra.mxu0 0.0
        %753 = vmatprep.subr.mxu0 0.0
        %754 = vmatpush1.msra.mxu0 0.0
        %755 = vmatprep.mubr.f32.mxu0 0.0
        %756 = vmatmul.mubr.f32.gmra.mrb[0].mxu0 %v485
        %v757 = vpop.f32.mrb[0].mxu0
        %v758 = vadd.f32 0.0, %v757
        %v759 = vpop.f32.mrb[0].mxu0
        %760 = vmatprep.mubr.f32.mxu0 0.0
        %761 = vmatmul.mubr.f32.gmra.mrb[0].mxu0 %v488
        %v762 = vpop.f32.mrb[0].mxu0
        %v763 = vadd.f32 0.0, %v762
        %v764 = vpop.f32.mrb[0].mxu0
        %765 = vmatprep.mubr.f32.mxu0 0.0
        %766 = vmatmul.mubr.f32.gmra.mrb[0].mxu0 %v491
        %v767 = vpop.f32.mrb[0].mxu0
        %v768 = vadd.f32 0.0, %v767
        %v769 = vpop.f32.mrb[0].mxu0
        %770 = vmatprep.mubr.f32.mxu0 0.0
        %771 = vmatmul.mubr.f32.gmra.mrb[0].mxu0 %v494
        %v772 = vpop.f32.mrb[0].mxu0
        %v773 = vadd.f32 0.0, %v772
        %v774 = vpop.f32.mrb[0].mxu0
        %775 = vdwg.mxu0
        %776 = vmatprep.subr.mxu0 0.0
        %777 = vmatpush1.msra.mxu0 %v454
        %778 = vmatprep.subr.mxu0 0.0
        %779 = vmatpush1.msra.mxu0 %v455
        %780 = vmatprep.subr.mxu0 0.0
        %781 = vmatpush1.msra.mxu0 %v456
        %782 = vmatprep.subr.mxu0 0.0
        %783 = vmatpush1.msra.mxu0 %v457
        %784 = vmatprep.subr.mxu0 0.0
        %785 = vmatpush1.msra.mxu0 %v458
        %786 = vmatprep.subr.mxu0 0.0
        %787 = vmatpush1.msra.mxu0 %v459
        %788 = vmatprep.subr.mxu0 0.0
        %789 = vmatpush1.msra.mxu0 %v460
        %790 = vmatprep.subr.mxu0 0.0
        %791 = vmatpush1.msra.mxu0 %v461
        %792 = vmatprep.subr.mxu0 0.0
        %793 = vmatpush1.msra.mxu0 %v462
        %794 = vmatprep.subr.mxu0 0.0
        %795 = vmatpush1.msra.mxu0 %v463
        %796 = vmatprep.subr.mxu0 0.0
        %797 = vmatpush1.msra.mxu0 %v464
        %798 = vmatprep.subr.mxu0 0.0
        %799 = vmatpush1.msra.mxu0 %v465
        %800 = vmatprep.subr.mxu0 0.0
        %801 = vmatpush1.msra.mxu0 0.0
        %802 = vmatprep.subr.mxu0 0.0
        %803 = vmatpush1.msra.mxu0 0.0
        %804 = vmatprep.subr.mxu0 0.0
        %805 = vmatpush1.msra.mxu0 0.0
        %806 = vmatprep.subr.mxu0 0.0
        %807 = vmatpush1.msra.mxu0 0.0
        %808 = vmatprep.subr.mxu0 0.0
        %809 = vmatpush1.msra.mxu0 0.0
        %810 = vmatprep.subr.mxu0 0.0
        %811 = vmatpush1.msra.mxu0 0.0
        %812 = vmatprep.subr.mxu0 0.0
        %813 = vmatpush1.msra.mxu0 0.0
        %814 = vmatprep.subr.mxu0 0.0
        %815 = vmatpush1.msra.mxu0 0.0
        %816 = vmatprep.subr.mxu0 0.0
        %817 = vmatpush1.msra.mxu0 0.0
        %818 = vmatprep.subr.mxu0 0.0
        %819 = vmatpush1.msra.mxu0 0.0
        %820 = vmatprep.subr.mxu0 0.0
        %821 = vmatpush1.msra.mxu0 0.0
        %822 = vmatprep.subr.mxu0 0.0
        %823 = vmatpush1.msra.mxu0 0.0
        %824 = vmatprep.subr.mxu0 0.0
        %825 = vmatpush1.msra.mxu0 0.0
        %826 = vmatprep.subr.mxu0 0.0
        %827 = vmatpush1.msra.mxu0 0.0
        %828 = vmatprep.subr.mxu0 0.0
        %829 = vmatpush1.msra.mxu0 0.0
        %830 = vmatprep.subr.mxu0 0.0
        %831 = vmatpush1.msra.mxu0 0.0
        %832 = vmatprep.subr.mxu0 0.0
        %833 = vmatpush1.msra.mxu0 0.0
        %834 = vmatprep.subr.mxu0 0.0
        %835 = vmatpush1.msra.mxu0 0.0
        %836 = vmatprep.subr.mxu0 0.0
        %837 = vmatpush1.msra.mxu0 0.0
        %838 = vmatprep.subr.mxu0 0.0
        %839 = vmatpush1.msra.mxu0 0.0
        %840 = vmatprep.mubr.f32.mxu0 0.0
        %841 = vmatmul.mubr.f32.gmra.mrb[0].mxu0 %v582
        %v842 = vpop.f32.mrb[0].mxu0
        %v843 = vadd.f32 %v758, %v842
        %v844 = vpop.f32.mrb[0].mxu0
        %845 = vmatprep.mubr.f32.mxu0 0.0
        %846 = vmatmul.mubr.f32.gmra.mrb[0].mxu0 %v585
        %v847 = vpop.f32.mrb[0].mxu0
        %v848 = vadd.f32 %v763, %v847
        %v849 = vpop.f32.mrb[0].mxu0
        %850 = vmatprep.mubr.f32.mxu0 0.0
        %851 = vmatmul.mubr.f32.gmra.mrb[0].mxu0 %v588
        %v852 = vpop.f32.mrb[0].mxu0
        %v853 = vadd.f32 %v768, %v852
        %v854 = vpop.f32.mrb[0].mxu0
        %855 = vmatprep.mubr.f32.mxu0 0.0
        %856 = vmatmul.mubr.f32.gmra.mrb[0].mxu0 %v591
        %v857 = vpop.f32.mrb[0].mxu0
        %v858 = vadd.f32 %v773, %v857
        %v859 = vpop.f32.mrb[0].mxu0
        %860 = vdwg.mxu0
        %v861 = vld [vmem:[%s437 + $0x2] sm:$0xff]
        %v862 = vld [vmem:[%s437 + $0xa] sm:$0xff]
        %v863 = vld [vmem:[%s437 + $0x12] sm:$0xff]
        %v864 = vld [vmem:[%s437 + $0x1a] sm:$0xf]
        %s865 = scalar_lea.vmem %s1, 192
        %v866 = vld [vmem:[%s865] sm:$0xff]
        %v867 = vld [vmem:[%s865 + $0x8] sm:$0xff]
        %v868 = vld [vmem:[%s865 + $0x10] sm:$0xff]
        %v869 = vld [vmem:[%s865 + $0x18] sm:$0xff]
        %v870 = vld [vmem:[%s865 + $0x20] sm:$0xff]
        %v871 = vld [vmem:[%s865 + $0x28] sm:$0xff]
        %v872 = vld [vmem:[%s865 + $0x30] sm:$0xff]
        %v873 = vld [vmem:[%s865 + $0x38] sm:$0xff]
        %v874 = vld [vmem:[%s865 + $0x40] sm:$0xff]
        %v875 = vld [vmem:[%s865 + $0x48] sm:$0xff]
        %v876 = vld [vmem:[%s865 + $0x50] sm:$0xff]
        %v877 = vld [vmem:[%s865 + $0x58] sm:$0xff]
        %v879 = vsel %vm483, %v861, 0
        %v882 = vsel %vm483, %v862, 0
        %v885 = vsel %vm483, %v863, 0
        %v888 = vsel %vm483, %v864, 0
        %890 = vmatprep.subr.mxu0 0.0
        %891 = vmatpush1.msra.mxu0 %v866
        %892 = vmatprep.subr.mxu0 0.0
        %893 = vmatpush1.msra.mxu0 %v867
        %894 = vmatprep.subr.mxu0 0.0
        %895 = vmatpush1.msra.mxu0 %v868
        %896 = vmatprep.subr.mxu0 0.0
        %897 = vmatpush1.msra.mxu0 %v869
        %898 = vmatprep.subr.mxu0 0.0
        %899 = vmatpush1.msra.mxu0 %v870
        %900 = vmatprep.subr.mxu0 0.0
        %901 = vmatpush1.msra.mxu0 %v871
        %902 = vmatprep.subr.mxu0 0.0
        %903 = vmatpush1.msra.mxu0 %v872
        %904 = vmatprep.subr.mxu0 0.0
        %905 = vmatpush1.msra.mxu0 %v873
        %906 = vmatprep.subr.mxu0 0.0
        %907 = vmatpush1.msra.mxu0 %v874
        %908 = vmatprep.subr.mxu0 0.0
        %909 = vmatpush1.msra.mxu0 %v875
        %910 = vmatprep.subr.mxu0 0.0
        %911 = vmatpush1.msra.mxu0 %v876
        %912 = vmatprep.subr.mxu0 0.0
        %913 = vmatpush1.msra.mxu0 %v877
        %914 = vmatprep.subr.mxu0 0.0
        %915 = vmatpush1.msra.mxu0 0.0
        %916 = vmatprep.subr.mxu0 0.0
        %917 = vmatpush1.msra.mxu0 0.0
        %918 = vmatprep.subr.mxu0 0.0
        %919 = vmatpush1.msra.mxu0 0.0
        %920 = vmatprep.subr.mxu0 0.0
        %921 = vmatpush1.msra.mxu0 0.0
        %922 = vmatprep.subr.mxu0 0.0
        %923 = vmatpush1.msra.mxu0 0.0
        %924 = vmatprep.subr.mxu0 0.0
        %925 = vmatpush1.msra.mxu0 0.0
        %926 = vmatprep.subr.mxu0 0.0
        %927 = vmatpush1.msra.mxu0 0.0
        %928 = vmatprep.subr.mxu0 0.0
        %929 = vmatpush1.msra.mxu0 0.0
        %930 = vmatprep.subr.mxu0 0.0
        %931 = vmatpush1.msra.mxu0 0.0
        %932 = vmatprep.subr.mxu0 0.0
        %933 = vmatpush1.msra.mxu0 0.0
        %934 = vmatprep.subr.mxu0 0.0
        %935 = vmatpush1.msra.mxu0 0.0
        %936 = vmatprep.subr.mxu0 0.0
        %937 = vmatpush1.msra.mxu0 0.0
        %938 = vmatprep.subr.mxu0 0.0
        %939 = vmatpush1.msra.mxu0 0.0
        %940 = vmatprep.subr.mxu0 0.0
        %941 = vmatpush1.msra.mxu0 0.0
        %942 = vmatprep.subr.mxu0 0.0
        %943 = vmatpush1.msra.mxu0 0.0
        %944 = vmatprep.subr.mxu0 0.0
        %945 = vmatpush1.msra.mxu0 0.0
        %946 = vmatprep.subr.mxu0 0.0
        %947 = vmatpush1.msra.mxu0 0.0
        %948 = vmatprep.subr.mxu0 0.0
        %949 = vmatpush1.msra.mxu0 0.0
        %950 = vmatprep.subr.mxu0 0.0
        %951 = vmatpush1.msra.mxu0 0.0
        %952 = vmatprep.subr.mxu0 0.0
        %953 = vmatpush1.msra.mxu0 0.0
        %954 = vmatprep.mubr.f32.mxu0 0.0
        %955 = vmatmul.mubr.f32.gmra.mrb[0].mxu0 %v879
        %v956 = vpop.f32.mrb[0].mxu0
        %v957 = vadd.f32 0.0, %v956
        %v958 = vpop.f32.mrb[0].mxu0
        %959 = vmatprep.mubr.f32.mxu0 0.0
        %960 = vmatmul.mubr.f32.gmra.mrb[0].mxu0 %v882
        %v961 = vpop.f32.mrb[0].mxu0
        %v962 = vadd.f32 0.0, %v961
        %v963 = vpop.f32.mrb[0].mxu0
        %964 = vmatprep.mubr.f32.mxu0 0.0
        %965 = vmatmul.mubr.f32.gmra.mrb[0].mxu0 %v885
        %v966 = vpop.f32.mrb[0].mxu0
        %v967 = vadd.f32 0.0, %v966
        %v968 = vpop.f32.mrb[0].mxu0
        %969 = vmatprep.mubr.f32.mxu0 0.0
        %970 = vmatmul.mubr.f32.gmra.mrb[0].mxu0 %v888
        %v971 = vpop.f32.mrb[0].mxu0
        %v972 = vadd.f32 0.0, %v971
        %v973 = vpop.f32.mrb[0].mxu0
        %974 = vdwg.mxu0
        %v975 = vadd.f32 %v660, %v957
        %v976 = vadd.f32 %v665, %v962
        %v977 = vadd.f32 %v670, %v967
        %v978 = vadd.f32 %v675, %v972
        %s979 = scalar_lea.vmem %s2, 192
        %v980 = vld [vmem:[%s979] sm:$0xff]
        %v981 = vld [vmem:[%s979 + $0x8] sm:$0xff]
        %v982 = vld [vmem:[%s979 + $0x10] sm:$0xff]
        %v983 = vld [vmem:[%s979 + $0x18] sm:$0xff]
        %v984 = vld [vmem:[%s979 + $0x20] sm:$0xff]
        %v985 = vld [vmem:[%s979 + $0x28] sm:$0xff]
        %v986 = vld [vmem:[%s979 + $0x30] sm:$0xff]
        %v987 = vld [vmem:[%s979 + $0x38] sm:$0xff]
        %v988 = vld [vmem:[%s979 + $0x40] sm:$0xff]
        %v989 = vld [vmem:[%s979 + $0x48] sm:$0xff]
        %v990 = vld [vmem:[%s979 + $0x50] sm:$0xff]
        %v991 = vld [vmem:[%s979 + $0x58] sm:$0xff]
        %992 = vmatprep.subr.mxu0 0.0
        %993 = vmatpush1.msra.mxu0 %v980
        %994 = vmatprep.subr.mxu0 0.0
        %995 = vmatpush1.msra.mxu0 %v981
        %996 = vmatprep.subr.mxu0 0.0
        %997 = vmatpush1.msra.mxu0 %v982
        %998 = vmatprep.subr.mxu0 0.0
        %999 = vmatpush1.msra.mxu0 %v983
        %1000 = vmatprep.subr.mxu0 0.0
        %1001 = vmatpush1.msra.mxu0 %v984
        %1002 = vmatprep.subr.mxu0 0.0
        %1003 = vmatpush1.msra.mxu0 %v985
        %1004 = vmatprep.subr.mxu0 0.0
        %1005 = vmatpush1.msra.mxu0 %v986
        %1006 = vmatprep.subr.mxu0 0.0
        %1007 = vmatpush1.msra.mxu0 %v987
        %1008 = vmatprep.subr.mxu0 0.0
        %1009 = vmatpush1.msra.mxu0 %v988
        %1010 = vmatprep.subr.mxu0 0.0
        %1011 = vmatpush1.msra.mxu0 %v989
        %1012 = vmatprep.subr.mxu0 0.0
        %1013 = vmatpush1.msra.mxu0 %v990
        %1014 = vmatprep.subr.mxu0 0.0
        %1015 = vmatpush1.msra.mxu0 %v991
        %1016 = vmatprep.subr.mxu0 0.0
        %1017 = vmatpush1.msra.mxu0 0.0
        %1018 = vmatprep.subr.mxu0 0.0
        %1019 = vmatpush1.msra.mxu0 0.0
        %1020 = vmatprep.subr.mxu0 0.0
        %1021 = vmatpush1.msra.mxu0 0.0
        %1022 = vmatprep.subr.mxu0 0.0
        %1023 = vmatpush1.msra.mxu0 0.0
        %1024 = vmatprep.subr.mxu0 0.0
        %1025 = vmatpush1.msra.mxu0 0.0
        %1026 = vmatprep.subr.mxu0 0.0
        %1027 = vmatpush1.msra.mxu0 0.0
        %1028 = vmatprep.subr.mxu0 0.0
        %1029 = vmatpush1.msra.mxu0 0.0
        %1030 = vmatprep.subr.mxu0 0.0
        %1031 = vmatpush1.msra.mxu0 0.0
        %1032 = vmatprep.subr.mxu0 0.0
        %1033 = vmatpush1.msra.mxu0 0.0
        %1034 = vmatprep.subr.mxu0 0.0
        %1035 = vmatpush1.msra.mxu0 0.0
        %1036 = vmatprep.subr.mxu0 0.0
        %1037 = vmatpush1.msra.mxu0 0.0
        %1038 = vmatprep.subr.mxu0 0.0
        %1039 = vmatpush1.msra.mxu0 0.0
        %1040 = vmatprep.subr.mxu0 0.0
        %1041 = vmatpush1.msra.mxu0 0.0
        %1042 = vmatprep.subr.mxu0 0.0
        %1043 = vmatpush1.msra.mxu0 0.0
        %1044 = vmatprep.subr.mxu0 0.0
        %1045 = vmatpush1.msra.mxu0 0.0
        %1046 = vmatprep.subr.mxu0 0.0
        %1047 = vmatpush1.msra.mxu0 0.0
        %1048 = vmatprep.subr.mxu0 0.0
        %1049 = vmatpush1.msra.mxu0 0.0
        %1050 = vmatprep.subr.mxu0 0.0
        %1051 = vmatpush1.msra.mxu0 0.0
        %1052 = vmatprep.subr.mxu0 0.0
        %1053 = vmatpush1.msra.mxu0 0.0
        %1054 = vmatprep.subr.mxu0 0.0
        %1055 = vmatpush1.msra.mxu0 0.0
        %1056 = vmatprep.mubr.f32.mxu0 0.0
        %1057 = vmatmul.mubr.f32.gmra.mrb[0].mxu0 %v879
        %v1058 = vpop.f32.mrb[0].mxu0
        %v1059 = vadd.f32 0.0, %v1058
        %v1060 = vpop.f32.mrb[0].mxu0
        %1061 = vmatprep.mubr.f32.mxu0 0.0
        %1062 = vmatmul.mubr.f32.gmra.mrb[0].mxu0 %v882
        %v1063 = vpop.f32.mrb[0].mxu0
        %v1064 = vadd.f32 0.0, %v1063
        %v1065 = vpop.f32.mrb[0].mxu0
        %1066 = vmatprep.mubr.f32.mxu0 0.0
        %1067 = vmatmul.mubr.f32.gmra.mrb[0].mxu0 %v885
        %v1068 = vpop.f32.mrb[0].mxu0
        %v1069 = vadd.f32 0.0, %v1068
        %v1070 = vpop.f32.mrb[0].mxu0
        %1071 = vmatprep.mubr.f32.mxu0 0.0
        %1072 = vmatmul.mubr.f32.gmra.mrb[0].mxu0 %v888
        %v1073 = vpop.f32.mrb[0].mxu0
        %v1074 = vadd.f32 0.0, %v1073
        %v1075 = vpop.f32.mrb[0].mxu0
        %1076 = vdwg.mxu0
        %v1077 = vadd.f32 %v843, %v1059
        %v1078 = vadd.f32 %v848, %v1064
        %v1079 = vadd.f32 %v853, %v1069
        %v1080 = vadd.f32 %v858, %v1074
        %v1081 = vld [vmem:[%s437 + $0x3] sm:$0xff]
        %v1082 = vld [vmem:[%s437 + $0xb] sm:$0xff]
        %v1083 = vld [vmem:[%s437 + $0x13] sm:$0xff]
        %v1084 = vld [vmem:[%s437 + $0x1b] sm:$0xf]
        %s1085 = scalar_lea.vmem %s1, 288
        %v1086 = vld [vmem:[%s1085] sm:$0xff]
        %v1087 = vld [vmem:[%s1085 + $0x8] sm:$0xff]
        %v1088 = vld [vmem:[%s1085 + $0x10] sm:$0xff]
        %v1089 = vld [vmem:[%s1085 + $0x18] sm:$0xff]
        %v1090 = vld [vmem:[%s1085 + $0x20] sm:$0xff]
        %v1091 = vld [vmem:[%s1085 + $0x28] sm:$0xff]
        %v1092 = vld [vmem:[%s1085 + $0x30] sm:$0xff]
        %v1093 = vld [vmem:[%s1085 + $0x38] sm:$0xff]
        %v1094 = vld [vmem:[%s1085 + $0x40] sm:$0xff]
        %v1095 = vld [vmem:[%s1085 + $0x48] sm:$0xff]
        %v1096 = vld [vmem:[%s1085 + $0x50] sm:$0xff]
        %v1097 = vld [vmem:[%s1085 + $0x58] sm:$0xff]
        %v1099 = vsel %vm483, %v1081, 0
        %v1102 = vsel %vm483, %v1082, 0
        %v1105 = vsel %vm483, %v1083, 0
        %v1108 = vsel %vm483, %v1084, 0
        %1110 = vmatprep.subr.mxu0 0.0
        %1111 = vmatpush1.msra.mxu0 %v1086
        %1112 = vmatprep.subr.mxu0 0.0
        %1113 = vmatpush1.msra.mxu0 %v1087
        %1114 = vmatprep.subr.mxu0 0.0
        %1115 = vmatpush1.msra.mxu0 %v1088
        %1116 = vmatprep.subr.mxu0 0.0
        %1117 = vmatpush1.msra.mxu0 %v1089
        %1118 = vmatprep.subr.mxu0 0.0
        %1119 = vmatpush1.msra.mxu0 %v1090
        %1120 = vmatprep.subr.mxu0 0.0
        %1121 = vmatpush1.msra.mxu0 %v1091
        %1122 = vmatprep.subr.mxu0 0.0
        %1123 = vmatpush1.msra.mxu0 %v1092
        %1124 = vmatprep.subr.mxu0 0.0
        %1125 = vmatpush1.msra.mxu0 %v1093
        %1126 = vmatprep.subr.mxu0 0.0
        %1127 = vmatpush1.msra.mxu0 %v1094
        %1128 = vmatprep.subr.mxu0 0.0
        %1129 = vmatpush1.msra.mxu0 %v1095
        %1130 = vmatprep.subr.mxu0 0.0
        %1131 = vmatpush1.msra.mxu0 %v1096
        %1132 = vmatprep.subr.mxu0 0.0
        %1133 = vmatpush1.msra.mxu0 %v1097
        %1134 = vmatprep.subr.mxu0 0.0
        %1135 = vmatpush1.msra.mxu0 0.0
        %1136 = vmatprep.subr.mxu0 0.0
        %1137 = vmatpush1.msra.mxu0 0.0
        %1138 = vmatprep.subr.mxu0 0.0
        %1139 = vmatpush1.msra.mxu0 0.0
        %1140 = vmatprep.subr.mxu0 0.0
        %1141 = vmatpush1.msra.mxu0 0.0
        %1142 = vmatprep.subr.mxu0 0.0
        %1143 = vmatpush1.msra.mxu0 0.0
        %1144 = vmatprep.subr.mxu0 0.0
        %1145 = vmatpush1.msra.mxu0 0.0
        %1146 = vmatprep.subr.mxu0 0.0
        %1147 = vmatpush1.msra.mxu0 0.0
        %1148 = vmatprep.subr.mxu0 0.0
        %1149 = vmatpush1.msra.mxu0 0.0
        %1150 = vmatprep.subr.mxu0 0.0
        %1151 = vmatpush1.msra.mxu0 0.0
        %1152 = vmatprep.subr.mxu0 0.0
        %1153 = vmatpush1.msra.mxu0 0.0
        %1154 = vmatprep.subr.mxu0 0.0
        %1155 = vmatpush1.msra.mxu0 0.0
        %1156 = vmatprep.subr.mxu0 0.0
        %1157 = vmatpush1.msra.mxu0 0.0
        %1158 = vmatprep.subr.mxu0 0.0
        %1159 = vmatpush1.msra.mxu0 0.0
        %1160 = vmatprep.subr.mxu0 0.0
        %1161 = vmatpush1.msra.mxu0 0.0
        %1162 = vmatprep.subr.mxu0 0.0
        %1163 = vmatpush1.msra.mxu0 0.0
        %1164 = vmatprep.subr.mxu0 0.0
        %1165 = vmatpush1.msra.mxu0 0.0
        %1166 = vmatprep.subr.mxu0 0.0
        %1167 = vmatpush1.msra.mxu0 0.0
        %1168 = vmatprep.subr.mxu0 0.0
        %1169 = vmatpush1.msra.mxu0 0.0
        %1170 = vmatprep.subr.mxu0 0.0
        %1171 = vmatpush1.msra.mxu0 0.0
        %1172 = vmatprep.subr.mxu0 0.0
        %1173 = vmatpush1.msra.mxu0 0.0
        %1174 = vmatprep.mubr.f32.mxu0 0.0
        %1175 = vmatmul.mubr.f32.gmra.mrb[0].mxu0 %v1099
        %v1176 = vpop.f32.mrb[0].mxu0
        %v1177 = vadd.f32 0.0, %v1176
        %v1178 = vpop.f32.mrb[0].mxu0
        %1179 = vmatprep.mubr.f32.mxu0 0.0
        %1180 = vmatmul.mubr.f32.gmra.mrb[0].mxu0 %v1102
        %v1181 = vpop.f32.mrb[0].mxu0
        %v1182 = vadd.f32 0.0, %v1181
        %v1183 = vpop.f32.mrb[0].mxu0
        %1184 = vmatprep.mubr.f32.mxu0 0.0
        %1185 = vmatmul.mubr.f32.gmra.mrb[0].mxu0 %v1105
        %v1186 = vpop.f32.mrb[0].mxu0
        %v1187 = vadd.f32 0.0, %v1186
        %v1188 = vpop.f32.mrb[0].mxu0
        %1189 = vmatprep.mubr.f32.mxu0 0.0
        %1190 = vmatmul.mubr.f32.gmra.mrb[0].mxu0 %v1108
        %v1191 = vpop.f32.mrb[0].mxu0
        %v1192 = vadd.f32 0.0, %v1191
        %v1193 = vpop.f32.mrb[0].mxu0
        %1194 = vdwg.mxu0
        %v1195 = vadd.f32 %v975, %v1177
        %v1196 = vadd.f32 %v976, %v1182
        %v1197 = vadd.f32 %v977, %v1187
        %v1198 = vadd.f32 %v978, %v1192
        %s1199 = scalar_lea.vmem %s2, 288
        %v1200 = vld [vmem:[%s1199] sm:$0xff]
        %v1201 = vld [vmem:[%s1199 + $0x8] sm:$0xff]
        %v1202 = vld [vmem:[%s1199 + $0x10] sm:$0xff]
        %v1203 = vld [vmem:[%s1199 + $0x18] sm:$0xff]
        %v1204 = vld [vmem:[%s1199 + $0x20] sm:$0xff]
        %v1205 = vld [vmem:[%s1199 + $0x28] sm:$0xff]
        %v1206 = vld [vmem:[%s1199 + $0x30] sm:$0xff]
        %v1207 = vld [vmem:[%s1199 + $0x38] sm:$0xff]
        %v1208 = vld [vmem:[%s1199 + $0x40] sm:$0xff]
        %v1209 = vld [vmem:[%s1199 + $0x48] sm:$0xff]
        %v1210 = vld [vmem:[%s1199 + $0x50] sm:$0xff]
        %v1211 = vld [vmem:[%s1199 + $0x58] sm:$0xff]
        %1212 = vmatprep.subr.mxu0 0.0
        %1213 = vmatpush1.msra.mxu0 %v1200
        %1214 = vmatprep.subr.mxu0 0.0
        %1215 = vmatpush1.msra.mxu0 %v1201
        %1216 = vmatprep.subr.mxu0 0.0
        %1217 = vmatpush1.msra.mxu0 %v1202
        %1218 = vmatprep.subr.mxu0 0.0
        %1219 = vmatpush1.msra.mxu0 %v1203
        %1220 = vmatprep.subr.mxu0 0.0
        %1221 = vmatpush1.msra.mxu0 %v1204
        %1222 = vmatprep.subr.mxu0 0.0
        %1223 = vmatpush1.msra.mxu0 %v1205
        %1224 = vmatprep.subr.mxu0 0.0
        %1225 = vmatpush1.msra.mxu0 %v1206
        %1226 = vmatprep.subr.mxu0 0.0
        %1227 = vmatpush1.msra.mxu0 %v1207
        %1228 = vmatprep.subr.mxu0 0.0
        %1229 = vmatpush1.msra.mxu0 %v1208
        %1230 = vmatprep.subr.mxu0 0.0
        %1231 = vmatpush1.msra.mxu0 %v1209
        %1232 = vmatprep.subr.mxu0 0.0
        %1233 = vmatpush1.msra.mxu0 %v1210
        %1234 = vmatprep.subr.mxu0 0.0
        %1235 = vmatpush1.msra.mxu0 %v1211
        %1236 = vmatprep.subr.mxu0 0.0
        %1237 = vmatpush1.msra.mxu0 0.0
        %1238 = vmatprep.subr.mxu0 0.0
        %1239 = vmatpush1.msra.mxu0 0.0
        %1240 = vmatprep.subr.mxu0 0.0
        %1241 = vmatpush1.msra.mxu0 0.0
        %1242 = vmatprep.subr.mxu0 0.0
        %1243 = vmatpush1.msra.mxu0 0.0
        %1244 = vmatprep.subr.mxu0 0.0
        %1245 = vmatpush1.msra.mxu0 0.0
        %1246 = vmatprep.subr.mxu0 0.0
        %1247 = vmatpush1.msra.mxu0 0.0
        %1248 = vmatprep.subr.mxu0 0.0
        %1249 = vmatpush1.msra.mxu0 0.0
        %1250 = vmatprep.subr.mxu0 0.0
        %1251 = vmatpush1.msra.mxu0 0.0
        %1252 = vmatprep.subr.mxu0 0.0
        %1253 = vmatpush1.msra.mxu0 0.0
        %1254 = vmatprep.subr.mxu0 0.0
        %1255 = vmatpush1.msra.mxu0 0.0
        %1256 = vmatprep.subr.mxu0 0.0
        %1257 = vmatpush1.msra.mxu0 0.0
        %1258 = vmatprep.subr.mxu0 0.0
        %1259 = vmatpush1.msra.mxu0 0.0
        %1260 = vmatprep.subr.mxu0 0.0
        %1261 = vmatpush1.msra.mxu0 0.0
        %1262 = vmatprep.subr.mxu0 0.0
        %1263 = vmatpush1.msra.mxu0 0.0
        %1264 = vmatprep.subr.mxu0 0.0
        %1265 = vmatpush1.msra.mxu0 0.0
        %1266 = vmatprep.subr.mxu0 0.0
        %1267 = vmatpush1.msra.mxu0 0.0
        %1268 = vmatprep.subr.mxu0 0.0
        %1269 = vmatpush1.msra.mxu0 0.0
        %1270 = vmatprep.subr.mxu0 0.0
        %1271 = vmatpush1.msra.mxu0 0.0
        %1272 = vmatprep.subr.mxu0 0.0
        %1273 = vmatpush1.msra.mxu0 0.0
        %1274 = vmatprep.subr.mxu0 0.0
        %1275 = vmatpush1.msra.mxu0 0.0
        %1276 = vmatprep.mubr.f32.mxu0 0.0
        %1277 = vmatmul.mubr.f32.gmra.mrb[0].mxu0 %v1099
        %v1278 = vpop.f32.mrb[0].mxu0
        %v1279 = vadd.f32 0.0, %v1278
        %v1280 = vpop.f32.mrb[0].mxu0
        %1281 = vmatprep.mubr.f32.mxu0 0.0
        %1282 = vmatmul.mubr.f32.gmra.mrb[0].mxu0 %v1102
        %v1283 = vpop.f32.mrb[0].mxu0
        %v1284 = vadd.f32 0.0, %v1283
        %v1285 = vpop.f32.mrb[0].mxu0
        %1286 = vmatprep.mubr.f32.mxu0 0.0
        %1287 = vmatmul.mubr.f32.gmra.mrb[0].mxu0 %v1105
        %v1288 = vpop.f32.mrb[0].mxu0
        %v1289 = vadd.f32 0.0, %v1288
        %v1290 = vpop.f32.mrb[0].mxu0
        %1291 = vmatprep.mubr.f32.mxu0 0.0
        %1292 = vmatmul.mubr.f32.gmra.mrb[0].mxu0 %v1108
        %v1293 = vpop.f32.mrb[0].mxu0
        %v1294 = vadd.f32 0.0, %v1293
        %v1295 = vpop.f32.mrb[0].mxu0
        %1296 = vdwg.mxu0
        %v1297 = vadd.f32 %v1077, %v1279
        %v1298 = vadd.f32 %v1078, %v1284
        %v1299 = vadd.f32 %v1079, %v1289
        %v1300 = vadd.f32 %v1080, %v1294
        %v1301 = vld [vmem:[%s437 + $0x4] sm:$0xff]
        %v1302 = vld [vmem:[%s437 + $0xc] sm:$0xff]
        %v1303 = vld [vmem:[%s437 + $0x14] sm:$0xff]
        %v1304 = vld [vmem:[%s437 + $0x1c] sm:$0xf]
        %s1305 = scalar_lea.vmem %s1, 384
        %v1306 = vld [vmem:[%s1305] sm:$0xff]
        %v1307 = vld [vmem:[%s1305 + $0x8] sm:$0xff]
        %v1308 = vld [vmem:[%s1305 + $0x10] sm:$0xff]
        %v1309 = vld [vmem:[%s1305 + $0x18] sm:$0xff]
        %v1310 = vld [vmem:[%s1305 + $0x20] sm:$0xff]
        %v1311 = vld [vmem:[%s1305 + $0x28] sm:$0xff]
        %v1312 = vld [vmem:[%s1305 + $0x30] sm:$0xff]
        %v1313 = vld [vmem:[%s1305 + $0x38] sm:$0xff]
        %v1314 = vld [vmem:[%s1305 + $0x40] sm:$0xff]
        %v1315 = vld [vmem:[%s1305 + $0x48] sm:$0xff]
        %v1316 = vld [vmem:[%s1305 + $0x50] sm:$0xff]
        %v1317 = vld [vmem:[%s1305 + $0x58] sm:$0xff]
        %v1319 = vsel %vm483, %v1301, 0
        %v1322 = vsel %vm483, %v1302, 0
        %v1325 = vsel %vm483, %v1303, 0
        %v1328 = vsel %vm483, %v1304, 0
        %1330 = vmatprep.subr.mxu0 0.0
        %1331 = vmatpush1.msra.mxu0 %v1306
        %1332 = vmatprep.subr.mxu0 0.0
        %1333 = vmatpush1.msra.mxu0 %v1307
        %1334 = vmatprep.subr.mxu0 0.0
        %1335 = vmatpush1.msra.mxu0 %v1308
        %1336 = vmatprep.subr.mxu0 0.0
        %1337 = vmatpush1.msra.mxu0 %v1309
        %1338 = vmatprep.subr.mxu0 0.0
        %1339 = vmatpush1.msra.mxu0 %v1310
        %1340 = vmatprep.subr.mxu0 0.0
        %1341 = vmatpush1.msra.mxu0 %v1311
        %1342 = vmatprep.subr.mxu0 0.0
        %1343 = vmatpush1.msra.mxu0 %v1312
        %1344 = vmatprep.subr.mxu0 0.0
        %1345 = vmatpush1.msra.mxu0 %v1313
        %1346 = vmatprep.subr.mxu0 0.0
        %1347 = vmatpush1.msra.mxu0 %v1314
        %1348 = vmatprep.subr.mxu0 0.0
        %1349 = vmatpush1.msra.mxu0 %v1315
        %1350 = vmatprep.subr.mxu0 0.0
        %1351 = vmatpush1.msra.mxu0 %v1316
        %1352 = vmatprep.subr.mxu0 0.0
        %1353 = vmatpush1.msra.mxu0 %v1317
        %1354 = vmatprep.subr.mxu0 0.0
        %1355 = vmatpush1.msra.mxu0 0.0
        %1356 = vmatprep.subr.mxu0 0.0
        %1357 = vmatpush1.msra.mxu0 0.0
        %1358 = vmatprep.subr.mxu0 0.0
        %1359 = vmatpush1.msra.mxu0 0.0
        %1360 = vmatprep.subr.mxu0 0.0
        %1361 = vmatpush1.msra.mxu0 0.0
        %1362 = vmatprep.subr.mxu0 0.0
        %1363 = vmatpush1.msra.mxu0 0.0
        %1364 = vmatprep.subr.mxu0 0.0
        %1365 = vmatpush1.msra.mxu0 0.0
        %1366 = vmatprep.subr.mxu0 0.0
        %1367 = vmatpush1.msra.mxu0 0.0
        %1368 = vmatprep.subr.mxu0 0.0
        %1369 = vmatpush1.msra.mxu0 0.0
        %1370 = vmatprep.subr.mxu0 0.0
        %1371 = vmatpush1.msra.mxu0 0.0
        %1372 = vmatprep.subr.mxu0 0.0
        %1373 = vmatpush1.msra.mxu0 0.0
        %1374 = vmatprep.subr.mxu0 0.0
        %1375 = vmatpush1.msra.mxu0 0.0
        %1376 = vmatprep.subr.mxu0 0.0
        %1377 = vmatpush1.msra.mxu0 0.0
        %1378 = vmatprep.subr.mxu0 0.0
        %1379 = vmatpush1.msra.mxu0 0.0
        %1380 = vmatprep.subr.mxu0 0.0
        %1381 = vmatpush1.msra.mxu0 0.0
        %1382 = vmatprep.subr.mxu0 0.0
        %1383 = vmatpush1.msra.mxu0 0.0
        %1384 = vmatprep.subr.mxu0 0.0
        %1385 = vmatpush1.msra.mxu0 0.0
        %1386 = vmatprep.subr.mxu0 0.0
        %1387 = vmatpush1.msra.mxu0 0.0
        %1388 = vmatprep.subr.mxu0 0.0
        %1389 = vmatpush1.msra.mxu0 0.0
        %1390 = vmatprep.subr.mxu0 0.0
        %1391 = vmatpush1.msra.mxu0 0.0
        %1392 = vmatprep.subr.mxu0 0.0
        %1393 = vmatpush1.msra.mxu0 0.0
        %1394 = vmatprep.mubr.f32.mxu0 0.0
        %1395 = vmatmul.mubr.f32.gmra.mrb[0].mxu0 %v1319
        %v1396 = vpop.f32.mrb[0].mxu0
        %v1397 = vadd.f32 0.0, %v1396
        %v1398 = vpop.f32.mrb[0].mxu0
        %1399 = vmatprep.mubr.f32.mxu0 0.0
        %1400 = vmatmul.mubr.f32.gmra.mrb[0].mxu0 %v1322
        %v1401 = vpop.f32.mrb[0].mxu0
        %v1402 = vadd.f32 0.0, %v1401
        %v1403 = vpop.f32.mrb[0].mxu0
        %1404 = vmatprep.mubr.f32.mxu0 0.0
        %1405 = vmatmul.mubr.f32.gmra.mrb[0].mxu0 %v1325
        %v1406 = vpop.f32.mrb[0].mxu0
        %v1407 = vadd.f32 0.0, %v1406
        %v1408 = vpop.f32.mrb[0].mxu0
        %1409 = vmatprep.mubr.f32.mxu0 0.0
        %1410 = vmatmul.mubr.f32.gmra.mrb[0].mxu0 %v1328
        %v1411 = vpop.f32.mrb[0].mxu0
        %v1412 = vadd.f32 0.0, %v1411
        %v1413 = vpop.f32.mrb[0].mxu0
        %1414 = vdwg.mxu0
        %v1415 = vadd.f32 %v1195, %v1397
        %v1416 = vadd.f32 %v1196, %v1402
        %v1417 = vadd.f32 %v1197, %v1407
        %v1418 = vadd.f32 %v1198, %v1412
        %s1419 = scalar_lea.vmem %s2, 384
        %v1420 = vld [vmem:[%s1419] sm:$0xff]
        %v1421 = vld [vmem:[%s1419 + $0x8] sm:$0xff]
        %v1422 = vld [vmem:[%s1419 + $0x10] sm:$0xff]
        %v1423 = vld [vmem:[%s1419 + $0x18] sm:$0xff]
        %v1424 = vld [vmem:[%s1419 + $0x20] sm:$0xff]
        %v1425 = vld [vmem:[%s1419 + $0x28] sm:$0xff]
        %v1426 = vld [vmem:[%s1419 + $0x30] sm:$0xff]
        %v1427 = vld [vmem:[%s1419 + $0x38] sm:$0xff]
        %v1428 = vld [vmem:[%s1419 + $0x40] sm:$0xff]
        %v1429 = vld [vmem:[%s1419 + $0x48] sm:$0xff]
        %v1430 = vld [vmem:[%s1419 + $0x50] sm:$0xff]
        %v1431 = vld [vmem:[%s1419 + $0x58] sm:$0xff]
        %1432 = vmatprep.subr.mxu0 0.0
        %1433 = vmatpush1.msra.mxu0 %v1420
        %1434 = vmatprep.subr.mxu0 0.0
        %1435 = vmatpush1.msra.mxu0 %v1421
        %1436 = vmatprep.subr.mxu0 0.0
        %1437 = vmatpush1.msra.mxu0 %v1422
        %1438 = vmatprep.subr.mxu0 0.0
        %1439 = vmatpush1.msra.mxu0 %v1423
        %1440 = vmatprep.subr.mxu0 0.0
        %1441 = vmatpush1.msra.mxu0 %v1424
        %1442 = vmatprep.subr.mxu0 0.0
        %1443 = vmatpush1.msra.mxu0 %v1425
        %1444 = vmatprep.subr.mxu0 0.0
        %1445 = vmatpush1.msra.mxu0 %v1426
        %1446 = vmatprep.subr.mxu0 0.0
        %1447 = vmatpush1.msra.mxu0 %v1427
        %1448 = vmatprep.subr.mxu0 0.0
        %1449 = vmatpush1.msra.mxu0 %v1428
        %1450 = vmatprep.subr.mxu0 0.0
        %1451 = vmatpush1.msra.mxu0 %v1429
        %1452 = vmatprep.subr.mxu0 0.0
        %1453 = vmatpush1.msra.mxu0 %v1430
        %1454 = vmatprep.subr.mxu0 0.0
        %1455 = vmatpush1.msra.mxu0 %v1431
        %1456 = vmatprep.subr.mxu0 0.0
        %1457 = vmatpush1.msra.mxu0 0.0
        %1458 = vmatprep.subr.mxu0 0.0
        %1459 = vmatpush1.msra.mxu0 0.0
        %1460 = vmatprep.subr.mxu0 0.0
        %1461 = vmatpush1.msra.mxu0 0.0
        %1462 = vmatprep.subr.mxu0 0.0
        %1463 = vmatpush1.msra.mxu0 0.0
        %1464 = vmatprep.subr.mxu0 0.0
        %1465 = vmatpush1.msra.mxu0 0.0
        %1466 = vmatprep.subr.mxu0 0.0
        %1467 = vmatpush1.msra.mxu0 0.0
        %1468 = vmatprep.subr.mxu0 0.0
        %1469 = vmatpush1.msra.mxu0 0.0
        %1470 = vmatprep.subr.mxu0 0.0
        %1471 = vmatpush1.msra.mxu0 0.0
        %1472 = vmatprep.subr.mxu0 0.0
        %1473 = vmatpush1.msra.mxu0 0.0
        %1474 = vmatprep.subr.mxu0 0.0
        %1475 = vmatpush1.msra.mxu0 0.0
        %1476 = vmatprep.subr.mxu0 0.0
        %1477 = vmatpush1.msra.mxu0 0.0
        %1478 = vmatprep.subr.mxu0 0.0
        %1479 = vmatpush1.msra.mxu0 0.0
        %1480 = vmatprep.subr.mxu0 0.0
        %1481 = vmatpush1.msra.mxu0 0.0
        %1482 = vmatprep.subr.mxu0 0.0
        %1483 = vmatpush1.msra.mxu0 0.0
        %1484 = vmatprep.subr.mxu0 0.0
        %1485 = vmatpush1.msra.mxu0 0.0
        %1486 = vmatprep.subr.mxu0 0.0
        %1487 = vmatpush1.msra.mxu0 0.0
        %1488 = vmatprep.subr.mxu0 0.0
        %1489 = vmatpush1.msra.mxu0 0.0
        %1490 = vmatprep.subr.mxu0 0.0
        %1491 = vmatpush1.msra.mxu0 0.0
        %1492 = vmatprep.subr.mxu0 0.0
        %1493 = vmatpush1.msra.mxu0 0.0
        %1494 = vmatprep.subr.mxu0 0.0
        %1495 = vmatpush1.msra.mxu0 0.0
        %1496 = vmatprep.mubr.f32.mxu0 0.0
        %1497 = vmatmul.mubr.f32.gmra.mrb[0].mxu0 %v1319
        %v1498 = vpop.f32.mrb[0].mxu0
        %v1499 = vadd.f32 0.0, %v1498
        %v1500 = vpop.f32.mrb[0].mxu0
        %1501 = vmatprep.mubr.f32.mxu0 0.0
        %1502 = vmatmul.mubr.f32.gmra.mrb[0].mxu0 %v1322
        %v1503 = vpop.f32.mrb[0].mxu0
        %v1504 = vadd.f32 0.0, %v1503
        %v1505 = vpop.f32.mrb[0].mxu0
        %1506 = vmatprep.mubr.f32.mxu0 0.0
        %1507 = vmatmul.mubr.f32.gmra.mrb[0].mxu0 %v1325
        %v1508 = vpop.f32.mrb[0].mxu0
        %v1509 = vadd.f32 0.0, %v1508
        %v1510 = vpop.f32.mrb[0].mxu0
        %1511 = vmatprep.mubr.f32.mxu0 0.0
        %1512 = vmatmul.mubr.f32.gmra.mrb[0].mxu0 %v1328
        %v1513 = vpop.f32.mrb[0].mxu0
        %v1514 = vadd.f32 0.0, %v1513
        %v1515 = vpop.f32.mrb[0].mxu0
        %1516 = vdwg.mxu0
        %v1517 = vadd.f32 %v1297, %v1499
        %v1518 = vadd.f32 %v1298, %v1504
        %v1519 = vadd.f32 %v1299, %v1509
        %v1520 = vadd.f32 %v1300, %v1514
        %v1521 = vld [vmem:[%s3] sm:$0x1]
        %v1523 = vlaneseq
        %v1524 = vshrl.u32 %v1523, 7
        %v1525 = vsub.s32 0, %v1524
        %v1526 = vrot.slane %v1521, %v1525
        %v1528 = vadd.f32 %v1415, %v1526
        %v1529 = vadd.f32 %v1416, %v1526
        %v1530 = vadd.f32 %v1417, %v1526
        %v1531 = vadd.f32 %v1418, %v1526
        %v1532 = vmax.f32 %v1528, 0.0
        %v1533 = vmax.f32 %v1529, 0.0
        %v1534 = vmax.f32 %v1530, 0.0
        %v1535 = vmax.f32 %v1531, 0.0
        %v1536 = vadd.f32 %v1517, %v1526
        %v1537 = vadd.f32 %v1518, %v1526
        %v1538 = vadd.f32 %v1519, %v1526
        %v1539 = vadd.f32 %v1520, %v1526
        %v1540 = vmax.f32 %v1536, 0.0
        %v1541 = vmax.f32 %v1537, 0.0
        %v1542 = vmax.f32 %v1538, 0.0
        %v1543 = vmax.f32 %v1539, 0.0
        %v1544 = vmax.f32 %v1532, %v1540
        %v1545 = vmax.f32 %v1533, %v1541
        %v1546 = vmax.f32 %v1534, %v1542
        %v1547 = vmax.f32 %v1535, %v1543
        %v1552 = vcombine.high %v1544, %v1544
        %v1554 = vunpack.c.l.s4 1983009808
        %v1555 = vunpack.c.0.s8 %v1554
        %v1556 = vlaneseq
        %v1557 = vshrl.u32 %v1556, 7
        %v1558 = vsub.s32 %v1555, %v1557
        %v1559 = vrot.slane %v1544, %v1558
        %v1561 = vunpack.c.l.s4 1983009808
        %v1562 = vunpack.c.0.s8 %v1561
        %v1563 = vlaneseq
        %v1564 = vshrl.u32 %v1563, 7
        %v1565 = vsub.s32 %v1562, %v1564
        %v1566 = vrot.slane %v1552, %v1565
        %v1567 = vcombine.high %v1559, %v1559
        %v1568 = vcombine.high %v1566, %v1566
        %v1569 = vcombine.high %v1545, %v1545
        %v1571 = vunpack.c.l.s4 1983009808
        %v1572 = vunpack.c.0.s8 %v1571
        %v1573 = vlaneseq
        %v1574 = vshrl.u32 %v1573, 7
        %v1575 = vsub.s32 %v1572, %v1574
        %v1576 = vrot.slane %v1545, %v1575
        %v1578 = vunpack.c.l.s4 1983009808
        %v1579 = vunpack.c.0.s8 %v1578
        %v1580 = vlaneseq
        %v1581 = vshrl.u32 %v1580, 7
        %v1582 = vsub.s32 %v1579, %v1581
        %v1583 = vrot.slane %v1569, %v1582
        %v1584 = vcombine.high %v1576, %v1576
        %v1585 = vcombine.high %v1583, %v1583
        %v1586 = vcombine.high %v1546, %v1546
        %v1588 = vunpack.c.l.s4 1983009808
        %v1589 = vunpack.c.0.s8 %v1588
        %v1590 = vlaneseq
        %v1591 = vshrl.u32 %v1590, 7
        %v1592 = vsub.s32 %v1589, %v1591
        %v1593 = vrot.slane %v1546, %v1592
        %v1595 = vunpack.c.l.s4 1983009808
        %v1596 = vunpack.c.0.s8 %v1595
        %v1597 = vlaneseq
        %v1598 = vshrl.u32 %v1597, 7
        %v1599 = vsub.s32 %v1596, %v1598
        %v1600 = vrot.slane %v1586, %v1599
        %v1601 = vcombine.high %v1593, %v1593
        %v1602 = vcombine.high %v1600, %v1600
        %v1604 = vunpack.c.l.s4 1983009808
        %v1605 = vunpack.c.0.s8 %v1604
        %v1606 = vlaneseq
        %v1607 = vshrl.u32 %v1606, 7
        %v1608 = vsub.s32 %v1605, %v1607
        %v1609 = vrot.slane %v1547, %v1608
        %v1610 = vcombine.high %v1609, %v1609
        %v1625 = vrot.slane %v1559, 7
        %v1626 = vrot.slane %v1625, 2
        %v1627 = vrot.slane %v1567, 7
        %v1628 = vrot.slane %v1627, 2
        %v1629 = vrot.slane %v1566, 7
        %v1630 = vrot.slane %v1629, 2
        %v1631 = vrot.slane %v1568, 7
        %v1632 = vrot.slane %v1631, 2
        %v1633 = vrot.slane %v1576, 7
        %v1634 = vrot.slane %v1633, 2
        %v1635 = vrot.slane %v1584, 7
        %v1636 = vrot.slane %v1635, 2
        %v1637 = vrot.slane %v1583, 7
        %v1638 = vrot.slane %v1637, 2
        %v1639 = vrot.slane %v1585, 7
        %v1640 = vrot.slane %v1639, 2
        %v1641 = vrot.slane %v1593, 7
        %v1642 = vrot.slane %v1641, 2
        %v1643 = vrot.slane %v1601, 7
        %v1644 = vrot.slane %v1643, 2
        %v1645 = vrot.slane %v1600, 7
        %v1646 = vrot.slane %v1645, 2
        %v1647 = vrot.slane %v1602, 7
        %v1648 = vrot.slane %v1647, 2
        %v1649 = vrot.slane %v1609, 7
        %v1650 = vrot.slane %v1649, 2
        %v1651 = vrot.slane %v1610, 7
        %v1652 = vrot.slane %v1651, 2
        %v1667 = vmax.f32 %v1559, %v1626
        %v1668 = vmax.f32 %v1567, %v1628
        %v1669 = vmax.f32 %v1566, %v1630
        %v1670 = vmax.f32 %v1568, %v1632
        %v1671 = vmax.f32 %v1576, %v1634
        %v1672 = vmax.f32 %v1584, %v1636
        %v1673 = vmax.f32 %v1583, %v1638
        %v1674 = vmax.f32 %v1585, %v1640
        %v1675 = vmax.f32 %v1593, %v1642
        %v1676 = vmax.f32 %v1601, %v1644
        %v1677 = vmax.f32 %v1600, %v1646
        %v1678 = vmax.f32 %v1602, %v1648
        %v1679 = vmax.f32 %v1609, %v1650
        %v1680 = vmax.f32 %v1610, %v1652
        %v1681 = vld [vmem:[%s4] sm:$0xff]
        %v1682 = vld [vmem:[%s4 + $0x8] sm:$0xff]
        %v1683 = vld [vmem:[%s4 + $0x10] sm:$0xff]
        %v1684 = vld [vmem:[%s4 + $0x18] sm:$0xff]
        %v1685 = vld [vmem:[%s4 + $0x20] sm:$0xff]
        %v1686 = vld [vmem:[%s4 + $0x28] sm:$0xff]
        %v1687 = vld [vmem:[%s4 + $0x30] sm:$0xff]
        %v1688 = vld [vmem:[%s4 + $0x38] sm:$0xff]
        %v1689 = vld [vmem:[%s4 + $0x40] sm:$0xff]
        %v1690 = vld [vmem:[%s4 + $0x48] sm:$0xff]
        %v1691 = vld [vmem:[%s4 + $0x50] sm:$0xf]
        %v1692 = vld [vmem:[%s5] sm:$0xff]
        %v1693 = vld [vmem:[%s5 + $0x8] sm:$0xff]
        %v1694 = vld [vmem:[%s5 + $0x10] sm:$0xff]
        %v1695 = vld [vmem:[%s5 + $0x18] sm:$0xff]
        %v1696 = vld [vmem:[%s5 + $0x20] sm:$0xff]
        %v1697 = vld [vmem:[%s5 + $0x28] sm:$0xff]
        %v1698 = vld [vmem:[%s5 + $0x30] sm:$0xff]
        %v1699 = vld [vmem:[%s5 + $0x38] sm:$0xff]
        %v1700 = vld [vmem:[%s5 + $0x40] sm:$0xff]
        %v1701 = vld [vmem:[%s5 + $0x48] sm:$0xff]
        %v1702 = vld [vmem:[%s5 + $0x50] sm:$0xf]
        %s1703 = scalar_lea.vmem %s4, 88
        %v1704 = vld [vmem:[%s1703] sm:$0xff]
        %v1705 = vld [vmem:[%s1703 + $0x8] sm:$0xff]
        %v1706 = vld [vmem:[%s1703 + $0x10] sm:$0xff]
        %v1707 = vld [vmem:[%s1703 + $0x18] sm:$0xff]
        %v1708 = vld [vmem:[%s1703 + $0x20] sm:$0xff]
        %v1709 = vld [vmem:[%s1703 + $0x28] sm:$0xff]
        %v1710 = vld [vmem:[%s1703 + $0x30] sm:$0xff]
        %v1711 = vld [vmem:[%s1703 + $0x38] sm:$0xff]
        %v1712 = vld [vmem:[%s1703 + $0x40] sm:$0xff]
        %v1713 = vld [vmem:[%s1703 + $0x48] sm:$0xff]
        %v1714 = vld [vmem:[%s1703 + $0x50] sm:$0xf]
        %v1725 = vlaneseq
        %v1726 = vshrl.u32 %v1725, 7
        %v1727 = vsub.s32 0, %v1726
        %v1728 = vrot.slane %v1668, %v1727
        %v1729 = vlaneseq
        %v1730 = vshrl.u32 %v1729, 7
        %v1731 = vsub.s32 0, %v1730
        %v1732 = vrot.slane %v1669, %v1731
        %v1733 = vlaneseq
        %v1734 = vshrl.u32 %v1733, 7
        %v1735 = vsub.s32 0, %v1734
        %v1736 = vrot.slane %v1670, %v1735
        %v1737 = vlaneseq
        %v1738 = vshrl.u32 %v1737, 7
        %v1739 = vsub.s32 0, %v1738
        %v1740 = vrot.slane %v1671, %v1739
        %v1741 = vlaneseq
        %v1742 = vshrl.u32 %v1741, 7
        %v1743 = vsub.s32 0, %v1742
        %v1744 = vrot.slane %v1672, %v1743
        %v1745 = vlaneseq
        %v1746 = vshrl.u32 %v1745, 7
        %v1747 = vsub.s32 0, %v1746
        %v1748 = vrot.slane %v1673, %v1747
        %v1749 = vlaneseq
        %v1750 = vshrl.u32 %v1749, 7
        %v1751 = vsub.s32 0, %v1750
        %v1752 = vrot.slane %v1674, %v1751
        %v1753 = vlaneseq
        %v1754 = vshrl.u32 %v1753, 7
        %v1755 = vsub.s32 0, %v1754
        %v1756 = vrot.slane %v1675, %v1755
        %v1757 = vlaneseq
        %v1758 = vshrl.u32 %v1757, 7
        %v1759 = vsub.s32 0, %v1758
        %v1760 = vrot.slane %v1676, %v1759
        %v1761 = vlaneseq
        %v1762 = vshrl.u32 %v1761, 7
        %v1763 = vsub.s32 0, %v1762
        %v1764 = vrot.slane %v1677, %v1763
        %vm1765 = vcmask 1041409
        %v1766 = vsel %vm1765, %v1732, %v1728
        %vm1767 = vcmask 1042434
        %v1768 = vsel %vm1767, %v1736, %v1766
        %vm1769 = vcmask 1043459
        %v1770 = vsel %vm1769, %v1740, %v1768
        %vm1771 = vcmask 1044484
        %v1772 = vsel %vm1771, %v1744, %v1770
        %vm1773 = vcmask 1045509
        %v1774 = vsel %vm1773, %v1748, %v1772
        %vm1775 = vcmask 1046534
        %v1776 = vsel %vm1775, %v1752, %v1774
        %vm1777 = vcmask 1047559
        %v1778 = vsel %vm1777, %v1756, %v1776
        %v1779 = vsel %vm1765, %v1764, %v1760
        %vm1780 = vcmask 687104
        %v1781 = vsel %vm1780, %v1778, 0
        %v1783 = vsel %vm1780, %v1779, 0
        %vm1785 = vcmask 1043456
        %v1787 = vsel %vm1785, %v1714, 0
        %1789 = vmatprep.subr.mxu0 0.0
        %1790 = vmatpush1.msra.mxu0 %v1704
        %1791 = vmatprep.subr.mxu0 0.0
        %1792 = vmatpush1.msra.mxu0 %v1705
        %1793 = vmatprep.subr.mxu0 0.0
        %1794 = vmatpush1.msra.mxu0 %v1706
        %1795 = vmatprep.subr.mxu0 0.0
        %1796 = vmatpush1.msra.mxu0 %v1707
        %1797 = vmatprep.subr.mxu0 0.0
        %1798 = vmatpush1.msra.mxu0 %v1708
        %1799 = vmatprep.subr.mxu0 0.0
        %1800 = vmatpush1.msra.mxu0 %v1709
        %1801 = vmatprep.subr.mxu0 0.0
        %1802 = vmatpush1.msra.mxu0 %v1710
        %1803 = vmatprep.subr.mxu0 0.0
        %1804 = vmatpush1.msra.mxu0 %v1711
        %1805 = vmatprep.subr.mxu0 0.0
        %1806 = vmatpush1.msra.mxu0 %v1712
        %1807 = vmatprep.subr.mxu0 0.0
        %1808 = vmatpush1.msra.mxu0 %v1713
        %1809 = vmatprep.subr.mxu0 0.0
        %1810 = vmatpush1.msra.mxu0 %v1787
        %1811 = vmatprep.subr.mxu0 0.0
        %1812 = vmatpush1.msra.mxu0 0.0
        %1813 = vmatprep.subr.mxu0 0.0
        %1814 = vmatpush1.msra.mxu0 0.0
        %1815 = vmatprep.subr.mxu0 0.0
        %1816 = vmatpush1.msra.mxu0 0.0
        %1817 = vmatprep.subr.mxu0 0.0
        %1818 = vmatpush1.msra.mxu0 0.0
        %1819 = vmatprep.subr.mxu0 0.0
        %1820 = vmatpush1.msra.mxu0 0.0
        %1821 = vmatprep.subr.mxu0 0.0
        %1822 = vmatpush1.msra.mxu0 0.0
        %1823 = vmatprep.subr.mxu0 0.0
        %1824 = vmatpush1.msra.mxu0 0.0
        %1825 = vmatprep.subr.mxu0 0.0
        %1826 = vmatpush1.msra.mxu0 0.0
        %1827 = vmatprep.subr.mxu0 0.0
        %1828 = vmatpush1.msra.mxu0 0.0
        %1829 = vmatprep.subr.mxu0 0.0
        %1830 = vmatpush1.msra.mxu0 0.0
        %1831 = vmatprep.subr.mxu0 0.0
        %1832 = vmatpush1.msra.mxu0 0.0
        %1833 = vmatprep.subr.mxu0 0.0
        %1834 = vmatpush1.msra.mxu0 0.0
        %1835 = vmatprep.subr.mxu0 0.0
        %1836 = vmatpush1.msra.mxu0 0.0
        %1837 = vmatprep.subr.mxu0 0.0
        %1838 = vmatpush1.msra.mxu0 0.0
        %1839 = vmatprep.subr.mxu0 0.0
        %1840 = vmatpush1.msra.mxu0 0.0
        %1841 = vmatprep.subr.mxu0 0.0
        %1842 = vmatpush1.msra.mxu0 0.0
        %1843 = vmatprep.subr.mxu0 0.0
        %1844 = vmatpush1.msra.mxu0 0.0
        %1845 = vmatprep.subr.mxu0 0.0
        %1846 = vmatpush1.msra.mxu0 0.0
        %1847 = vmatprep.subr.mxu0 0.0
        %1848 = vmatpush1.msra.mxu0 0.0
        %1849 = vmatprep.subr.mxu0 0.0
        %1850 = vmatpush1.msra.mxu0 0.0
        %1851 = vmatprep.subr.mxu0 0.0
        %1852 = vmatpush1.msra.mxu0 0.0
        %1853 = vmatprep.mubr.f32.mxu0 0.0
        %1854 = vmatmul.mubr.f32.gmra.mrb[0].mxu0 %v1781
        %v1855 = vpop.f32.mrb[0].mxu0
        %v1856 = vadd.f32 0.0, %v1855
        %v1857 = vpop.f32.mrb[0].mxu0
        %1858 = vmatprep.mubr.f32.mxu0 0.0
        %1859 = vmatmul.mubr.f32.gmra.mrb[0].mxu0 %v1783
        %v1860 = vpop.f32.mrb[0].mxu0
        %v1861 = vadd.f32 0.0, %v1860
        %v1862 = vpop.f32.mrb[0].mxu0
        %1863 = vdwg.mxu0
        %v1865 = vlaneseq
        %v1866 = vshrl.u32 %v1865, 7
        %v1867 = vsub.s32 0, %v1866
        %v1868 = vrot.slane %v1667, %v1867
        %v1869 = vsel %vm1765, %v1728, %v1868
        %v1870 = vsel %vm1767, %v1732, %v1869
        %v1871 = vsel %vm1769, %v1736, %v1870
        %v1872 = vsel %vm1771, %v1740, %v1871
        %v1873 = vsel %vm1773, %v1744, %v1872
        %v1874 = vsel %vm1775, %v1748, %v1873
        %v1875 = vsel %vm1777, %v1752, %v1874
        %v1876 = vsel %vm1765, %v1760, %v1756
        %v1877 = vsel %vm1780, %v1875, 0
        %v1879 = vsel %vm1780, %v1876, 0
        %v1882 = vsel %vm1785, %v1691, 0
        %1884 = vmatprep.subr.mxu0 0.0
        %1885 = vmatpush1.msra.mxu0 %v1681
        %1886 = vmatprep.subr.mxu0 0.0
        %1887 = vmatpush1.msra.mxu0 %v1682
        %1888 = vmatprep.subr.mxu0 0.0
        %1889 = vmatpush1.msra.mxu0 %v1683
        %1890 = vmatprep.subr.mxu0 0.0
        %1891 = vmatpush1.msra.mxu0 %v1684
        %1892 = vmatprep.subr.mxu0 0.0
        %1893 = vmatpush1.msra.mxu0 %v1685
        %1894 = vmatprep.subr.mxu0 0.0
        %1895 = vmatpush1.msra.mxu0 %v1686
        %1896 = vmatprep.subr.mxu0 0.0
        %1897 = vmatpush1.msra.mxu0 %v1687
        %1898 = vmatprep.subr.mxu0 0.0
        %1899 = vmatpush1.msra.mxu0 %v1688
        %1900 = vmatprep.subr.mxu0 0.0
        %1901 = vmatpush1.msra.mxu0 %v1689
        %1902 = vmatprep.subr.mxu0 0.0
        %1903 = vmatpush1.msra.mxu0 %v1690
        %1904 = vmatprep.subr.mxu0 0.0
        %1905 = vmatpush1.msra.mxu0 %v1882
        %1906 = vmatprep.subr.mxu0 0.0
        %1907 = vmatpush1.msra.mxu0 0.0
        %1908 = vmatprep.subr.mxu0 0.0
        %1909 = vmatpush1.msra.mxu0 0.0
        %1910 = vmatprep.subr.mxu0 0.0
        %1911 = vmatpush1.msra.mxu0 0.0
        %1912 = vmatprep.subr.mxu0 0.0
        %1913 = vmatpush1.msra.mxu0 0.0
        %1914 = vmatprep.subr.mxu0 0.0
        %1915 = vmatpush1.msra.mxu0 0.0
        %1916 = vmatprep.subr.mxu0 0.0
        %1917 = vmatpush1.msra.mxu0 0.0
        %1918 = vmatprep.subr.mxu0 0.0
        %1919 = vmatpush1.msra.mxu0 0.0
        %1920 = vmatprep.subr.mxu0 0.0
        %1921 = vmatpush1.msra.mxu0 0.0
        %1922 = vmatprep.subr.mxu0 0.0
        %1923 = vmatpush1.msra.mxu0 0.0
        %1924 = vmatprep.subr.mxu0 0.0
        %1925 = vmatpush1.msra.mxu0 0.0
        %1926 = vmatprep.subr.mxu0 0.0
        %1927 = vmatpush1.msra.mxu0 0.0
        %1928 = vmatprep.subr.mxu0 0.0
        %1929 = vmatpush1.msra.mxu0 0.0
        %1930 = vmatprep.subr.mxu0 0.0
        %1931 = vmatpush1.msra.mxu0 0.0
        %1932 = vmatprep.subr.mxu0 0.0
        %1933 = vmatpush1.msra.mxu0 0.0
        %1934 = vmatprep.subr.mxu0 0.0
        %1935 = vmatpush1.msra.mxu0 0.0
        %1936 = vmatprep.subr.mxu0 0.0
        %1937 = vmatpush1.msra.mxu0 0.0
        %1938 = vmatprep.subr.mxu0 0.0
        %1939 = vmatpush1.msra.mxu0 0.0
        %1940 = vmatprep.subr.mxu0 0.0
        %1941 = vmatpush1.msra.mxu0 0.0
        %1942 = vmatprep.subr.mxu0 0.0
        %1943 = vmatpush1.msra.mxu0 0.0
        %1944 = vmatprep.subr.mxu0 0.0
        %1945 = vmatpush1.msra.mxu0 0.0
        %1946 = vmatprep.subr.mxu0 0.0
        %1947 = vmatpush1.msra.mxu0 0.0
        %1948 = vmatprep.mubr.f32.mxu0 0.0
        %1949 = vmatmul.mubr.f32.gmra.mrb[0].mxu0 %v1877
        %v1950 = vpop.f32.mrb[0].mxu0
        %v1951 = vadd.f32 %v1856, %v1950
        %v1952 = vpop.f32.mrb[0].mxu0
        %1953 = vmatprep.mubr.f32.mxu0 0.0
        %1954 = vmatmul.mubr.f32.gmra.mrb[0].mxu0 %v1879
        %v1955 = vpop.f32.mrb[0].mxu0
        %v1956 = vadd.f32 %v1861, %v1955
        %v1957 = vpop.f32.mrb[0].mxu0
        %1958 = vdwg.mxu0
        %s1959 = scalar_lea.vmem %s5, 88
        %v1960 = vld [vmem:[%s1959] sm:$0xff]
        %v1961 = vld [vmem:[%s1959 + $0x8] sm:$0xff]
        %v1962 = vld [vmem:[%s1959 + $0x10] sm:$0xff]
        %v1963 = vld [vmem:[%s1959 + $0x18] sm:$0xff]
        %v1964 = vld [vmem:[%s1959 + $0x20] sm:$0xff]
        %v1965 = vld [vmem:[%s1959 + $0x28] sm:$0xff]
        %v1966 = vld [vmem:[%s1959 + $0x30] sm:$0xff]
        %v1967 = vld [vmem:[%s1959 + $0x38] sm:$0xff]
        %v1968 = vld [vmem:[%s1959 + $0x40] sm:$0xff]
        %v1969 = vld [vmem:[%s1959 + $0x48] sm:$0xff]
        %v1970 = vld [vmem:[%s1959 + $0x50] sm:$0xf]
        %v1972 = vsel %vm1785, %v1970, 0
        %1974 = vmatprep.subr.mxu0 0.0
        %1975 = vmatpush1.msra.mxu0 %v1960
        %1976 = vmatprep.subr.mxu0 0.0
        %1977 = vmatpush1.msra.mxu0 %v1961
        %1978 = vmatprep.subr.mxu0 0.0
        %1979 = vmatpush1.msra.mxu0 %v1962
        %1980 = vmatprep.subr.mxu0 0.0
        %1981 = vmatpush1.msra.mxu0 %v1963
        %1982 = vmatprep.subr.mxu0 0.0
        %1983 = vmatpush1.msra.mxu0 %v1964
        %1984 = vmatprep.subr.mxu0 0.0
        %1985 = vmatpush1.msra.mxu0 %v1965
        %1986 = vmatprep.subr.mxu0 0.0
        %1987 = vmatpush1.msra.mxu0 %v1966
        %1988 = vmatprep.subr.mxu0 0.0
        %1989 = vmatpush1.msra.mxu0 %v1967
        %1990 = vmatprep.subr.mxu0 0.0
        %1991 = vmatpush1.msra.mxu0 %v1968
        %1992 = vmatprep.subr.mxu0 0.0
        %1993 = vmatpush1.msra.mxu0 %v1969
        %1994 = vmatprep.subr.mxu0 0.0
        %1995 = vmatpush1.msra.mxu0 %v1972
        %1996 = vmatprep.subr.mxu0 0.0
        %1997 = vmatpush1.msra.mxu0 0.0
        %1998 = vmatprep.subr.mxu0 0.0
        %1999 = vmatpush1.msra.mxu0 0.0
        %2000 = vmatprep.subr.mxu0 0.0
        %2001 = vmatpush1.msra.mxu0 0.0
        %2002 = vmatprep.subr.mxu0 0.0
        %2003 = vmatpush1.msra.mxu0 0.0
        %2004 = vmatprep.subr.mxu0 0.0
        %2005 = vmatpush1.msra.mxu0 0.0
        %2006 = vmatprep.subr.mxu0 0.0
        %2007 = vmatpush1.msra.mxu0 0.0
        %2008 = vmatprep.subr.mxu0 0.0
        %2009 = vmatpush1.msra.mxu0 0.0
        %2010 = vmatprep.subr.mxu0 0.0
        %2011 = vmatpush1.msra.mxu0 0.0
        %2012 = vmatprep.subr.mxu0 0.0
        %2013 = vmatpush1.msra.mxu0 0.0
        %2014 = vmatprep.subr.mxu0 0.0
        %2015 = vmatpush1.msra.mxu0 0.0
        %2016 = vmatprep.subr.mxu0 0.0
        %2017 = vmatpush1.msra.mxu0 0.0
        %2018 = vmatprep.subr.mxu0 0.0
        %2019 = vmatpush1.msra.mxu0 0.0
        %2020 = vmatprep.subr.mxu0 0.0
        %2021 = vmatpush1.msra.mxu0 0.0
        %2022 = vmatprep.subr.mxu0 0.0
        %2023 = vmatpush1.msra.mxu0 0.0
        %2024 = vmatprep.subr.mxu0 0.0
        %2025 = vmatpush1.msra.mxu0 0.0
        %2026 = vmatprep.subr.mxu0 0.0
        %2027 = vmatpush1.msra.mxu0 0.0
        %2028 = vmatprep.subr.mxu0 0.0
        %2029 = vmatpush1.msra.mxu0 0.0
        %2030 = vmatprep.subr.mxu0 0.0
        %2031 = vmatpush1.msra.mxu0 0.0
        %2032 = vmatprep.subr.mxu0 0.0
        %2033 = vmatpush1.msra.mxu0 0.0
        %2034 = vmatprep.subr.mxu0 0.0
        %2035 = vmatpush1.msra.mxu0 0.0
        %2036 = vmatprep.subr.mxu0 0.0
        %2037 = vmatpush1.msra.mxu0 0.0
        %2038 = vmatprep.mubr.f32.mxu0 0.0
        %2039 = vmatmul.mubr.f32.gmra.mrb[0].mxu0 %v1781
        %v2040 = vpop.f32.mrb[0].mxu0
        %v2041 = vadd.f32 0.0, %v2040
        %v2042 = vpop.f32.mrb[0].mxu0
        %2043 = vmatprep.mubr.f32.mxu0 0.0
        %2044 = vmatmul.mubr.f32.gmra.mrb[0].mxu0 %v1783
        %v2045 = vpop.f32.mrb[0].mxu0
        %v2046 = vadd.f32 0.0, %v2045
        %v2047 = vpop.f32.mrb[0].mxu0
        %2048 = vdwg.mxu0
        %v2050 = vsel %vm1785, %v1702, 0
        %2052 = vmatprep.subr.mxu0 0.0
        %2053 = vmatpush1.msra.mxu0 %v1692
        %2054 = vmatprep.subr.mxu0 0.0
        %2055 = vmatpush1.msra.mxu0 %v1693
        %2056 = vmatprep.subr.mxu0 0.0
        %2057 = vmatpush1.msra.mxu0 %v1694
        %2058 = vmatprep.subr.mxu0 0.0
        %2059 = vmatpush1.msra.mxu0 %v1695
        %2060 = vmatprep.subr.mxu0 0.0
        %2061 = vmatpush1.msra.mxu0 %v1696
        %2062 = vmatprep.subr.mxu0 0.0
        %2063 = vmatpush1.msra.mxu0 %v1697
        %2064 = vmatprep.subr.mxu0 0.0
        %2065 = vmatpush1.msra.mxu0 %v1698
        %2066 = vmatprep.subr.mxu0 0.0
        %2067 = vmatpush1.msra.mxu0 %v1699
        %2068 = vmatprep.subr.mxu0 0.0
        %2069 = vmatpush1.msra.mxu0 %v1700
        %2070 = vmatprep.subr.mxu0 0.0
        %2071 = vmatpush1.msra.mxu0 %v1701
        %2072 = vmatprep.subr.mxu0 0.0
        %2073 = vmatpush1.msra.mxu0 %v2050
        %2074 = vmatprep.subr.mxu0 0.0
        %2075 = vmatpush1.msra.mxu0 0.0
        %2076 = vmatprep.subr.mxu0 0.0
        %2077 = vmatpush1.msra.mxu0 0.0
        %2078 = vmatprep.subr.mxu0 0.0
        %2079 = vmatpush1.msra.mxu0 0.0
        %2080 = vmatprep.subr.mxu0 0.0
        %2081 = vmatpush1.msra.mxu0 0.0
        %2082 = vmatprep.subr.mxu0 0.0
        %2083 = vmatpush1.msra.mxu0 0.0
        %2084 = vmatprep.subr.mxu0 0.0
        %2085 = vmatpush1.msra.mxu0 0.0
        %2086 = vmatprep.subr.mxu0 0.0
        %2087 = vmatpush1.msra.mxu0 0.0
        %2088 = vmatprep.subr.mxu0 0.0
        %2089 = vmatpush1.msra.mxu0 0.0
        %2090 = vmatprep.subr.mxu0 0.0
        %2091 = vmatpush1.msra.mxu0 0.0
        %2092 = vmatprep.subr.mxu0 0.0
        %2093 = vmatpush1.msra.mxu0 0.0
        %2094 = vmatprep.subr.mxu0 0.0
        %2095 = vmatpush1.msra.mxu0 0.0
        %2096 = vmatprep.subr.mxu0 0.0
        %2097 = vmatpush1.msra.mxu0 0.0
        %2098 = vmatprep.subr.mxu0 0.0
        %2099 = vmatpush1.msra.mxu0 0.0
        %2100 = vmatprep.subr.mxu0 0.0
        %2101 = vmatpush1.msra.mxu0 0.0
        %2102 = vmatprep.subr.mxu0 0.0
        %2103 = vmatpush1.msra.mxu0 0.0
        %2104 = vmatprep.subr.mxu0 0.0
        %2105 = vmatpush1.msra.mxu0 0.0
        %2106 = vmatprep.subr.mxu0 0.0
        %2107 = vmatpush1.msra.mxu0 0.0
        %2108 = vmatprep.subr.mxu0 0.0
        %2109 = vmatpush1.msra.mxu0 0.0
        %2110 = vmatprep.subr.mxu0 0.0
        %2111 = vmatpush1.msra.mxu0 0.0
        %2112 = vmatprep.subr.mxu0 0.0
        %2113 = vmatpush1.msra.mxu0 0.0
        %2114 = vmatprep.subr.mxu0 0.0
        %2115 = vmatpush1.msra.mxu0 0.0
        %2116 = vmatprep.mubr.f32.mxu0 0.0
        %2117 = vmatmul.mubr.f32.gmra.mrb[0].mxu0 %v1877
        %v2118 = vpop.f32.mrb[0].mxu0
        %v2119 = vadd.f32 %v2041, %v2118
        %v2120 = vpop.f32.mrb[0].mxu0
        %2121 = vmatprep.mubr.f32.mxu0 0.0
        %2122 = vmatmul.mubr.f32.gmra.mrb[0].mxu0 %v1879
        %v2123 = vpop.f32.mrb[0].mxu0
        %v2124 = vadd.f32 %v2046, %v2123
        %v2125 = vpop.f32.mrb[0].mxu0
        %2126 = vdwg.mxu0
        %s2127 = scalar_lea.vmem %s4, 176
        %v2128 = vld [vmem:[%s2127] sm:$0xff]
        %v2129 = vld [vmem:[%s2127 + $0x8] sm:$0xff]
        %v2130 = vld [vmem:[%s2127 + $0x10] sm:$0xff]
        %v2131 = vld [vmem:[%s2127 + $0x18] sm:$0xff]
        %v2132 = vld [vmem:[%s2127 + $0x20] sm:$0xff]
        %v2133 = vld [vmem:[%s2127 + $0x28] sm:$0xff]
        %v2134 = vld [vmem:[%s2127 + $0x30] sm:$0xff]
        %v2135 = vld [vmem:[%s2127 + $0x38] sm:$0xff]
        %v2136 = vld [vmem:[%s2127 + $0x40] sm:$0xff]
        %v2137 = vld [vmem:[%s2127 + $0x48] sm:$0xff]
        %v2138 = vld [vmem:[%s2127 + $0x50] sm:$0xf]
        %v2140 = vlaneseq
        %v2141 = vshrl.u32 %v2140, 7
        %v2142 = vsub.s32 0, %v2141
        %v2143 = vrot.slane %v1678, %v2142
        %v2144 = vsel %vm1765, %v1736, %v1732
        %v2145 = vsel %vm1767, %v1740, %v2144
        %v2146 = vsel %vm1769, %v1744, %v2145
        %v2147 = vsel %vm1771, %v1748, %v2146
        %v2148 = vsel %vm1773, %v1752, %v2147
        %v2149 = vsel %vm1775, %v1756, %v2148
        %v2150 = vsel %vm1777, %v1760, %v2149
        %v2151 = vsel %vm1765, %v2143, %v1764
        %v2152 = vsel %vm1780, %v2150, 0
        %v2154 = vsel %vm1780, %v2151, 0
        %v2157 = vsel %vm1785, %v2138, 0
        %2159 = vmatprep.subr.mxu0 0.0
        %2160 = vmatpush1.msra.mxu0 %v2128
        %2161 = vmatprep.subr.mxu0 0.0
        %2162 = vmatpush1.msra.mxu0 %v2129
        %2163 = vmatprep.subr.mxu0 0.0
        %2164 = vmatpush1.msra.mxu0 %v2130
        %2165 = vmatprep.subr.mxu0 0.0
        %2166 = vmatpush1.msra.mxu0 %v2131
        %2167 = vmatprep.subr.mxu0 0.0
        %2168 = vmatpush1.msra.mxu0 %v2132
        %2169 = vmatprep.subr.mxu0 0.0
        %2170 = vmatpush1.msra.mxu0 %v2133
        %2171 = vmatprep.subr.mxu0 0.0
        %2172 = vmatpush1.msra.mxu0 %v2134
        %2173 = vmatprep.subr.mxu0 0.0
        %2174 = vmatpush1.msra.mxu0 %v2135
        %2175 = vmatprep.subr.mxu0 0.0
        %2176 = vmatpush1.msra.mxu0 %v2136
        %2177 = vmatprep.subr.mxu0 0.0
        %2178 = vmatpush1.msra.mxu0 %v2137
        %2179 = vmatprep.subr.mxu0 0.0
        %2180 = vmatpush1.msra.mxu0 %v2157
        %2181 = vmatprep.subr.mxu0 0.0
        %2182 = vmatpush1.msra.mxu0 0.0
        %2183 = vmatprep.subr.mxu0 0.0
        %2184 = vmatpush1.msra.mxu0 0.0
        %2185 = vmatprep.subr.mxu0 0.0
        %2186 = vmatpush1.msra.mxu0 0.0
        %2187 = vmatprep.subr.mxu0 0.0
        %2188 = vmatpush1.msra.mxu0 0.0
        %2189 = vmatprep.subr.mxu0 0.0
        %2190 = vmatpush1.msra.mxu0 0.0
        %2191 = vmatprep.subr.mxu0 0.0
        %2192 = vmatpush1.msra.mxu0 0.0
        %2193 = vmatprep.subr.mxu0 0.0
        %2194 = vmatpush1.msra.mxu0 0.0
        %2195 = vmatprep.subr.mxu0 0.0
        %2196 = vmatpush1.msra.mxu0 0.0
        %2197 = vmatprep.subr.mxu0 0.0
        %2198 = vmatpush1.msra.mxu0 0.0
        %2199 = vmatprep.subr.mxu0 0.0
        %2200 = vmatpush1.msra.mxu0 0.0
        %2201 = vmatprep.subr.mxu0 0.0
        %2202 = vmatpush1.msra.mxu0 0.0
        %2203 = vmatprep.subr.mxu0 0.0
        %2204 = vmatpush1.msra.mxu0 0.0
        %2205 = vmatprep.subr.mxu0 0.0
        %2206 = vmatpush1.msra.mxu0 0.0
        %2207 = vmatprep.subr.mxu0 0.0
        %2208 = vmatpush1.msra.mxu0 0.0
        %2209 = vmatprep.subr.mxu0 0.0
        %2210 = vmatpush1.msra.mxu0 0.0
        %2211 = vmatprep.subr.mxu0 0.0
        %2212 = vmatpush1.msra.mxu0 0.0
        %2213 = vmatprep.subr.mxu0 0.0
        %2214 = vmatpush1.msra.mxu0 0.0
        %2215 = vmatprep.subr.mxu0 0.0
        %2216 = vmatpush1.msra.mxu0 0.0
        %2217 = vmatprep.subr.mxu0 0.0
        %2218 = vmatpush1.msra.mxu0 0.0
        %2219 = vmatprep.subr.mxu0 0.0
        %2220 = vmatpush1.msra.mxu0 0.0
        %2221 = vmatprep.subr.mxu0 0.0
        %2222 = vmatpush1.msra.mxu0 0.0
        %2223 = vmatprep.mubr.f32.mxu0 0.0
        %2224 = vmatmul.mubr.f32.gmra.mrb[0].mxu0 %v2152
        %v2225 = vpop.f32.mrb[0].mxu0
        %v2226 = vadd.f32 0.0, %v2225
        %v2227 = vpop.f32.mrb[0].mxu0
        %2228 = vmatprep.mubr.f32.mxu0 0.0
        %2229 = vmatmul.mubr.f32.gmra.mrb[0].mxu0 %v2154
        %v2230 = vpop.f32.mrb[0].mxu0
        %v2231 = vadd.f32 0.0, %v2230
        %v2232 = vpop.f32.mrb[0].mxu0
        %2233 = vdwg.mxu0
        %v2234 = vadd.f32 %v1951, %v2226
        %v2235 = vadd.f32 %v1956, %v2231
        %s2236 = scalar_lea.vmem %s5, 176
        %v2237 = vld [vmem:[%s2236] sm:$0xff]
        %v2238 = vld [vmem:[%s2236 + $0x8] sm:$0xff]
        %v2239 = vld [vmem:[%s2236 + $0x10] sm:$0xff]
        %v2240 = vld [vmem:[%s2236 + $0x18] sm:$0xff]
        %v2241 = vld [vmem:[%s2236 + $0x20] sm:$0xff]
        %v2242 = vld [vmem:[%s2236 + $0x28] sm:$0xff]
        %v2243 = vld [vmem:[%s2236 + $0x30] sm:$0xff]
        %v2244 = vld [vmem:[%s2236 + $0x38] sm:$0xff]
        %v2245 = vld [vmem:[%s2236 + $0x40] sm:$0xff]
        %v2246 = vld [vmem:[%s2236 + $0x48] sm:$0xff]
        %v2247 = vld [vmem:[%s2236 + $0x50] sm:$0xf]
        %v2249 = vsel %vm1785, %v2247, 0
        %2251 = vmatprep.subr.mxu0 0.0
        %2252 = vmatpush1.msra.mxu0 %v2237
        %2253 = vmatprep.subr.mxu0 0.0
        %2254 = vmatpush1.msra.mxu0 %v2238
        %2255 = vmatprep.subr.mxu0 0.0
        %2256 = vmatpush1.msra.mxu0 %v2239
        %2257 = vmatprep.subr.mxu0 0.0
        %2258 = vmatpush1.msra.mxu0 %v2240
        %2259 = vmatprep.subr.mxu0 0.0
        %2260 = vmatpush1.msra.mxu0 %v2241
        %2261 = vmatprep.subr.mxu0 0.0
        %2262 = vmatpush1.msra.mxu0 %v2242
        %2263 = vmatprep.subr.mxu0 0.0
        %2264 = vmatpush1.msra.mxu0 %v2243
        %2265 = vmatprep.subr.mxu0 0.0
        %2266 = vmatpush1.msra.mxu0 %v2244
        %2267 = vmatprep.subr.mxu0 0.0
        %2268 = vmatpush1.msra.mxu0 %v2245
        %2269 = vmatprep.subr.mxu0 0.0
        %2270 = vmatpush1.msra.mxu0 %v2246
        %2271 = vmatprep.subr.mxu0 0.0
        %2272 = vmatpush1.msra.mxu0 %v2249
        %2273 = vmatprep.subr.mxu0 0.0
        %2274 = vmatpush1.msra.mxu0 0.0
        %2275 = vmatprep.subr.mxu0 0.0
        %2276 = vmatpush1.msra.mxu0 0.0
        %2277 = vmatprep.subr.mxu0 0.0
        %2278 = vmatpush1.msra.mxu0 0.0
        %2279 = vmatprep.subr.mxu0 0.0
        %2280 = vmatpush1.msra.mxu0 0.0
        %2281 = vmatprep.subr.mxu0 0.0
        %2282 = vmatpush1.msra.mxu0 0.0
        %2283 = vmatprep.subr.mxu0 0.0
        %2284 = vmatpush1.msra.mxu0 0.0
        %2285 = vmatprep.subr.mxu0 0.0
        %2286 = vmatpush1.msra.mxu0 0.0
        %2287 = vmatprep.subr.mxu0 0.0
        %2288 = vmatpush1.msra.mxu0 0.0
        %2289 = vmatprep.subr.mxu0 0.0
        %2290 = vmatpush1.msra.mxu0 0.0
        %2291 = vmatprep.subr.mxu0 0.0
        %2292 = vmatpush1.msra.mxu0 0.0
        %2293 = vmatprep.subr.mxu0 0.0
        %2294 = vmatpush1.msra.mxu0 0.0
        %2295 = vmatprep.subr.mxu0 0.0
        %2296 = vmatpush1.msra.mxu0 0.0
        %2297 = vmatprep.subr.mxu0 0.0
        %2298 = vmatpush1.msra.mxu0 0.0
        %2299 = vmatprep.subr.mxu0 0.0
        %2300 = vmatpush1.msra.mxu0 0.0
        %2301 = vmatprep.subr.mxu0 0.0
        %2302 = vmatpush1.msra.mxu0 0.0
        %2303 = vmatprep.subr.mxu0 0.0
        %2304 = vmatpush1.msra.mxu0 0.0
        %2305 = vmatprep.subr.mxu0 0.0
        %2306 = vmatpush1.msra.mxu0 0.0
        %2307 = vmatprep.subr.mxu0 0.0
        %2308 = vmatpush1.msra.mxu0 0.0
        %2309 = vmatprep.subr.mxu0 0.0
        %2310 = vmatpush1.msra.mxu0 0.0
        %2311 = vmatprep.subr.mxu0 0.0
        %2312 = vmatpush1.msra.mxu0 0.0
        %2313 = vmatprep.subr.mxu0 0.0
        %2314 = vmatpush1.msra.mxu0 0.0
        %2315 = vmatprep.mubr.f32.mxu0 0.0
        %2316 = vmatmul.mubr.f32.gmra.mrb[0].mxu0 %v2152
        %v2317 = vpop.f32.mrb[0].mxu0
        %v2318 = vadd.f32 0.0, %v2317
        %v2319 = vpop.f32.mrb[0].mxu0
        %2320 = vmatprep.mubr.f32.mxu0 0.0
        %2321 = vmatmul.mubr.f32.gmra.mrb[0].mxu0 %v2154
        %v2322 = vpop.f32.mrb[0].mxu0
        %v2323 = vadd.f32 0.0, %v2322
        %v2324 = vpop.f32.mrb[0].mxu0
        %2325 = vdwg.mxu0
        %v2326 = vadd.f32 %v2119, %v2318
        %v2327 = vadd.f32 %v2124, %v2323
        %s2328 = scalar_lea.vmem %s4, 264
        %v2329 = vld [vmem:[%s2328] sm:$0xff]
        %v2330 = vld [vmem:[%s2328 + $0x8] sm:$0xff]
        %v2331 = vld [vmem:[%s2328 + $0x10] sm:$0xff]
        %v2332 = vld [vmem:[%s2328 + $0x18] sm:$0xff]
        %v2333 = vld [vmem:[%s2328 + $0x20] sm:$0xff]
        %v2334 = vld [vmem:[%s2328 + $0x28] sm:$0xff]
        %v2335 = vld [vmem:[%s2328 + $0x30] sm:$0xff]
        %v2336 = vld [vmem:[%s2328 + $0x38] sm:$0xff]
        %v2337 = vld [vmem:[%s2328 + $0x40] sm:$0xff]
        %v2338 = vld [vmem:[%s2328 + $0x48] sm:$0xff]
        %v2339 = vld [vmem:[%s2328 + $0x50] sm:$0xf]
        %v2341 = vlaneseq
        %v2342 = vshrl.u32 %v2341, 7
        %v2343 = vsub.s32 0, %v2342
        %v2344 = vrot.slane %v1679, %v2343
        %v2345 = vsel %vm1765, %v1740, %v1736
        %v2346 = vsel %vm1767, %v1744, %v2345
        %v2347 = vsel %vm1769, %v1748, %v2346
        %v2348 = vsel %vm1771, %v1752, %v2347
        %v2349 = vsel %vm1773, %v1756, %v2348
        %v2350 = vsel %vm1775, %v1760, %v2349
        %v2351 = vsel %vm1777, %v1764, %v2350
        %v2352 = vsel %vm1765, %v2344, %v2143
        %v2353 = vsel %vm1780, %v2351, 0
        %v2355 = vsel %vm1780, %v2352, 0
        %v2358 = vsel %vm1785, %v2339, 0
        %2360 = vmatprep.subr.mxu0 0.0
        %2361 = vmatpush1.msra.mxu0 %v2329
        %2362 = vmatprep.subr.mxu0 0.0
        %2363 = vmatpush1.msra.mxu0 %v2330
        %2364 = vmatprep.subr.mxu0 0.0
        %2365 = vmatpush1.msra.mxu0 %v2331
        %2366 = vmatprep.subr.mxu0 0.0
        %2367 = vmatpush1.msra.mxu0 %v2332
        %2368 = vmatprep.subr.mxu0 0.0
        %2369 = vmatpush1.msra.mxu0 %v2333
        %2370 = vmatprep.subr.mxu0 0.0
        %2371 = vmatpush1.msra.mxu0 %v2334
        %2372 = vmatprep.subr.mxu0 0.0
        %2373 = vmatpush1.msra.mxu0 %v2335
        %2374 = vmatprep.subr.mxu0 0.0
        %2375 = vmatpush1.msra.mxu0 %v2336
        %2376 = vmatprep.subr.mxu0 0.0
        %2377 = vmatpush1.msra.mxu0 %v2337
        %2378 = vmatprep.subr.mxu0 0.0
        %2379 = vmatpush1.msra.mxu0 %v2338
        %2380 = vmatprep.subr.mxu0 0.0
        %2381 = vmatpush1.msra.mxu0 %v2358
        %2382 = vmatprep.subr.mxu0 0.0
        %2383 = vmatpush1.msra.mxu0 0.0
        %2384 = vmatprep.subr.mxu0 0.0
        %2385 = vmatpush1.msra.mxu0 0.0
        %2386 = vmatprep.subr.mxu0 0.0
        %2387 = vmatpush1.msra.mxu0 0.0
        %2388 = vmatprep.subr.mxu0 0.0
        %2389 = vmatpush1.msra.mxu0 0.0
        %2390 = vmatprep.subr.mxu0 0.0
        %2391 = vmatpush1.msra.mxu0 0.0
        %2392 = vmatprep.subr.mxu0 0.0
        %2393 = vmatpush1.msra.mxu0 0.0
        %2394 = vmatprep.subr.mxu0 0.0
        %2395 = vmatpush1.msra.mxu0 0.0
        %2396 = vmatprep.subr.mxu0 0.0
        %2397 = vmatpush1.msra.mxu0 0.0
        %2398 = vmatprep.subr.mxu0 0.0
        %2399 = vmatpush1.msra.mxu0 0.0
        %2400 = vmatprep.subr.mxu0 0.0
        %2401 = vmatpush1.msra.mxu0 0.0
        %2402 = vmatprep.subr.mxu0 0.0
        %2403 = vmatpush1.msra.mxu0 0.0
        %2404 = vmatprep.subr.mxu0 0.0
        %2405 = vmatpush1.msra.mxu0 0.0
        %2406 = vmatprep.subr.mxu0 0.0
        %2407 = vmatpush1.msra.mxu0 0.0
        %2408 = vmatprep.subr.mxu0 0.0
        %2409 = vmatpush1.msra.mxu0 0.0
        %2410 = vmatprep.subr.mxu0 0.0
        %2411 = vmatpush1.msra.mxu0 0.0
        %2412 = vmatprep.subr.mxu0 0.0
        %2413 = vmatpush1.msra.mxu0 0.0
        %2414 = vmatprep.subr.mxu0 0.0
        %2415 = vmatpush1.msra.mxu0 0.0
        %2416 = vmatprep.subr.mxu0 0.0
        %2417 = vmatpush1.msra.mxu0 0.0
        %2418 = vmatprep.subr.mxu0 0.0
        %2419 = vmatpush1.msra.mxu0 0.0
        %2420 = vmatprep.subr.mxu0 0.0
        %2421 = vmatpush1.msra.mxu0 0.0
        %2422 = vmatprep.subr.mxu0 0.0
        %2423 = vmatpush1.msra.mxu0 0.0
        %2424 = vmatprep.mubr.f32.mxu0 0.0
        %2425 = vmatmul.mubr.f32.gmra.mrb[0].mxu0 %v2353
        %v2426 = vpop.f32.mrb[0].mxu0
        %v2427 = vadd.f32 0.0, %v2426
        %v2428 = vpop.f32.mrb[0].mxu0
        %2429 = vmatprep.mubr.f32.mxu0 0.0
        %2430 = vmatmul.mubr.f32.gmra.mrb[0].mxu0 %v2355
        %v2431 = vpop.f32.mrb[0].mxu0
        %v2432 = vadd.f32 0.0, %v2431
        %v2433 = vpop.f32.mrb[0].mxu0
        %2434 = vdwg.mxu0
        %v2435 = vadd.f32 %v2234, %v2427
        %v2436 = vadd.f32 %v2235, %v2432
        %s2437 = scalar_lea.vmem %s5, 264
        %v2438 = vld [vmem:[%s2437] sm:$0xff]
        %v2439 = vld [vmem:[%s2437 + $0x8] sm:$0xff]
        %v2440 = vld [vmem:[%s2437 + $0x10] sm:$0xff]
        %v2441 = vld [vmem:[%s2437 + $0x18] sm:$0xff]
        %v2442 = vld [vmem:[%s2437 + $0x20] sm:$0xff]
        %v2443 = vld [vmem:[%s2437 + $0x28] sm:$0xff]
        %v2444 = vld [vmem:[%s2437 + $0x30] sm:$0xff]
        %v2445 = vld [vmem:[%s2437 + $0x38] sm:$0xff]
        %v2446 = vld [vmem:[%s2437 + $0x40] sm:$0xff]
        %v2447 = vld [vmem:[%s2437 + $0x48] sm:$0xff]
        %v2448 = vld [vmem:[%s2437 + $0x50] sm:$0xf]
        %v2450 = vsel %vm1785, %v2448, 0
        %2452 = vmatprep.subr.mxu0 0.0
        %2453 = vmatpush1.msra.mxu0 %v2438
        %2454 = vmatprep.subr.mxu0 0.0
        %2455 = vmatpush1.msra.mxu0 %v2439
        %2456 = vmatprep.subr.mxu0 0.0
        %2457 = vmatpush1.msra.mxu0 %v2440
        %2458 = vmatprep.subr.mxu0 0.0
        %2459 = vmatpush1.msra.mxu0 %v2441
        %2460 = vmatprep.subr.mxu0 0.0
        %2461 = vmatpush1.msra.mxu0 %v2442
        %2462 = vmatprep.subr.mxu0 0.0
        %2463 = vmatpush1.msra.mxu0 %v2443
        %2464 = vmatprep.subr.mxu0 0.0
        %2465 = vmatpush1.msra.mxu0 %v2444
        %2466 = vmatprep.subr.mxu0 0.0
        %2467 = vmatpush1.msra.mxu0 %v2445
        %2468 = vmatprep.subr.mxu0 0.0
        %2469 = vmatpush1.msra.mxu0 %v2446
        %2470 = vmatprep.subr.mxu0 0.0
        %2471 = vmatpush1.msra.mxu0 %v2447
        %2472 = vmatprep.subr.mxu0 0.0
        %2473 = vmatpush1.msra.mxu0 %v2450
        %2474 = vmatprep.subr.mxu0 0.0
        %2475 = vmatpush1.msra.mxu0 0.0
        %2476 = vmatprep.subr.mxu0 0.0
        %2477 = vmatpush1.msra.mxu0 0.0
        %2478 = vmatprep.subr.mxu0 0.0
        %2479 = vmatpush1.msra.mxu0 0.0
        %2480 = vmatprep.subr.mxu0 0.0
        %2481 = vmatpush1.msra.mxu0 0.0
        %2482 = vmatprep.subr.mxu0 0.0
        %2483 = vmatpush1.msra.mxu0 0.0
        %2484 = vmatprep.subr.mxu0 0.0
        %2485 = vmatpush1.msra.mxu0 0.0
        %2486 = vmatprep.subr.mxu0 0.0
        %2487 = vmatpush1.msra.mxu0 0.0
        %2488 = vmatprep.subr.mxu0 0.0
        %2489 = vmatpush1.msra.mxu0 0.0
        %2490 = vmatprep.subr.mxu0 0.0
        %2491 = vmatpush1.msra.mxu0 0.0
        %2492 = vmatprep.subr.mxu0 0.0
        %2493 = vmatpush1.msra.mxu0 0.0
        %2494 = vmatprep.subr.mxu0 0.0
        %2495 = vmatpush1.msra.mxu0 0.0
        %2496 = vmatprep.subr.mxu0 0.0
        %2497 = vmatpush1.msra.mxu0 0.0
        %2498 = vmatprep.subr.mxu0 0.0
        %2499 = vmatpush1.msra.mxu0 0.0
        %2500 = vmatprep.subr.mxu0 0.0
        %2501 = vmatpush1.msra.mxu0 0.0
        %2502 = vmatprep.subr.mxu0 0.0
        %2503 = vmatpush1.msra.mxu0 0.0
        %2504 = vmatprep.subr.mxu0 0.0
        %2505 = vmatpush1.msra.mxu0 0.0
        %2506 = vmatprep.subr.mxu0 0.0
        %2507 = vmatpush1.msra.mxu0 0.0
        %2508 = vmatprep.subr.mxu0 0.0
        %2509 = vmatpush1.msra.mxu0 0.0
        %2510 = vmatprep.subr.mxu0 0.0
        %2511 = vmatpush1.msra.mxu0 0.0
        %2512 = vmatprep.subr.mxu0 0.0
        %2513 = vmatpush1.msra.mxu0 0.0
        %2514 = vmatprep.subr.mxu0 0.0
        %2515 = vmatpush1.msra.mxu0 0.0
        %2516 = vmatprep.mubr.f32.mxu0 0.0
        %2517 = vmatmul.mubr.f32.gmra.mrb[0].mxu0 %v2353
        %v2518 = vpop.f32.mrb[0].mxu0
        %v2519 = vadd.f32 0.0, %v2518
        %v2520 = vpop.f32.mrb[0].mxu0
        %2521 = vmatprep.mubr.f32.mxu0 0.0
        %2522 = vmatmul.mubr.f32.gmra.mrb[0].mxu0 %v2355
        %v2523 = vpop.f32.mrb[0].mxu0
        %v2524 = vadd.f32 0.0, %v2523
        %v2525 = vpop.f32.mrb[0].mxu0
        %2526 = vdwg.mxu0
        %v2527 = vadd.f32 %v2326, %v2519
        %v2528 = vadd.f32 %v2327, %v2524
        %s2529 = scalar_lea.vmem %s4, 352
        %v2530 = vld [vmem:[%s2529] sm:$0xff]
        %v2531 = vld [vmem:[%s2529 + $0x8] sm:$0xff]
        %v2532 = vld [vmem:[%s2529 + $0x10] sm:$0xff]
        %v2533 = vld [vmem:[%s2529 + $0x18] sm:$0xff]
        %v2534 = vld [vmem:[%s2529 + $0x20] sm:$0xff]
        %v2535 = vld [vmem:[%s2529 + $0x28] sm:$0xff]
        %v2536 = vld [vmem:[%s2529 + $0x30] sm:$0xff]
        %v2537 = vld [vmem:[%s2529 + $0x38] sm:$0xff]
        %v2538 = vld [vmem:[%s2529 + $0x40] sm:$0xff]
        %v2539 = vld [vmem:[%s2529 + $0x48] sm:$0xff]
        %v2540 = vld [vmem:[%s2529 + $0x50] sm:$0xf]
        %v2542 = vlaneseq
        %v2543 = vshrl.u32 %v2542, 7
        %v2544 = vsub.s32 0, %v2543
        %v2545 = vrot.slane %v1680, %v2544
        %v2546 = vsel %vm1765, %v1744, %v1740
        %v2547 = vsel %vm1767, %v1748, %v2546
        %v2548 = vsel %vm1769, %v1752, %v2547
        %v2549 = vsel %vm1771, %v1756, %v2548
        %v2550 = vsel %vm1773, %v1760, %v2549
        %v2551 = vsel %vm1775, %v1764, %v2550
        %v2552 = vsel %vm1777, %v2143, %v2551
        %v2553 = vsel %vm1765, %v2545, %v2344
        %v2554 = vsel %vm1780, %v2552, 0
        %v2556 = vsel %vm1780, %v2553, 0
        %v2559 = vsel %vm1785, %v2540, 0
        %2561 = vmatprep.subr.mxu0 0.0
        %2562 = vmatpush1.msra.mxu0 %v2530
        %2563 = vmatprep.subr.mxu0 0.0
        %2564 = vmatpush1.msra.mxu0 %v2531
        %2565 = vmatprep.subr.mxu0 0.0
        %2566 = vmatpush1.msra.mxu0 %v2532
        %2567 = vmatprep.subr.mxu0 0.0
        %2568 = vmatpush1.msra.mxu0 %v2533
        %2569 = vmatprep.subr.mxu0 0.0
        %2570 = vmatpush1.msra.mxu0 %v2534
        %2571 = vmatprep.subr.mxu0 0.0
        %2572 = vmatpush1.msra.mxu0 %v2535
        %2573 = vmatprep.subr.mxu0 0.0
        %2574 = vmatpush1.msra.mxu0 %v2536
        %2575 = vmatprep.subr.mxu0 0.0
        %2576 = vmatpush1.msra.mxu0 %v2537
        %2577 = vmatprep.subr.mxu0 0.0
        %2578 = vmatpush1.msra.mxu0 %v2538
        %2579 = vmatprep.subr.mxu0 0.0
        %2580 = vmatpush1.msra.mxu0 %v2539
        %2581 = vmatprep.subr.mxu0 0.0
        %2582 = vmatpush1.msra.mxu0 %v2559
        %2583 = vmatprep.subr.mxu0 0.0
        %2584 = vmatpush1.msra.mxu0 0.0
        %2585 = vmatprep.subr.mxu0 0.0
        %2586 = vmatpush1.msra.mxu0 0.0
        %2587 = vmatprep.subr.mxu0 0.0
        %2588 = vmatpush1.msra.mxu0 0.0
        %2589 = vmatprep.subr.mxu0 0.0
        %2590 = vmatpush1.msra.mxu0 0.0
        %2591 = vmatprep.subr.mxu0 0.0
        %2592 = vmatpush1.msra.mxu0 0.0
        %2593 = vmatprep.subr.mxu0 0.0
        %2594 = vmatpush1.msra.mxu0 0.0
        %2595 = vmatprep.subr.mxu0 0.0
        %2596 = vmatpush1.msra.mxu0 0.0
        %2597 = vmatprep.subr.mxu0 0.0
        %2598 = vmatpush1.msra.mxu0 0.0
        %2599 = vmatprep.subr.mxu0 0.0
        %2600 = vmatpush1.msra.mxu0 0.0
        %2601 = vmatprep.subr.mxu0 0.0
        %2602 = vmatpush1.msra.mxu0 0.0
        %2603 = vmatprep.subr.mxu0 0.0
        %2604 = vmatpush1.msra.mxu0 0.0
        %2605 = vmatprep.subr.mxu0 0.0
        %2606 = vmatpush1.msra.mxu0 0.0
        %2607 = vmatprep.subr.mxu0 0.0
        %2608 = vmatpush1.msra.mxu0 0.0
        %2609 = vmatprep.subr.mxu0 0.0
        %2610 = vmatpush1.msra.mxu0 0.0
        %2611 = vmatprep.subr.mxu0 0.0
        %2612 = vmatpush1.msra.mxu0 0.0
        %2613 = vmatprep.subr.mxu0 0.0
        %2614 = vmatpush1.msra.mxu0 0.0
        %2615 = vmatprep.subr.mxu0 0.0
        %2616 = vmatpush1.msra.mxu0 0.0
        %2617 = vmatprep.subr.mxu0 0.0
        %2618 = vmatpush1.msra.mxu0 0.0
        %2619 = vmatprep.subr.mxu0 0.0
        %2620 = vmatpush1.msra.mxu0 0.0
        %2621 = vmatprep.subr.mxu0 0.0
        %2622 = vmatpush1.msra.mxu0 0.0
        %2623 = vmatprep.subr.mxu0 0.0
        %2624 = vmatpush1.msra.mxu0 0.0
        %2625 = vmatprep.mubr.f32.mxu0 0.0
        %2626 = vmatmul.mubr.f32.gmra.mrb[0].mxu0 %v2554
        %v2627 = vpop.f32.mrb[0].mxu0
        %v2628 = vadd.f32 0.0, %v2627
        %v2629 = vpop.f32.mrb[0].mxu0
        %2630 = vmatprep.mubr.f32.mxu0 0.0
        %2631 = vmatmul.mubr.f32.gmra.mrb[0].mxu0 %v2556
        %v2632 = vpop.f32.mrb[0].mxu0
        %v2633 = vadd.f32 0.0, %v2632
        %v2634 = vpop.f32.mrb[0].mxu0
        %2635 = vdwg.mxu0
        %v2636 = vadd.f32 %v2435, %v2628
        %v2637 = vadd.f32 %v2436, %v2633
        %s2638 = scalar_lea.vmem %s5, 352
        %v2639 = vld [vmem:[%s2638] sm:$0xff]
        %v2640 = vld [vmem:[%s2638 + $0x8] sm:$0xff]
        %v2641 = vld [vmem:[%s2638 + $0x10] sm:$0xff]
        %v2642 = vld [vmem:[%s2638 + $0x18] sm:$0xff]
        %v2643 = vld [vmem:[%s2638 + $0x20] sm:$0xff]
        %v2644 = vld [vmem:[%s2638 + $0x28] sm:$0xff]
        %v2645 = vld [vmem:[%s2638 + $0x30] sm:$0xff]
        %v2646 = vld [vmem:[%s2638 + $0x38] sm:$0xff]
        %v2647 = vld [vmem:[%s2638 + $0x40] sm:$0xff]
        %v2648 = vld [vmem:[%s2638 + $0x48] sm:$0xff]
        %v2649 = vld [vmem:[%s2638 + $0x50] sm:$0xf]
        %v2651 = vsel %vm1785, %v2649, 0
        %2653 = vmatprep.subr.mxu0 0.0
        %2654 = vmatpush1.msra.mxu0 %v2639
        %2655 = vmatprep.subr.mxu0 0.0
        %2656 = vmatpush1.msra.mxu0 %v2640
        %2657 = vmatprep.subr.mxu0 0.0
        %2658 = vmatpush1.msra.mxu0 %v2641
        %2659 = vmatprep.subr.mxu0 0.0
        %2660 = vmatpush1.msra.mxu0 %v2642
        %2661 = vmatprep.subr.mxu0 0.0
        %2662 = vmatpush1.msra.mxu0 %v2643
        %2663 = vmatprep.subr.mxu0 0.0
        %2664 = vmatpush1.msra.mxu0 %v2644
        %2665 = vmatprep.subr.mxu0 0.0
        %2666 = vmatpush1.msra.mxu0 %v2645
        %2667 = vmatprep.subr.mxu0 0.0
        %2668 = vmatpush1.msra.mxu0 %v2646
        %2669 = vmatprep.subr.mxu0 0.0
        %2670 = vmatpush1.msra.mxu0 %v2647
        %2671 = vmatprep.subr.mxu0 0.0
        %2672 = vmatpush1.msra.mxu0 %v2648
        %2673 = vmatprep.subr.mxu0 0.0
        %2674 = vmatpush1.msra.mxu0 %v2651
        %2675 = vmatprep.subr.mxu0 0.0
        %2676 = vmatpush1.msra.mxu0 0.0
        %2677 = vmatprep.subr.mxu0 0.0
        %2678 = vmatpush1.msra.mxu0 0.0
        %2679 = vmatprep.subr.mxu0 0.0
        %2680 = vmatpush1.msra.mxu0 0.0
        %2681 = vmatprep.subr.mxu0 0.0
        %2682 = vmatpush1.msra.mxu0 0.0
        %2683 = vmatprep.subr.mxu0 0.0
        %2684 = vmatpush1.msra.mxu0 0.0
        %2685 = vmatprep.subr.mxu0 0.0
        %2686 = vmatpush1.msra.mxu0 0.0
        %2687 = vmatprep.subr.mxu0 0.0
        %2688 = vmatpush1.msra.mxu0 0.0
        %2689 = vmatprep.subr.mxu0 0.0
        %2690 = vmatpush1.msra.mxu0 0.0
        %2691 = vmatprep.subr.mxu0 0.0
        %2692 = vmatpush1.msra.mxu0 0.0
        %2693 = vmatprep.subr.mxu0 0.0
        %2694 = vmatpush1.msra.mxu0 0.0
        %2695 = vmatprep.subr.mxu0 0.0
        %2696 = vmatpush1.msra.mxu0 0.0
        %2697 = vmatprep.subr.mxu0 0.0
        %2698 = vmatpush1.msra.mxu0 0.0
        %2699 = vmatprep.subr.mxu0 0.0
        %2700 = vmatpush1.msra.mxu0 0.0
        %2701 = vmatprep.subr.mxu0 0.0
        %2702 = vmatpush1.msra.mxu0 0.0
        %2703 = vmatprep.subr.mxu0 0.0
        %2704 = vmatpush1.msra.mxu0 0.0
        %2705 = vmatprep.subr.mxu0 0.0
        %2706 = vmatpush1.msra.mxu0 0.0
        %2707 = vmatprep.subr.mxu0 0.0
        %2708 = vmatpush1.msra.mxu0 0.0
        %2709 = vmatprep.subr.mxu0 0.0
        %2710 = vmatpush1.msra.mxu0 0.0
        %2711 = vmatprep.subr.mxu0 0.0
        %2712 = vmatpush1.msra.mxu0 0.0
        %2713 = vmatprep.subr.mxu0 0.0
        %2714 = vmatpush1.msra.mxu0 0.0
        %2715 = vmatprep.subr.mxu0 0.0
        %2716 = vmatpush1.msra.mxu0 0.0
        %2717 = vmatprep.mubr.f32.mxu0 0.0
        %2718 = vmatmul.mubr.f32.gmra.mrb[0].mxu0 %v2554
        %v2719 = vpop.f32.mrb[0].mxu0
        %v2720 = vadd.f32 0.0, %v2719
        %v2721 = vpop.f32.mrb[0].mxu0
        %2722 = vmatprep.mubr.f32.mxu0 0.0
        %2723 = vmatmul.mubr.f32.gmra.mrb[0].mxu0 %v2556
        %v2724 = vpop.f32.mrb[0].mxu0
        %v2725 = vadd.f32 0.0, %v2724
        %v2726 = vpop.f32.mrb[0].mxu0
        %2727 = vdwg.mxu0
        %v2728 = vadd.f32 %v2527, %v2720
        %v2729 = vadd.f32 %v2528, %v2725
        %v2730 = vld [vmem:[%s6] sm:$0x1]
        %v2732 = vlaneseq
        %v2733 = vshrl.u32 %v2732, 7
        %v2734 = vsub.s32 0, %v2733
        %v2735 = vrot.slane %v2730, %v2734
        %v2737 = vadd.f32 %v2636, %v2735
        %v2738 = vadd.f32 %v2637, %v2735
        %v2739 = vmax.f32 %v2737, 0.0
        %v2740 = vmax.f32 %v2738, 0.0
        %v2741 = vadd.f32 %v2728, %v2735
        %v2742 = vadd.f32 %v2729, %v2735
        %v2743 = vmax.f32 %v2741, 0.0
        %v2744 = vmax.f32 %v2742, 0.0
        %v2745 = vmax.f32 %v2739, %v2743
        %v2746 = vmax.f32 %v2740, %v2744
        %v2749 = vcombine.high %v2745, %v2745
        %v2751 = vunpack.c.l.s4 1983009808
        %v2752 = vunpack.c.0.s8 %v2751
        %v2753 = vlaneseq
        %v2754 = vshrl.u32 %v2753, 7
        %v2755 = vsub.s32 %v2752, %v2754
        %v2756 = vrot.slane %v2745, %v2755
        %v2758 = vunpack.c.l.s4 1983009808
        %v2759 = vunpack.c.0.s8 %v2758
        %v2760 = vlaneseq
        %v2761 = vshrl.u32 %v2760, 7
        %v2762 = vsub.s32 %v2759, %v2761
        %v2763 = vrot.slane %v2749, %v2762
        %v2764 = vcombine.high %v2756, %v2756
        %v2765 = vcombine.high %v2763, %v2763
        %v2767 = vunpack.c.l.s4 1983009808
        %v2768 = vunpack.c.0.s8 %v2767
        %v2769 = vlaneseq
        %v2770 = vshrl.u32 %v2769, 7
        %v2771 = vsub.s32 %v2768, %v2770
        %v2772 = vrot.slane %v2746, %v2771
        %v2778 = vrot.slane %v2756, 7
        %v2779 = vrot.slane %v2778, 2
        %v2780 = vrot.slane %v2764, 7
        %v2781 = vrot.slane %v2780, 2
        %v2782 = vrot.slane %v2763, 7
        %v2783 = vrot.slane %v2782, 2
        %v2784 = vrot.slane %v2765, 7
        %v2785 = vrot.slane %v2784, 2
        %v2786 = vrot.slane %v2772, 7
        %v2787 = vrot.slane %v2786, 2
        %v2793 = vmax.f32 %v2756, %v2779
        %v2794 = vmax.f32 %v2764, %v2781
        %v2795 = vmax.f32 %v2763, %v2783
        %v2796 = vmax.f32 %v2765, %v2785
        %v2797 = vmax.f32 %v2772, %v2787
        %v2798 = vld [vmem:[%s7] sm:$0xff]
        %v2799 = vld [vmem:[%s7 + $0x8] sm:$0xff]
        %v2800 = vld [vmem:[%s7 + $0x10] sm:$0xff]
        %v2801 = vld [vmem:[%s7 + $0x18] sm:$0xff]
        %v2802 = vld [vmem:[%s7 + $0x20] sm:$0xff]
        %v2803 = vld [vmem:[%s7 + $0x28] sm:$0xff]
        %v2804 = vld [vmem:[%s7 + $0x30] sm:$0xff]
        %v2805 = vld [vmem:[%s7 + $0x38] sm:$0xff]
        %v2806 = vld [vmem:[%s7 + $0x40] sm:$0xff]
        %v2807 = vld [vmem:[%s7 + $0x48] sm:$0xff]
        %s2808 = scalar_lea.vmem %s7, 80
        %v2809 = vld [vmem:[%s2808] sm:$0xff]
        %v2810 = vld [vmem:[%s2808 + $0x8] sm:$0xff]
        %v2811 = vld [vmem:[%s2808 + $0x10] sm:$0xff]
        %v2812 = vld [vmem:[%s2808 + $0x18] sm:$0xff]
        %v2813 = vld [vmem:[%s2808 + $0x20] sm:$0xff]
        %v2814 = vld [vmem:[%s2808 + $0x28] sm:$0xff]
        %v2815 = vld [vmem:[%s2808 + $0x30] sm:$0xff]
        %v2816 = vld [vmem:[%s2808 + $0x38] sm:$0xff]
        %v2817 = vld [vmem:[%s2808 + $0x40] sm:$0xff]
        %v2818 = vld [vmem:[%s2808 + $0x48] sm:$0xff]
        %vm2819 = vcmask 654336
        %v2821 = vsel %vm2819, %v2794, 0
        %2823 = vmatprep.subr.mxu0 0.0
        %2824 = vmatpush1.msra.mxu0 %v2809
        %2825 = vmatprep.subr.mxu0 0.0
        %2826 = vmatpush1.msra.mxu0 %v2810
        %2827 = vmatprep.subr.mxu0 0.0
        %2828 = vmatpush1.msra.mxu0 %v2811
        %2829 = vmatprep.subr.mxu0 0.0
        %2830 = vmatpush1.msra.mxu0 %v2812
        %2831 = vmatprep.subr.mxu0 0.0
        %2832 = vmatpush1.msra.mxu0 %v2813
        %2833 = vmatprep.subr.mxu0 0.0
        %2834 = vmatpush1.msra.mxu0 %v2814
        %2835 = vmatprep.subr.mxu0 0.0
        %2836 = vmatpush1.msra.mxu0 %v2815
        %2837 = vmatprep.subr.mxu0 0.0
        %2838 = vmatpush1.msra.mxu0 %v2816
        %2839 = vmatprep.subr.mxu0 0.0
        %2840 = vmatpush1.msra.mxu0 %v2817
        %2841 = vmatprep.subr.mxu0 0.0
        %2842 = vmatpush1.msra.mxu0 %v2818
        %2843 = vmatprep.subr.mxu0 0.0
        %2844 = vmatpush1.msra.mxu0 0.0
        %2845 = vmatprep.subr.mxu0 0.0
        %2846 = vmatpush1.msra.mxu0 0.0
        %2847 = vmatprep.subr.mxu0 0.0
        %2848 = vmatpush1.msra.mxu0 0.0
        %2849 = vmatprep.subr.mxu0 0.0
        %2850 = vmatpush1.msra.mxu0 0.0
        %2851 = vmatprep.subr.mxu0 0.0
        %2852 = vmatpush1.msra.mxu0 0.0
        %2853 = vmatprep.subr.mxu0 0.0
        %2854 = vmatpush1.msra.mxu0 0.0
        %2855 = vmatprep.subr.mxu0 0.0
        %2856 = vmatpush1.msra.mxu0 0.0
        %2857 = vmatprep.subr.mxu0 0.0
        %2858 = vmatpush1.msra.mxu0 0.0
        %2859 = vmatprep.subr.mxu0 0.0
        %2860 = vmatpush1.msra.mxu0 0.0
        %2861 = vmatprep.subr.mxu0 0.0
        %2862 = vmatpush1.msra.mxu0 0.0
        %2863 = vmatprep.subr.mxu0 0.0
        %2864 = vmatpush1.msra.mxu0 0.0
        %2865 = vmatprep.subr.mxu0 0.0
        %2866 = vmatpush1.msra.mxu0 0.0
        %2867 = vmatprep.subr.mxu0 0.0
        %2868 = vmatpush1.msra.mxu0 0.0
        %2869 = vmatprep.subr.mxu0 0.0
        %2870 = vmatpush1.msra.mxu0 0.0
        %2871 = vmatprep.subr.mxu0 0.0
        %2872 = vmatpush1.msra.mxu0 0.0
        %2873 = vmatprep.subr.mxu0 0.0
        %2874 = vmatpush1.msra.mxu0 0.0
        %2875 = vmatprep.subr.mxu0 0.0
        %2876 = vmatpush1.msra.mxu0 0.0
        %2877 = vmatprep.subr.mxu0 0.0
        %2878 = vmatpush1.msra.mxu0 0.0
        %2879 = vmatprep.subr.mxu0 0.0
        %2880 = vmatpush1.msra.mxu0 0.0
        %2881 = vmatprep.subr.mxu0 0.0
        %2882 = vmatpush1.msra.mxu0 0.0
        %2883 = vmatprep.subr.mxu0 0.0
        %2884 = vmatpush1.msra.mxu0 0.0
        %2885 = vmatprep.subr.mxu0 0.0
        %2886 = vmatpush1.msra.mxu0 0.0
        %2887 = vmatprep.mubr.f32.mxu0 0.0
        %2888 = vmatmul.mubr.f32.gmra.mrb[0].mxu0 %v2821
        %v2889 = vpop.f32.mrb[0].mxu0
        %v2890 = vadd.f32 0.0, %v2889
        %v2891 = vpop.f32.mrb[0].mxu0
        %2892 = vdwg.mxu0
        %v2894 = vsel %vm2819, %v2793, 0
        %2896 = vmatprep.subr.mxu0 0.0
        %2897 = vmatpush1.msra.mxu0 %v2798
        %2898 = vmatprep.subr.mxu0 0.0
        %2899 = vmatpush1.msra.mxu0 %v2799
        %2900 = vmatprep.subr.mxu0 0.0
        %2901 = vmatpush1.msra.mxu0 %v2800
        %2902 = vmatprep.subr.mxu0 0.0
        %2903 = vmatpush1.msra.mxu0 %v2801
        %2904 = vmatprep.subr.mxu0 0.0
        %2905 = vmatpush1.msra.mxu0 %v2802
        %2906 = vmatprep.subr.mxu0 0.0
        %2907 = vmatpush1.msra.mxu0 %v2803
        %2908 = vmatprep.subr.mxu0 0.0
        %2909 = vmatpush1.msra.mxu0 %v2804
        %2910 = vmatprep.subr.mxu0 0.0
        %2911 = vmatpush1.msra.mxu0 %v2805
        %2912 = vmatprep.subr.mxu0 0.0
        %2913 = vmatpush1.msra.mxu0 %v2806
        %2914 = vmatprep.subr.mxu0 0.0
        %2915 = vmatpush1.msra.mxu0 %v2807
        %2916 = vmatprep.subr.mxu0 0.0
        %2917 = vmatpush1.msra.mxu0 0.0
        %2918 = vmatprep.subr.mxu0 0.0
        %2919 = vmatpush1.msra.mxu0 0.0
        %2920 = vmatprep.subr.mxu0 0.0
        %2921 = vmatpush1.msra.mxu0 0.0
        %2922 = vmatprep.subr.mxu0 0.0
        %2923 = vmatpush1.msra.mxu0 0.0
        %2924 = vmatprep.subr.mxu0 0.0
        %2925 = vmatpush1.msra.mxu0 0.0
        %2926 = vmatprep.subr.mxu0 0.0
        %2927 = vmatpush1.msra.mxu0 0.0
        %2928 = vmatprep.subr.mxu0 0.0
        %2929 = vmatpush1.msra.mxu0 0.0
        %2930 = vmatprep.subr.mxu0 0.0
        %2931 = vmatpush1.msra.mxu0 0.0
        %2932 = vmatprep.subr.mxu0 0.0
        %2933 = vmatpush1.msra.mxu0 0.0
        %2934 = vmatprep.subr.mxu0 0.0
        %2935 = vmatpush1.msra.mxu0 0.0
        %2936 = vmatprep.subr.mxu0 0.0
        %2937 = vmatpush1.msra.mxu0 0.0
        %2938 = vmatprep.subr.mxu0 0.0
        %2939 = vmatpush1.msra.mxu0 0.0
        %2940 = vmatprep.subr.mxu0 0.0
        %2941 = vmatpush1.msra.mxu0 0.0
        %2942 = vmatprep.subr.mxu0 0.0
        %2943 = vmatpush1.msra.mxu0 0.0
        %2944 = vmatprep.subr.mxu0 0.0
        %2945 = vmatpush1.msra.mxu0 0.0
        %2946 = vmatprep.subr.mxu0 0.0
        %2947 = vmatpush1.msra.mxu0 0.0
        %2948 = vmatprep.subr.mxu0 0.0
        %2949 = vmatpush1.msra.mxu0 0.0
        %2950 = vmatprep.subr.mxu0 0.0
        %2951 = vmatpush1.msra.mxu0 0.0
        %2952 = vmatprep.subr.mxu0 0.0
        %2953 = vmatpush1.msra.mxu0 0.0
        %2954 = vmatprep.subr.mxu0 0.0
        %2955 = vmatpush1.msra.mxu0 0.0
        %2956 = vmatprep.subr.mxu0 0.0
        %2957 = vmatpush1.msra.mxu0 0.0
        %2958 = vmatprep.subr.mxu0 0.0
        %2959 = vmatpush1.msra.mxu0 0.0
        %2960 = vmatprep.mubr.f32.mxu0 0.0
        %2961 = vmatmul.mubr.f32.gmra.mrb[0].mxu0 %v2894
        %v2962 = vpop.f32.mrb[0].mxu0
        %v2963 = vadd.f32 %v2890, %v2962
        %v2964 = vpop.f32.mrb[0].mxu0
        %2965 = vdwg.mxu0
        %s2966 = scalar_lea.vmem %s7, 160
        %v2967 = vld [vmem:[%s2966] sm:$0xff]
        %v2968 = vld [vmem:[%s2966 + $0x8] sm:$0xff]
        %v2969 = vld [vmem:[%s2966 + $0x10] sm:$0xff]
        %v2970 = vld [vmem:[%s2966 + $0x18] sm:$0xff]
        %v2971 = vld [vmem:[%s2966 + $0x20] sm:$0xff]
        %v2972 = vld [vmem:[%s2966 + $0x28] sm:$0xff]
        %v2973 = vld [vmem:[%s2966 + $0x30] sm:$0xff]
        %v2974 = vld [vmem:[%s2966 + $0x38] sm:$0xff]
        %v2975 = vld [vmem:[%s2966 + $0x40] sm:$0xff]
        %v2976 = vld [vmem:[%s2966 + $0x48] sm:$0xff]
        %v2978 = vsel %vm2819, %v2795, 0
        %2980 = vmatprep.subr.mxu0 0.0
        %2981 = vmatpush1.msra.mxu0 %v2967
        %2982 = vmatprep.subr.mxu0 0.0
        %2983 = vmatpush1.msra.mxu0 %v2968
        %2984 = vmatprep.subr.mxu0 0.0
        %2985 = vmatpush1.msra.mxu0 %v2969
        %2986 = vmatprep.subr.mxu0 0.0
        %2987 = vmatpush1.msra.mxu0 %v2970
        %2988 = vmatprep.subr.mxu0 0.0
        %2989 = vmatpush1.msra.mxu0 %v2971
        %2990 = vmatprep.subr.mxu0 0.0
        %2991 = vmatpush1.msra.mxu0 %v2972
        %2992 = vmatprep.subr.mxu0 0.0
        %2993 = vmatpush1.msra.mxu0 %v2973
        %2994 = vmatprep.subr.mxu0 0.0
        %2995 = vmatpush1.msra.mxu0 %v2974
        %2996 = vmatprep.subr.mxu0 0.0
        %2997 = vmatpush1.msra.mxu0 %v2975
        %2998 = vmatprep.subr.mxu0 0.0
        %2999 = vmatpush1.msra.mxu0 %v2976
        %3000 = vmatprep.subr.mxu0 0.0
        %3001 = vmatpush1.msra.mxu0 0.0
        %3002 = vmatprep.subr.mxu0 0.0
        %3003 = vmatpush1.msra.mxu0 0.0
        %3004 = vmatprep.subr.mxu0 0.0
        %3005 = vmatpush1.msra.mxu0 0.0
        %3006 = vmatprep.subr.mxu0 0.0
        %3007 = vmatpush1.msra.mxu0 0.0
        %3008 = vmatprep.subr.mxu0 0.0
        %3009 = vmatpush1.msra.mxu0 0.0
        %3010 = vmatprep.subr.mxu0 0.0
        %3011 = vmatpush1.msra.mxu0 0.0
        %3012 = vmatprep.subr.mxu0 0.0
        %3013 = vmatpush1.msra.mxu0 0.0
        %3014 = vmatprep.subr.mxu0 0.0
        %3015 = vmatpush1.msra.mxu0 0.0
        %3016 = vmatprep.subr.mxu0 0.0
        %3017 = vmatpush1.msra.mxu0 0.0
        %3018 = vmatprep.subr.mxu0 0.0
        %3019 = vmatpush1.msra.mxu0 0.0
        %3020 = vmatprep.subr.mxu0 0.0
        %3021 = vmatpush1.msra.mxu0 0.0
        %3022 = vmatprep.subr.mxu0 0.0
        %3023 = vmatpush1.msra.mxu0 0.0
        %3024 = vmatprep.subr.mxu0 0.0
        %3025 = vmatpush1.msra.mxu0 0.0
        %3026 = vmatprep.subr.mxu0 0.0
        %3027 = vmatpush1.msra.mxu0 0.0
        %3028 = vmatprep.subr.mxu0 0.0
        %3029 = vmatpush1.msra.mxu0 0.0
        %3030 = vmatprep.subr.mxu0 0.0
        %3031 = vmatpush1.msra.mxu0 0.0
        %3032 = vmatprep.subr.mxu0 0.0
        %3033 = vmatpush1.msra.mxu0 0.0
        %3034 = vmatprep.subr.mxu0 0.0
        %3035 = vmatpush1.msra.mxu0 0.0
        %3036 = vmatprep.subr.mxu0 0.0
        %3037 = vmatpush1.msra.mxu0 0.0
        %3038 = vmatprep.subr.mxu0 0.0
        %3039 = vmatpush1.msra.mxu0 0.0
        %3040 = vmatprep.subr.mxu0 0.0
        %3041 = vmatpush1.msra.mxu0 0.0
        %3042 = vmatprep.subr.mxu0 0.0
        %3043 = vmatpush1.msra.mxu0 0.0
        %3044 = vmatprep.mubr.f32.mxu0 0.0
        %3045 = vmatmul.mubr.f32.gmra.mrb[0].mxu0 %v2978
        %v3046 = vpop.f32.mrb[0].mxu0
        %v3047 = vadd.f32 0.0, %v3046
        %v3048 = vpop.f32.mrb[0].mxu0
        %3049 = vdwg.mxu0
        %v3050 = vadd.f32 %v2963, %v3047
        %s3051 = scalar_lea.vmem %s7, 240
        %v3052 = vld [vmem:[%s3051] sm:$0xff]
        %v3053 = vld [vmem:[%s3051 + $0x8] sm:$0xff]
        %v3054 = vld [vmem:[%s3051 + $0x10] sm:$0xff]
        %v3055 = vld [vmem:[%s3051 + $0x18] sm:$0xff]
        %v3056 = vld [vmem:[%s3051 + $0x20] sm:$0xff]
        %v3057 = vld [vmem:[%s3051 + $0x28] sm:$0xff]
        %v3058 = vld [vmem:[%s3051 + $0x30] sm:$0xff]
        %v3059 = vld [vmem:[%s3051 + $0x38] sm:$0xff]
        %v3060 = vld [vmem:[%s3051 + $0x40] sm:$0xff]
        %v3061 = vld [vmem:[%s3051 + $0x48] sm:$0xff]
        %v3063 = vsel %vm2819, %v2796, 0
        %3065 = vmatprep.subr.mxu0 0.0
        %3066 = vmatpush1.msra.mxu0 %v3052
        %3067 = vmatprep.subr.mxu0 0.0
        %3068 = vmatpush1.msra.mxu0 %v3053
        %3069 = vmatprep.subr.mxu0 0.0
        %3070 = vmatpush1.msra.mxu0 %v3054
        %3071 = vmatprep.subr.mxu0 0.0
        %3072 = vmatpush1.msra.mxu0 %v3055
        %3073 = vmatprep.subr.mxu0 0.0
        %3074 = vmatpush1.msra.mxu0 %v3056
        %3075 = vmatprep.subr.mxu0 0.0
        %3076 = vmatpush1.msra.mxu0 %v3057
        %3077 = vmatprep.subr.mxu0 0.0
        %3078 = vmatpush1.msra.mxu0 %v3058
        %3079 = vmatprep.subr.mxu0 0.0
        %3080 = vmatpush1.msra.mxu0 %v3059
        %3081 = vmatprep.subr.mxu0 0.0
        %3082 = vmatpush1.msra.mxu0 %v3060
        %3083 = vmatprep.subr.mxu0 0.0
        %3084 = vmatpush1.msra.mxu0 %v3061
        %3085 = vmatprep.subr.mxu0 0.0
        %3086 = vmatpush1.msra.mxu0 0.0
        %3087 = vmatprep.subr.mxu0 0.0
        %3088 = vmatpush1.msra.mxu0 0.0
        %3089 = vmatprep.subr.mxu0 0.0
        %3090 = vmatpush1.msra.mxu0 0.0
        %3091 = vmatprep.subr.mxu0 0.0
        %3092 = vmatpush1.msra.mxu0 0.0
        %3093 = vmatprep.subr.mxu0 0.0
        %3094 = vmatpush1.msra.mxu0 0.0
        %3095 = vmatprep.subr.mxu0 0.0
        %3096 = vmatpush1.msra.mxu0 0.0
        %3097 = vmatprep.subr.mxu0 0.0
        %3098 = vmatpush1.msra.mxu0 0.0
        %3099 = vmatprep.subr.mxu0 0.0
        %3100 = vmatpush1.msra.mxu0 0.0
        %3101 = vmatprep.subr.mxu0 0.0
        %3102 = vmatpush1.msra.mxu0 0.0
        %3103 = vmatprep.subr.mxu0 0.0
        %3104 = vmatpush1.msra.mxu0 0.0
        %3105 = vmatprep.subr.mxu0 0.0
        %3106 = vmatpush1.msra.mxu0 0.0
        %3107 = vmatprep.subr.mxu0 0.0
        %3108 = vmatpush1.msra.mxu0 0.0
        %3109 = vmatprep.subr.mxu0 0.0
        %3110 = vmatpush1.msra.mxu0 0.0
        %3111 = vmatprep.subr.mxu0 0.0
        %3112 = vmatpush1.msra.mxu0 0.0
        %3113 = vmatprep.subr.mxu0 0.0
        %3114 = vmatpush1.msra.mxu0 0.0
        %3115 = vmatprep.subr.mxu0 0.0
        %3116 = vmatpush1.msra.mxu0 0.0
        %3117 = vmatprep.subr.mxu0 0.0
        %3118 = vmatpush1.msra.mxu0 0.0
        %3119 = vmatprep.subr.mxu0 0.0
        %3120 = vmatpush1.msra.mxu0 0.0
        %3121 = vmatprep.subr.mxu0 0.0
        %3122 = vmatpush1.msra.mxu0 0.0
        %3123 = vmatprep.subr.mxu0 0.0
        %3124 = vmatpush1.msra.mxu0 0.0
        %3125 = vmatprep.subr.mxu0 0.0
        %3126 = vmatpush1.msra.mxu0 0.0
        %3127 = vmatprep.subr.mxu0 0.0
        %3128 = vmatpush1.msra.mxu0 0.0
        %3129 = vmatprep.mubr.f32.mxu0 0.0
        %3130 = vmatmul.mubr.f32.gmra.mrb[0].mxu0 %v3063
        %v3131 = vpop.f32.mrb[0].mxu0
        %v3132 = vadd.f32 0.0, %v3131
        %v3133 = vpop.f32.mrb[0].mxu0
        %3134 = vdwg.mxu0
        %v3135 = vadd.f32 %v3050, %v3132
        %s3136 = scalar_lea.vmem %s7, 320
        %v3137 = vld [vmem:[%s3136] sm:$0xff]
        %v3138 = vld [vmem:[%s3136 + $0x8] sm:$0xff]
        %v3139 = vld [vmem:[%s3136 + $0x10] sm:$0xff]
        %v3140 = vld [vmem:[%s3136 + $0x18] sm:$0xff]
        %v3141 = vld [vmem:[%s3136 + $0x20] sm:$0xff]
        %v3142 = vld [vmem:[%s3136 + $0x28] sm:$0xff]
        %v3143 = vld [vmem:[%s3136 + $0x30] sm:$0xff]
        %v3144 = vld [vmem:[%s3136 + $0x38] sm:$0xff]
        %v3145 = vld [vmem:[%s3136 + $0x40] sm:$0xff]
        %v3146 = vld [vmem:[%s3136 + $0x48] sm:$0xff]
        %v3148 = vsel %vm2819, %v2797, 0
        %3150 = vmatprep.subr.mxu0 0.0
        %3151 = vmatpush1.msra.mxu0 %v3137
        %3152 = vmatprep.subr.mxu0 0.0
        %3153 = vmatpush1.msra.mxu0 %v3138
        %3154 = vmatprep.subr.mxu0 0.0
        %3155 = vmatpush1.msra.mxu0 %v3139
        %3156 = vmatprep.subr.mxu0 0.0
        %3157 = vmatpush1.msra.mxu0 %v3140
        %3158 = vmatprep.subr.mxu0 0.0
        %3159 = vmatpush1.msra.mxu0 %v3141
        %3160 = vmatprep.subr.mxu0 0.0
        %3161 = vmatpush1.msra.mxu0 %v3142
        %3162 = vmatprep.subr.mxu0 0.0
        %3163 = vmatpush1.msra.mxu0 %v3143
        %3164 = vmatprep.subr.mxu0 0.0
        %3165 = vmatpush1.msra.mxu0 %v3144
        %3166 = vmatprep.subr.mxu0 0.0
        %3167 = vmatpush1.msra.mxu0 %v3145
        %3168 = vmatprep.subr.mxu0 0.0
        %3169 = vmatpush1.msra.mxu0 %v3146
        %3170 = vmatprep.subr.mxu0 0.0
        %3171 = vmatpush1.msra.mxu0 0.0
        %3172 = vmatprep.subr.mxu0 0.0
        %3173 = vmatpush1.msra.mxu0 0.0
        %3174 = vmatprep.subr.mxu0 0.0
        %3175 = vmatpush1.msra.mxu0 0.0
        %3176 = vmatprep.subr.mxu0 0.0
        %3177 = vmatpush1.msra.mxu0 0.0
        %3178 = vmatprep.subr.mxu0 0.0
        %3179 = vmatpush1.msra.mxu0 0.0
        %3180 = vmatprep.subr.mxu0 0.0
        %3181 = vmatpush1.msra.mxu0 0.0
        %3182 = vmatprep.subr.mxu0 0.0
        %3183 = vmatpush1.msra.mxu0 0.0
        %3184 = vmatprep.subr.mxu0 0.0
        %3185 = vmatpush1.msra.mxu0 0.0
        %3186 = vmatprep.subr.mxu0 0.0
        %3187 = vmatpush1.msra.mxu0 0.0
        %3188 = vmatprep.subr.mxu0 0.0
        %3189 = vmatpush1.msra.mxu0 0.0
        %3190 = vmatprep.subr.mxu0 0.0
        %3191 = vmatpush1.msra.mxu0 0.0
        %3192 = vmatprep.subr.mxu0 0.0
        %3193 = vmatpush1.msra.mxu0 0.0
        %3194 = vmatprep.subr.mxu0 0.0
        %3195 = vmatpush1.msra.mxu0 0.0
        %3196 = vmatprep.subr.mxu0 0.0
        %3197 = vmatpush1.msra.mxu0 0.0
        %3198 = vmatprep.subr.mxu0 0.0
        %3199 = vmatpush1.msra.mxu0 0.0
        %3200 = vmatprep.subr.mxu0 0.0
        %3201 = vmatpush1.msra.mxu0 0.0
        %3202 = vmatprep.subr.mxu0 0.0
        %3203 = vmatpush1.msra.mxu0 0.0
        %3204 = vmatprep.subr.mxu0 0.0
        %3205 = vmatpush1.msra.mxu0 0.0
        %3206 = vmatprep.subr.mxu0 0.0
        %3207 = vmatpush1.msra.mxu0 0.0
        %3208 = vmatprep.subr.mxu0 0.0
        %3209 = vmatpush1.msra.mxu0 0.0
        %3210 = vmatprep.subr.mxu0 0.0
        %3211 = vmatpush1.msra.mxu0 0.0
        %3212 = vmatprep.subr.mxu0 0.0
        %3213 = vmatpush1.msra.mxu0 0.0
        %3214 = vmatprep.mubr.f32.mxu0 0.0
        %3215 = vmatmul.mubr.f32.gmra.mrb[0].mxu0 %v3148
        %v3216 = vpop.f32.mrb[0].mxu0
        %v3217 = vadd.f32 0.0, %v3216
        %v3218 = vpop.f32.mrb[0].mxu0
        %3219 = vdwg.mxu0
        %v3220 = vadd.f32 %v3135, %v3217
        %v3221 = vld [vmem:[%s8] sm:$0x1]
        %v3222 = vadd.f32 %v3220, %v3221
        %v3223 = vmax.f32 %v3222, 0.0
        %v3224 = vld [vmem:[%s9] sm:$0xff]
        %v3225 = vld [vmem:[%s9 + $0x8] sm:$0xff]
        %v3226 = vld [vmem:[%s9 + $0x10] sm:$0xff]
        %v3227 = vld [vmem:[%s9 + $0x18] sm:$0xff]
        %v3228 = vld [vmem:[%s9 + $0x20] sm:$0xff]
        %v3229 = vld [vmem:[%s9 + $0x28] sm:$0xff]
        %v3230 = vld [vmem:[%s9 + $0x30] sm:$0xff]
        %v3231 = vld [vmem:[%s9 + $0x38] sm:$0xff]
        %v3232 = vld [vmem:[%s9 + $0x40] sm:$0xff]
        %v3233 = vld [vmem:[%s9 + $0x48] sm:$0xff]
        %v3234 = vld [vmem:[%s9 + $0x50] sm:$0xff]
        %v3235 = vld [vmem:[%s9 + $0x58] sm:$0xff]
        %v3236 = vld [vmem:[%s9 + $0x60] sm:$0xff]
        %v3237 = vld [vmem:[%s9 + $0x68] sm:$0xff]
        %v3238 = vld [vmem:[%s9 + $0x70] sm:$0xff]
        %v3239 = vld [vmem:[%s10] sm:$0x1]
        %vm3240 = vcmask 982016
        %v3242 = vsel %vm3240, %v3223, 0
        %3244 = vmatprep.subr.mxu0 0.0
        %3245 = vmatpush1.msra.mxu0 %v3224
        %3246 = vmatprep.subr.mxu0 0.0
        %3247 = vmatpush1.msra.mxu0 %v3225
        %3248 = vmatprep.subr.mxu0 0.0
        %3249 = vmatpush1.msra.mxu0 %v3226
        %3250 = vmatprep.subr.mxu0 0.0
        %3251 = vmatpush1.msra.mxu0 %v3227
        %3252 = vmatprep.subr.mxu0 0.0
        %3253 = vmatpush1.msra.mxu0 %v3228
        %3254 = vmatprep.subr.mxu0 0.0
        %3255 = vmatpush1.msra.mxu0 %v3229
        %3256 = vmatprep.subr.mxu0 0.0
        %3257 = vmatpush1.msra.mxu0 %v3230
        %3258 = vmatprep.subr.mxu0 0.0
        %3259 = vmatpush1.msra.mxu0 %v3231
        %3260 = vmatprep.subr.mxu0 0.0
        %3261 = vmatpush1.msra.mxu0 %v3232
        %3262 = vmatprep.subr.mxu0 0.0
        %3263 = vmatpush1.msra.mxu0 %v3233
        %3264 = vmatprep.subr.mxu0 0.0
        %3265 = vmatpush1.msra.mxu0 %v3234
        %3266 = vmatprep.subr.mxu0 0.0
        %3267 = vmatpush1.msra.mxu0 %v3235
        %3268 = vmatprep.subr.mxu0 0.0
        %3269 = vmatpush1.msra.mxu0 %v3236
        %3270 = vmatprep.subr.mxu0 0.0
        %3271 = vmatpush1.msra.mxu0 %v3237
        %3272 = vmatprep.subr.mxu0 0.0
        %3273 = vmatpush1.msra.mxu0 %v3238
        %3274 = vmatprep.subr.mxu0 0.0
        %3275 = vmatpush1.msra.mxu0 0.0
        %3276 = vmatprep.subr.mxu0 0.0
        %3277 = vmatpush1.msra.mxu0 0.0
        %3278 = vmatprep.subr.mxu0 0.0
        %3279 = vmatpush1.msra.mxu0 0.0
        %3280 = vmatprep.subr.mxu0 0.0
        %3281 = vmatpush1.msra.mxu0 0.0
        %3282 = vmatprep.subr.mxu0 0.0
        %3283 = vmatpush1.msra.mxu0 0.0
        %3284 = vmatprep.subr.mxu0 0.0
        %3285 = vmatpush1.msra.mxu0 0.0
        %3286 = vmatprep.subr.mxu0 0.0
        %3287 = vmatpush1.msra.mxu0 0.0
        %3288 = vmatprep.subr.mxu0 0.0
        %3289 = vmatpush1.msra.mxu0 0.0
        %3290 = vmatprep.subr.mxu0 0.0
        %3291 = vmatpush1.msra.mxu0 0.0
        %3292 = vmatprep.subr.mxu0 0.0
        %3293 = vmatpush1.msra.mxu0 0.0
        %3294 = vmatprep.subr.mxu0 0.0
        %3295 = vmatpush1.msra.mxu0 0.0
        %3296 = vmatprep.subr.mxu0 0.0
        %3297 = vmatpush1.msra.mxu0 0.0
        %3298 = vmatprep.subr.mxu0 0.0
        %3299 = vmatpush1.msra.mxu0 0.0
        %3300 = vmatprep.subr.mxu0 0.0
        %3301 = vmatpush1.msra.mxu0 0.0
        %3302 = vmatprep.subr.mxu0 0.0
        %3303 = vmatpush1.msra.mxu0 0.0
        %3304 = vmatprep.subr.mxu0 0.0
        %3305 = vmatpush1.msra.mxu0 0.0
        %3306 = vmatprep.subr.mxu0 0.0
        %3307 = vmatpush1.msra.mxu0 0.0
        %3308 = vmatprep.mubr.f32.mxu0 0.0
        %3309 = vmatmul.mubr.f32.gmra.mrb[0].mxu0 %v3242
        %v3310 = vpop.f32.mrb[0].mxu0
        %v3311 = vadd.f32 %v3239, %v3310
        %v3312 = vpop.f32.mrb[0].mxu0
        %3313 = vdwg.mxu0
        %v3314 = vmax.f32 %v3311, 0.0
        %v3315 = vld [vmem:[%s11] sm:$0xff]
        %v3316 = vld [vmem:[%s11 + $0x8] sm:$0xff]
        %v3317 = vld [vmem:[%s11 + $0x10] sm:$0xff]
        %v3318 = vld [vmem:[%s11 + $0x18] sm:$0xff]
        %v3319 = vld [vmem:[%s11 + $0x20] sm:$0xff]
        %v3320 = vld [vmem:[%s11 + $0x28] sm:$0xff]
        %v3321 = vld [vmem:[%s11 + $0x30] sm:$0xff]
        %v3322 = vld [vmem:[%s11 + $0x38] sm:$0xff]
        %v3323 = vld [vmem:[%s11 + $0x40] sm:$0xff]
        %v3324 = vld [vmem:[%s11 + $0x48] sm:$0xff]
        %v3325 = vld [vmem:[%s11 + $0x50] sm:$0xf]
        %v3326 = vld [vmem:[%s12] sm:$0x1]
        %v3328 = vsel %vm1780, %v3314, 0
        %v3331 = vsel %vm1785, %v3325, 0
        %3333 = vmatprep.subr.mxu0 0.0
        %3334 = vmatpush1.msra.mxu0 %v3315
        %3335 = vmatprep.subr.mxu0 0.0
        %3336 = vmatpush1.msra.mxu0 %v3316
        %3337 = vmatprep.subr.mxu0 0.0
        %3338 = vmatpush1.msra.mxu0 %v3317
        %3339 = vmatprep.subr.mxu0 0.0
        %3340 = vmatpush1.msra.mxu0 %v3318
        %3341 = vmatprep.subr.mxu0 0.0
        %3342 = vmatpush1.msra.mxu0 %v3319
        %3343 = vmatprep.subr.mxu0 0.0
        %3344 = vmatpush1.msra.mxu0 %v3320
        %3345 = vmatprep.subr.mxu0 0.0
        %3346 = vmatpush1.msra.mxu0 %v3321
        %3347 = vmatprep.subr.mxu0 0.0
        %3348 = vmatpush1.msra.mxu0 %v3322
        %3349 = vmatprep.subr.mxu0 0.0
        %3350 = vmatpush1.msra.mxu0 %v3323
        %3351 = vmatprep.subr.mxu0 0.0
        %3352 = vmatpush1.msra.mxu0 %v3324
        %3353 = vmatprep.subr.mxu0 0.0
        %3354 = vmatpush1.msra.mxu0 %v3331
        %3355 = vmatprep.subr.mxu0 0.0
        %3356 = vmatpush1.msra.mxu0 0.0
        %3357 = vmatprep.subr.mxu0 0.0
        %3358 = vmatpush1.msra.mxu0 0.0
        %3359 = vmatprep.subr.mxu0 0.0
        %3360 = vmatpush1.msra.mxu0 0.0
        %3361 = vmatprep.subr.mxu0 0.0
        %3362 = vmatpush1.msra.mxu0 0.0
        %3363 = vmatprep.subr.mxu0 0.0
        %3364 = vmatpush1.msra.mxu0 0.0
        %3365 = vmatprep.subr.mxu0 0.0
        %3366 = vmatpush1.msra.mxu0 0.0
        %3367 = vmatprep.subr.mxu0 0.0
        %3368 = vmatpush1.msra.mxu0 0.0
        %3369 = vmatprep.subr.mxu0 0.0
        %3370 = vmatpush1.msra.mxu0 0.0
        %3371 = vmatprep.subr.mxu0 0.0
        %3372 = vmatpush1.msra.mxu0 0.0
        %3373 = vmatprep.subr.mxu0 0.0
        %3374 = vmatpush1.msra.mxu0 0.0
        %3375 = vmatprep.subr.mxu0 0.0
        %3376 = vmatpush1.msra.mxu0 0.0
        %3377 = vmatprep.subr.mxu0 0.0
        %3378 = vmatpush1.msra.mxu0 0.0
        %3379 = vmatprep.subr.mxu0 0.0
        %3380 = vmatpush1.msra.mxu0 0.0
        %3381 = vmatprep.subr.mxu0 0.0
        %3382 = vmatpush1.msra.mxu0 0.0
        %3383 = vmatprep.subr.mxu0 0.0
        %3384 = vmatpush1.msra.mxu0 0.0
        %3385 = vmatprep.subr.mxu0 0.0
        %3386 = vmatpush1.msra.mxu0 0.0
        %3387 = vmatprep.subr.mxu0 0.0
        %3388 = vmatpush1.msra.mxu0 0.0
        %3389 = vmatprep.subr.mxu0 0.0
        %3390 = vmatpush1.msra.mxu0 0.0
        %3391 = vmatprep.subr.mxu0 0.0
        %3392 = vmatpush1.msra.mxu0 0.0
        %3393 = vmatprep.subr.mxu0 0.0
        %3394 = vmatpush1.msra.mxu0 0.0
        %3395 = vmatprep.subr.mxu0 0.0
        %3396 = vmatpush1.msra.mxu0 0.0
        %3397 = vmatprep.mubr.f32.mxu0 0.0
        %3398 = vmatmul.mubr.f32.gmra.mrb[0].mxu0 %v3328
        %v3399 = vpop.f32.mrb[0].mxu0
        %v3400 = vadd.f32 %v3326, %v3399
        %v3401 = vpop.f32.mrb[0].mxu0
        %3402 = vdwg.mxu0
        %vm3403 = vcmask 73728
        %3404 = vst.msk [vmem:[%s432] sm:$0x1] %vm3403, %v3400
        %s3405 = sand.u32 %s313, 1
        %s3406 = scalar_lea.sflag [#allocation3], %s3405
        %s3407 = sand.u32 %s313, 1
        %s3408 = scalar_lea.vmem [#allocation2], %s3407
        // Predicated region
        $region73: #{net_forward.1} parent=71 // pred_check
          %p3409 = pneg %p323
        $region74: #{net_forward.1} parent=71 // pred_check_branch
          %3411 = sbr.rel (%p3409) target = $region76
        $region75: #{net_forward.1} parent=71 // pred_region
          %s3413 = ssub.s32 16, 16
          %3414 = vsyncadd %s3406, %s3413
          %s3415 = smul.addr %s27, 16
          %s3416 = scalar_lea.hbm %s13, %s3415
          %s3418 = sshll.u32 %s3408, 4
          %s3419 = int_to_ptr.vmem [resolvable:$true] %s3418
          %3421 = dma.vmem_to_hbm [thread:$0]  %s3419, 16, %s3416, %s3406
        $region76: #{net_forward.1} parent=71 // pred_fallthru
          _
      $region72: #{net_forward.1} parent=5 // pred_fallthru
        _
      %p3422 = scmp.le.s32.totalorder 2, %s22
      // Predicated region
      $region77: #{net_forward.1} parent=5 // pred_check
        %p3423 = pneg %p3422
      $region78: #{net_forward.1} parent=5 // pred_check_branch
        %3425 = sbr.rel (%p3423) target = $region80
      $region79: #{net_forward.1} parent=5 // pred_region
        %s3426 = ssub.s32 %s22, 2
        // Predicated region
        $region81: #{net_forward.1} parent=79 // pred_check
          %p3427 = pneg %p329
        $region82: #{net_forward.1} parent=79 // pred_check_branch
          %3429 = sbr.rel (%p3427) target = $region84
        $region83: #{net_forward.1} parent=79 // pred_region
          %s3430 = sand.u32 %s314, 1
          %s3431 = scalar_lea.sflag [#allocation3], %s3430
          %s3432 = sand.u32 %s314, 1
          %s3433 = scalar_lea.vmem [#allocation2], %s3432
          %3434 = dma.done %s3431, 16
        $region84: #{net_forward.1} parent=79 // pred_fallthru
          _
      $region80: #{net_forward.1} parent=5 // pred_fallthru
        _
    $region6: #{net_forward.1} parent=1 // loop_footer
      %s26 = sadd.s32 1, %s22
    $region7: #{net_forward.1} parent=1 // loop_footer_branch
      %21 = sbr.rel target = $region3
    $region8: #{net_forward.1} parent=1 // loop_exit
      _
    %3435 = vsyncpa [#allocation3], 1
    %s3436 = scalar_lea.sflag [#allocation3], 1
    %3437 = vsyncpa %s3436, 1

</llo_original>
